<compile_context>
chip_gen: v6e
topology: v6e:2x2x1
jax: 0.10.0
libtpu: 0.0.40
codegen_flags: <defaults>
</compile_context>

<pallas_src>
import functools

import jax
import jax.numpy as jnp
from jax import lax
from jax.experimental import pallas as pl
from jax.experimental.pallas import tpu as pltpu

_LANES = 128
_EPS = 1e-5


# =============================== kernels ====================================
def _conv_stats_kernel(x_ref, top_ref, bot_ref, w_ref, scale_ref, shift_ref,
                       y_ref, stats_ref, *, fuse_input):
    """3x3 conv (pad=1) on one (batch, row-tile) block + partial BN stats.

    x_ref     : (1, TH, W, Cin_p)    rows of this tile (compute dtype)
    top_ref   : (1, 1, W, Cin_p)     row above the tile (zeros at image edge)
    bot_ref   : (1, 1, W, Cin_p)     row below the tile (zeros at image edge)
    w_ref     : (3, 3*Cin_p, Cout_p) weights, kx/ci flattened per kernel row ky
    scale_ref : (1, Cin_p)           fused input-BN scale (when fuse_input)
    shift_ref : (1, Cin_p)           fused input-BN shift (when fuse_input)
    y_ref     : (1, TH, W, Cout_p)   raw (pre-BN) conv output, compute dtype
    stats_ref : (1, 1, 2, Cout_p)    per-tile [sum, sum_sq] of the f32 acc
    """
    _, th, w, cin = x_ref.shape
    cout = y_ref.shape[3]
    cdt = w_ref.dtype

    if fuse_input:
        # Previous stage's BatchNorm+ReLU fused into this conv's input path
        # (applied in f32, then cast once to the matmul dtype).
        s = scale_ref[...].reshape(1, 1, cin)
        b = shift_ref[...].reshape(1, 1, cin)
        x_blk = jnp.maximum(
            x_ref[...].reshape(th, w, cin).astype(jnp.float32) * s + b,
            0.0).astype(cdt)
        top_f = jnp.maximum(
            top_ref[...].reshape(1, w, cin).astype(jnp.float32) * s + b, 0.0)
        bot_f = jnp.maximum(
            bot_ref[...].reshape(1, w, cin).astype(jnp.float32) * s + b, 0.0)
        # Image-boundary halo rows must be conv zero-padding *after* the
        # affine+ReLU: zero just these 2 rows with a scalar-predicated mul.
        t_idx = pl.program_id(1)
        keep_top = (t_idx > 0).astype(jnp.float32)
        keep_bot = (t_idx < pl.num_programs(1) - 1).astype(jnp.float32)
        top = (top_f * keep_top).astype(cdt)
        bot = (bot_f * keep_bot).astype(cdt)
    else:
        # No f32 round trip: data is already in the compute dtype.
        x_blk = x_ref[...].reshape(th, w, cin).astype(cdt)
        top = top_ref[...].reshape(1, w, cin).astype(cdt)
        bot = bot_ref[...].reshape(1, w, cin).astype(cdt)

    x_full = jnp.concatenate([top, x_blk, bot], axis=0)          # (th+2, w, cin)
    zcol = jnp.zeros((th + 2, 1, cin), cdt)
    x_wide = jnp.concatenate([zcol, x_full, zcol], axis=1)       # (th+2, w+2, cin)

    # 3x3 conv as 3 accumulated MXU matmuls (one per kernel row, K = 3*Cin_p):
    # avoids materializing the 9x im2col LHS while keeping the MXU K long.
    acc = jnp.zeros((th * w, cout), jnp.float32)
    for ky in range(3):
        rows = x_wide[ky:ky + th]                                # (th, w+2, cin)
        lhs = jnp.concatenate([rows[:, kx:kx + w, :] for kx in range(3)],
                              axis=-1).reshape(th * w, 3 * cin)
        acc = acc + jnp.dot(lhs, w_ref[ky],
                            preferred_element_type=jnp.float32)

    y_ref[...] = acc.reshape(1, th, w, cout).astype(y_ref.dtype)
    s1 = jnp.sum(acc, axis=0, keepdims=True)
    s2 = jnp.sum(acc * acc, axis=0, keepdims=True)
    stats_ref[...] = jnp.concatenate([s1, s2], axis=0).reshape(1, 1, 2, cout)


def _matmul_stats_kernel(x_ref, w_ref, y_ref, stats_ref):
    """Stage-1 small-Cin path: im2col'd input -> one aligned matmul + stats.

    x_ref     : (1, TH, W, K)       K = round_up(9*Cin, 128), taps packed
    w_ref     : (K, Cout_p)
    y_ref     : (1, TH, W, Cout_p)  raw conv output, compute dtype
    stats_ref : (1, 1, 2, Cout_p)   per-tile [sum, sum_sq]
    """
    _, th, w, k = x_ref.shape
    cout = y_ref.shape[3]
    lhs = x_ref[...].reshape(th * w, k)
    acc = jnp.dot(lhs, w_ref[...], preferred_element_type=jnp.float32)
    y_ref[...] = acc.reshape(1, th, w, cout).astype(y_ref.dtype)
    s1 = jnp.sum(acc, axis=0, keepdims=True)
    s2 = jnp.sum(acc * acc, axis=0, keepdims=True)
    stats_ref[...] = jnp.concatenate([s1, s2], axis=0).reshape(1, 1, 2, cout)


def _bn_relu_kernel(y_ref, scale_ref, shift_ref, o_ref):
    """Folded-BN affine + ReLU; writes only the real `cout` output channels."""
    cout = o_ref.shape[3]
    y = y_ref[...].astype(jnp.float32)
    s = scale_ref[...].reshape(1, 1, 1, -1)
    b = shift_ref[...].reshape(1, 1, 1, -1)
    o_ref[...] = jnp.maximum(y * s + b, 0.0)[:, :, :, :cout].astype(o_ref.dtype)


# ============================ small helpers ==================================
def _round_up(n, m):
    return ((n + m - 1) // m) * m


def _pad_last(a, size):
    pad = size - a.shape[-1]
    if pad == 0:
        return a
    widths = [(0, 0)] * (a.ndim - 1) + [(0, pad)]
    return jnp.pad(a, widths)


def _pack_weights_ky(w_hwio, cin_p, cout_p, dtype):
    """(3,3,Cin,Cout) -> (3, 3*Cin_p, Cout_p): kx/ci flattened per kernel row."""
    kh, kw, cin, cout = w_hwio.shape
    w = jnp.pad(w_hwio, ((0, 0), (0, 0), (0, cin_p - cin), (0, cout_p - cout)))
    return w.reshape(kh, kw * cin_p, cout_p).astype(dtype)


def _pack_weights_flat(w_hwio, k_packed, cout_p, dtype):
    """(3,3,Cin,Cout) -> (K, Cout_p), K = round_up(9*Cin, 128)."""
    kh, kw, cin, cout = w_hwio.shape
    w = w_hwio.reshape(kh * kw * cin, cout)
    w = jnp.pad(w, ((0, k_packed - kh * kw * cin), (0, cout_p - cout)))
    return w.astype(dtype)


def _im2col_small(x_nhwc, k_packed):
    """Pack the 9 taps x Cin into one lane group (XLA-side, tiny Cin only)."""
    n, h, w, cin = x_nhwc.shape
    xp = jnp.pad(x_nhwc, ((0, 0), (1, 1), (1, 1), (0, 0)))
    taps = [xp[:, ky:ky + h, kx:kx + w, :] for ky in range(3) for kx in range(3)]
    cols = jnp.concatenate(taps, axis=-1)                       # (n,h,w,9*cin)
    pad = k_packed - 9 * cin
    if pad:
        cols = jnp.pad(cols, ((0, 0), (0, 0), (0, 0), (0, pad)))
    return cols


def _make_halo(x, th):
    """Row above / below every H tile: two (N, T, W, C) arrays, zero at edges."""
    n, h, w, c = x.shape
    zero = jnp.zeros((n, 1, w, c), x.dtype)
    top = jnp.concatenate([zero, x[:, th - 1:h - 1:th]], axis=1)
    bot = jnp.concatenate([x[:, th:h:th], zero], axis=1)
    return top, bot


def _vmem_limit_bytes():
    """Generation-dependent VMEM budget (128 MiB on v5e/v6e, 64 MiB on v7x)."""
    try:
        kind = jax.devices()[0].device_kind.lower()
    except Exception:  # pragma: no cover - defensive
        kind = ""
    if ("v5" in kind) or ("v6" in kind):
        return 100 * 1024 * 1024
    return 48 * 1024 * 1024


def _pick_tile_h(h, w, cin_p, cout_p, act_bytes, vmem_limit):
    """Largest divisor of H whose per-grid-step footprint fits the VMEM budget."""
    budget = int(vmem_limit * 0.6)
    best = 1
    for th in range(1, h + 1):
        if h % th:
            continue
        if th * w > 8192:            # keep matmul-M / per-step latency sane
            continue
        blocks = 2 * (th * w * cin_p * act_bytes        # x (double-buffered)
                      + 2 * w * cin_p * act_bytes        # halo rows
                      + th * w * cout_p * act_bytes      # y
                      + 2 * cout_p * 4)                  # stats
        temps = ((th + 2) * (w + 2) * cin_p * act_bytes  # x_wide
                 + th * w * 3 * cin_p * act_bytes        # per-ky im2col LHS
                 + 2 * th * w * cout_p * 4)              # f32 accumulator
        weights = 2 * 9 * cin_p * cout_p * act_bytes
        if blocks + temps + weights <= budget:
            best = th
    return best


def _compiler_params(vmem_limit):
    return pltpu.CompilerParams(
        dimension_semantics=("parallel", "parallel"),
        vmem_limit_bytes=int(vmem_limit))


# ============================ pallas wrappers ================================
def _conv_stats(x, w_ky, scale_in, shift_in, *, fuse_input, th, vmem_limit,
                y_dtype):
    n, h, w, cin_p = x.shape
    cout_p = w_ky.shape[-1]
    t = h // th
    top, bot = _make_halo(x, th)
    kernel = functools.partial(_conv_stats_kernel, fuse_input=fuse_input)
    y, stats = pl.pallas_call(
        kernel,
        grid=(n, t),
        in_specs=[
            pl.BlockSpec((1, th, w, cin_p), lambda i, j: (i, j, 0, 0)),
            pl.BlockSpec((1, 1, w, cin_p), lambda i, j: (i, j, 0, 0)),
            pl.BlockSpec((1, 1, w, cin_p), lambda i, j: (i, j, 0, 0)),
            pl.BlockSpec((3, 3 * cin_p, cout_p), lambda i, j: (0, 0, 0)),
            pl.BlockSpec((1, cin_p), lambda i, j: (0, 0)),
            pl.BlockSpec((1, cin_p), lambda i, j: (0, 0)),
        ],
        out_specs=(
            pl.BlockSpec((1, th, w, cout_p), lambda i, j: (i, j, 0, 0)),
            pl.BlockSpec((1, 1, 2, cout_p), lambda i, j: (i, j, 0, 0)),
        ),
        out_shape=(
            jax.ShapeDtypeStruct((n, h, w, cout_p), y_dtype),
            jax.ShapeDtypeStruct((n, t, 2, cout_p), jnp.float32),
        ),
        compiler_params=_compiler_params(vmem_limit),
    )(x, top, bot, w_ky, scale_in, shift_in)
    sums = jnp.sum(stats, axis=(0, 1))          # (2, Cout_p) global reduce
    return y, sums[0], sums[1]


def _matmul_stats(x_cols, w_flat, *, th, vmem_limit, y_dtype):
    n, h, w, k = x_cols.shape
    cout_p = w_flat.shape[-1]
    t = h // th
    y, stats = pl.pallas_call(
        _matmul_stats_kernel,
        grid=(n, t),
        in_specs=[
            pl.BlockSpec((1, th, w, k), lambda i, j: (i, j, 0, 0)),
            pl.BlockSpec((k, cout_p), lambda i, j: (0, 0)),
        ],
        out_specs=(
            pl.BlockSpec((1, th, w, cout_p), lambda i, j: (i, j, 0, 0)),
            pl.BlockSpec((1, 1, 2, cout_p), lambda i, j: (i, j, 0, 0)),
        ),
        out_shape=(
            jax.ShapeDtypeStruct((n, h, w, cout_p), y_dtype),
            jax.ShapeDtypeStruct((n, t, 2, cout_p), jnp.float32),
        ),
        compiler_params=_compiler_params(vmem_limit),
    )(x_cols, w_flat)
    sums = jnp.sum(stats, axis=(0, 1))
    return y, sums[0], sums[1]


def _bn_relu_apply(y, scale, shift, *, cout, th, vmem_limit):
    n, h, w, cp = y.shape
    t = h // th
    return pl.pallas_call(
        _bn_relu_kernel,
        grid=(n, t),
        in_specs=[
            pl.BlockSpec((1, th, w, cp), lambda i, j: (i, j, 0, 0)),
            pl.BlockSpec((1, cp), lambda i, j: (0, 0)),
            pl.BlockSpec((1, cp), lambda i, j: (0, 0)),
        ],
        out_specs=pl.BlockSpec((1, th, w, cout), lambda i, j: (i, j, 0, 0)),
        out_shape=jax.ShapeDtypeStruct((n, h, w, cout), jnp.float32),
        compiler_params=_compiler_params(vmem_limit),
    )(y, scale, shift)


def _bn_scale_shift(total, total_sq, count, gamma_p, beta_p):
    # Batch-statistics BN folded to a per-channel affine:
    #   scale = gamma * rsqrt(var + eps), shift = beta - mean * scale.
    mean = total / count
    var = jnp.maximum(total_sq / count - mean * mean, 0.0)
    scale = gamma_p * lax.rsqrt(var + _EPS)
    shift = beta_p - mean * scale
    return scale.reshape(1, -1), shift.reshape(1, -1)


# ============================== module forward ===============================
def double_conv(x_nchw, params, *, compute_dtype=jnp.bfloat16):
    """DoubleConv forward: (Conv3x3 -> BN(batch stats) -> ReLU) x 2, NCHW io."""
    n, cin, h, w = x_nchw.shape
    cout = params["w1"].shape[-1]
    cout_p = _round_up(cout, _LANES)
    act_bytes = jnp.dtype(compute_dtype).itemsize

    small_cin = 9 * cin <= _LANES                   # stage-1 packed-taps path
    cin_p = cout_p if small_cin else _round_up(cin, _LANES)

    vmem_limit = _vmem_limit_bytes()
    cmax = max(cin_p, cout_p)
    th = _pick_tile_h(h, w, cmax, cmax, act_bytes, vmem_limit)

    # Single NCHW->NHWC boundary conversion, stored in the compute dtype.
    x = jnp.transpose(x_nchw, (0, 2, 3, 1)).astype(compute_dtype)

    g1 = _pad_last(params["g1"], cout_p)
    bt1 = _pad_last(params["beta1"], cout_p)
    g2 = _pad_last(params["g2"], cout_p)
    bt2 = _pad_last(params["beta2"], cout_p)
    # params["b1"] / params["b2"] are intentionally unused: a per-channel conv
    # bias cancels exactly under batch-statistics (training-mode) BatchNorm.
    count = n * h * w

    # ---- Stage 1: conv1 + partial BN stats ---------------------------------
    if small_cin:
        k_packed = _round_up(9 * cin, _LANES)
        x_cols = _im2col_small(x, k_packed)
        w1 = _pack_weights_flat(params["w1"], k_packed, cout_p, compute_dtype)
        y1, s1, sq1 = _matmul_stats(x_cols, w1, th=th, vmem_limit=vmem_limit,
                                    y_dtype=compute_dtype)
    else:
        xp = _pad_last(x, cin_p)
        w1 = _pack_weights_ky(params["w1"], cin_p, cout_p, compute_dtype)
        dummy = jnp.zeros((1, cin_p), jnp.float32)
        y1, s1, sq1 = _conv_stats(xp, w1, dummy, dummy, fuse_input=False,
                                  th=th, vmem_limit=vmem_limit,
                                  y_dtype=compute_dtype)
    scale1, shift1 = _bn_scale_shift(s1, sq1, count, g1, bt1)

    # ---- Stage 2: BN1+ReLU fused into conv2's input path, conv2 + stats ----
    w2 = _pack_weights_ky(params["w2"], cout_p, cout_p, compute_dtype)
    y2, s2, sq2 = _conv_stats(y1, w2, scale1, shift1, fuse_input=True,
                              th=th, vmem_limit=vmem_limit,
                              y_dtype=compute_dtype)
    scale2, shift2 = _bn_scale_shift(s2, sq2, count, g2, bt2)

    # ---- Final BN2 + ReLU (writes only the real channels), then NCHW -------
    out_nhwc = _bn_relu_apply(y2, scale2, shift2, cout=cout, th=th,
                              vmem_limit=vmem_limit)
    return jnp.transpose(out_nhwc, (0, 3, 1, 2))


# ---------------- pure-JAX reference (module semantics, incl. conv bias) ----
def _ref_stage(x_nchw, w_oihw, b, gamma, beta):
    y = lax.conv_general_dilated(
        x_nchw, w_oihw, window_strides=(1, 1), padding=((1, 1), (1, 1)),
        dimension_numbers=("NCHW", "OIHW", "NCHW"),
        precision=lax.Precision.HIGHEST)
    y = y + b[None, :, None, None]
    mean = jnp.mean(y, axis=(0, 2, 3), keepdims=True)
    var = jnp.mean((y - mean) ** 2, axis=(0, 2, 3), keepdims=True)
    y = (y - mean) * lax.rsqrt(var + _EPS)
    y = y * gamma[None, :, None, None] + beta[None, :, None, None]
    return jnp.maximum(y, 0.0)


def double_conv_ref(x_nchw, params):
    w1 = jnp.transpose(params["w1"], (3, 2, 0, 1))  # HWIO -> OIHW
    w2 = jnp.transpose(params["w2"], (3, 2, 0, 1))
    y = _ref_stage(x_nchw, w1, params["b1"], params["g1"], params["beta1"])
    y = _ref_stage(y, w2, params["b2"], params["g2"], params["beta2"])
    return y


def init_params(key, in_channels, out_channels):
    ks = jax.random.split(key, 8)
    return {
        "w1": 0.1 * jax.random.normal(ks[0], (3, 3, in_channels, out_channels), jnp.float32),
        "b1": 0.05 * jax.random.normal(ks[1], (out_channels,), jnp.float32),
        "g1": 1.0 + 0.1 * jax.random.normal(ks[2], (out_channels,), jnp.float32),
        "beta1": 0.1 * jax.random.normal(ks[3], (out_channels,), jnp.float32),
        "w2": 0.1 * jax.random.normal(ks[4], (3, 3, out_channels, out_channels), jnp.float32),
        "b2": 0.05 * jax.random.normal(ks[5], (out_channels,), jnp.float32),
        "g2": 1.0 + 0.1 * jax.random.normal(ks[6], (out_channels,), jnp.float32),
        "beta2": 0.1 * jax.random.normal(ks[7], (out_channels,), jnp.float32),
    }


if __name__ == "__main__":
    key = jax.random.PRNGKey(0)
    kx_, kp = jax.random.split(key)

    N, Cin, H, W = 2, 4, 16, 16
    Cout = 8
    x = jax.random.normal(kx_, (N, Cin, H, W), jnp.float32)  # NCHW, like PyTorch
    params = init_params(kp, Cin, Cout)

    ref = jax.block_until_ready(double_conv_ref(x, params))

    # Default mode: bf16 MXU inputs + bf16 inter-stage activations, f32 acc.
    fwd = jax.jit(functools.partial(double_conv, compute_dtype=jnp.bfloat16))
    out = jax.block_until_ready(fwd(x, params))
    assert out.shape == (N, Cout, H, W), out.shape
    assert bool(jnp.all(jnp.isfinite(out))), "non-finite output"
    assert jnp.allclose(out, ref, atol=1e-1, rtol=1e-1), (
        float(jnp.max(jnp.abs(out - ref))))

    # Strict-precision mode (f32 end-to-end) verifies the structural pieces
    # (tap packing, halo handling, bias cancellation, two-pass BN) tightly.
    fwd32 = jax.jit(functools.partial(double_conv, compute_dtype=jnp.float32))
    out32 = jax.block_until_ready(fwd32(x, params))
    assert jnp.allclose(out32, ref, atol=2e-2, rtol=2e-2), (
        float(jnp.max(jnp.abs(out32 - ref))))

    print("KERNEL_OK")
</pallas_src>

<mosaic_0001>
module attributes {stable_mosaic.version = 11 : i64} {
  func.func @_matmul_stats_kernel(%arg0: i32, %arg1: i32, %arg2: memref<1x16x16x128xbf16, #tpu.memory_space<vmem>>, %arg3: memref<128x128xbf16, #tpu.memory_space<vmem>>, %arg4: memref<1x16x16x128xbf16, #tpu.memory_space<vmem>>, %arg5: memref<1x1x2x128xf32, #tpu.memory_space<vmem>>) attributes {dimension_semantics = [#tpu.dimension_semantics<parallel>, #tpu.dimension_semantics<parallel>], iteration_bounds = array<i64: 2, 1>, scalar_prefetch = 0 : i64, scratch_operands = 0 : i64, tpu.core_type = #tpu.core_type<tc>, window_params = [{transform_indices = @transform_0, window_bounds = array<i64: 1, 16, 16, 128>}, {pipeline_mode = #tpu.pipeline_mode<synchronous>, transform_indices = @transform_1, window_bounds = array<i64: 128, 128>}, {transform_indices = @transform_2, window_bounds = array<i64: 1, 16, 16, 128>}, {transform_indices = @transform_3, window_bounds = array<i64: 1, 1, 2, 128>}]} {
    %c0 = arith.constant 0 : index
    %c0_0 = arith.constant 0 : index
    %c0_1 = arith.constant 0 : index
    %c0_2 = arith.constant 0 : index
    %0 = vector.load %arg2[%c0, %c0_0, %c0_1, %c0_2] : memref<1x16x16x128xbf16, #tpu.memory_space<vmem>>, vector<1x16x16x128xbf16>
    %1 = vector.shape_cast %0 : vector<1x16x16x128xbf16> to vector<256x128xbf16>
    %c0_3 = arith.constant 0 : index
    %c0_4 = arith.constant 0 : index
    %2 = vector.load %arg3[%c0_3, %c0_4] : memref<128x128xbf16, #tpu.memory_space<vmem>>, vector<128x128xbf16>
    %cst = arith.constant dense<0.000000e+00> : vector<256x128xf32>
    %3 = tpu.matmul %1, %2, %cst {dimension_numbers = #tpu.dot_dimension_numbers<[1], [0], [0], [1], [0, 0, 1, 1], [], []>} : vector<256x128xbf16>, vector<128x128xbf16>, vector<256x128xf32> -> vector<256x128xf32>
    %4 = vector.shape_cast %3 : vector<256x128xf32> to vector<1x16x16x128xf32>
    %5 = arith.truncf %4 : vector<1x16x16x128xf32> to vector<1x16x16x128xbf16>
    %c0_5 = arith.constant 0 : index
    %c0_6 = arith.constant 0 : index
    %c0_7 = arith.constant 0 : index
    %c0_8 = arith.constant 0 : index
    %6 = vector.load %arg4[%c0_5, %c0_6, %c0_7, %c0_8] : memref<1x16x16x128xbf16, #tpu.memory_space<vmem>>, vector<1x16x16x128xbf16>
    tpu.vector_store %arg4[%c0_5, %c0_6, %c0_7, %c0_8], %5 {strides = array<i32>} : memref<1x16x16x128xbf16, #tpu.memory_space<vmem>>, vector<1x16x16x128xbf16>,
    %cst_9 = arith.constant dense<0.000000e+00> : vector<128xf32>
    %7 = vector.multi_reduction <add>, %3, %cst_9 [0] : vector<256x128xf32> to vector<128xf32>
    %8 = vector.shape_cast %7 : vector<128xf32> to vector<1x128xf32>
    %9 = arith.mulf %3, %3 : vector<256x128xf32>
    %cst_10 = arith.constant dense<0.000000e+00> : vector<128xf32>
    %10 = vector.multi_reduction <add>, %9, %cst_10 [0] : vector<256x128xf32> to vector<128xf32>
    %11 = vector.shape_cast %10 : vector<128xf32> to vector<1x128xf32>
    %12 = tpu.concatenate %8, %11 in 0 : vector<1x128xf32>, vector<1x128xf32> -> vector<2x128xf32>
    %13 = vector.shape_cast %12 : vector<2x128xf32> to vector<1x1x2x128xf32>
    %c0_11 = arith.constant 0 : index
    %c0_12 = arith.constant 0 : index
    %c0_13 = arith.constant 0 : index
    %c0_14 = arith.constant 0 : index
    %14 = vector.load %arg5[%c0_11, %c0_12, %c0_13, %c0_14] : memref<1x1x2x128xf32, #tpu.memory_space<vmem>>, vector<1x1x2x128xf32>
    tpu.vector_store %arg5[%c0_11, %c0_12, %c0_13, %c0_14], %13 {strides = array<i32>} : memref<1x1x2x128xf32, #tpu.memory_space<vmem>>, vector<1x1x2x128xf32>,
    return
  }
  func.func @transform_0(%arg0: i32, %arg1: i32) -> (i32, i32, i32, i32) {
    %c0_i32 = arith.constant 0 : i32
    %c0_i32_0 = arith.constant 0 : i32
    %c0_i32_1 = arith.constant 0 : i32
    return %arg0, %arg1, %c0_i32, %c0_i32_0 : i32, i32, i32, i32
  }
  func.func @transform_1(%arg0: i32, %arg1: i32) -> (i32, i32) {
    %c0_i32 = arith.constant 0 : i32
    %c0_i32_0 = arith.constant 0 : i32
    %c0_i32_1 = arith.constant 0 : i32
    return %c0_i32, %c0_i32_0 : i32, i32
  }
  func.func @transform_2(%arg0: i32, %arg1: i32) -> (i32, i32, i32, i32) {
    %c0_i32 = arith.constant 0 : i32
    %c0_i32_0 = arith.constant 0 : i32
    %c0_i32_1 = arith.constant 0 : i32
    return %arg0, %arg1, %c0_i32, %c0_i32_0 : i32, i32, i32, i32
  }
  func.func @transform_3(%arg0: i32, %arg1: i32) -> (i32, i32, i32, i32) {
    %c0_i32 = arith.constant 0 : i32
    %c0_i32_0 = arith.constant 0 : i32
    %c0_i32_1 = arith.constant 0 : i32
    return %arg0, %arg1, %c0_i32, %c0_i32_0 : i32, i32, i32, i32
  }
}

module attributes {stable_mosaic.version = 11 : i64} {
  func.func @_bn_relu_kernel(%arg0: i32, %arg1: i32, %arg2: memref<1x16x16x128xbf16, #tpu.memory_space<vmem>>, %arg3: memref<1x128xf32, #tpu.memory_space<vmem>>, %arg4: memref<1x128xf32, #tpu.memory_space<vmem>>, %arg5: memref<1x16x16x8xf32, #tpu.memory_space<vmem>>) attributes {dimension_semantics = [#tpu.dimension_semantics<parallel>, #tpu.dimension_semantics<parallel>], iteration_bounds = array<i64: 2, 1>, scalar_prefetch = 0 : i64, scratch_operands = 0 : i64, tpu.core_type = #tpu.core_type<tc>, window_params = [{transform_indices = @transform_0, window_bounds = array<i64: 1, 16, 16, 128>}, {pipeline_mode = #tpu.pipeline_mode<synchronous>, transform_indices = @transform_1, window_bounds = array<i64: 1, 128>}, {pipeline_mode = #tpu.pipeline_mode<synchronous>, transform_indices = @transform_2, window_bounds = array<i64: 1, 128>}, {transform_indices = @transform_3, window_bounds = array<i64: 1, 16, 16, 8>}]} {
    %c0 = arith.constant 0 : index
    %c0_0 = arith.constant 0 : index
    %c0_1 = arith.constant 0 : index
    %c0_2 = arith.constant 0 : index
    %0 = vector.load %arg2[%c0, %c0_0, %c0_1, %c0_2] : memref<1x16x16x128xbf16, #tpu.memory_space<vmem>>, vector<1x16x16x128xbf16>
    %1 = arith.extf %0 : vector<1x16x16x128xbf16> to vector<1x16x16x128xf32>
    %c0_3 = arith.constant 0 : index
    %c0_4 = arith.constant 0 : index
    %2 = vector.load %arg3[%c0_3, %c0_4] : memref<1x128xf32, #tpu.memory_space<vmem>>, vector<1x128xf32>
    %3 = vector.shape_cast %2 : vector<1x128xf32> to vector<1x1x1x128xf32>
    %c0_5 = arith.constant 0 : index
    %c0_6 = arith.constant 0 : index
    %4 = vector.load %arg4[%c0_5, %c0_6] : memref<1x128xf32, #tpu.memory_space<vmem>>, vector<1x128xf32>
    %5 = vector.shape_cast %4 : vector<1x128xf32> to vector<1x1x1x128xf32>
    %6 = vector.broadcast %3 : vector<1x1x1x128xf32> to vector<1x16x16x128xf32>
    %7 = arith.mulf %1, %6 : vector<1x16x16x128xf32>
    %8 = vector.broadcast %5 : vector<1x1x1x128xf32> to vector<1x16x16x128xf32>
    %9 = arith.addf %7, %8 : vector<1x16x16x128xf32>
    %cst = arith.constant 0.000000e+00 : f32
    %10 = vector.broadcast %cst : f32 to vector<1x16x16x128xf32>
    %11 = arith.maximumf %9, %10 : vector<1x16x16x128xf32>
    %12 = vector.extract_strided_slice %11 {offsets = [0, 0, 0, 0], sizes = [1, 16, 16, 8], strides = [1, 1, 1, 1]} : vector<1x16x16x128xf32> to vector<1x16x16x8xf32>
    %c0_7 = arith.constant 0 : index
    %c0_8 = arith.constant 0 : index
    %c0_9 = arith.constant 0 : index
    %c0_10 = arith.constant 0 : index
    %13 = vector.load %arg5[%c0_7, %c0_8, %c0_9, %c0_10] : memref<1x16x16x8xf32, #tpu.memory_space<vmem>>, vector<1x16x16x8xf32>
    tpu.vector_store %arg5[%c0_7, %c0_8, %c0_9, %c0_10], %12 {strides = array<i32>} : memref<1x16x16x8xf32, #tpu.memory_space<vmem>>, vector<1x16x16x8xf32>,
    return
  }
  func.func @transform_0(%arg0: i32, %arg1: i32) -> (i32, i32, i32, i32) {
    %c0_i32 = arith.constant 0 : i32
    %c0_i32_0 = arith.constant 0 : i32
    %c0_i32_1 = arith.constant 0 : i32
    return %arg0, %arg1, %c0_i32, %c0_i32_0 : i32, i32, i32, i32
  }
  func.func @transform_1(%arg0: i32, %arg1: i32) -> (i32, i32) {
    %c0_i32 = arith.constant 0 : i32
    %c0_i32_0 = arith.constant 0 : i32
    %c0_i32_1 = arith.constant 0 : i32
    return %c0_i32, %c0_i32_0 : i32, i32
  }
  func.func @transform_2(%arg0: i32, %arg1: i32) -> (i32, i32) {
    %c0_i32 = arith.constant 0 : i32
    %c0_i32_0 = arith.constant 0 : i32
    %c0_i32_1 = arith.constant 0 : i32
    return %c0_i32, %c0_i32_0 : i32, i32
  }
  func.func @transform_3(%arg0: i32, %arg1: i32) -> (i32, i32, i32, i32) {
    %c0_i32 = arith.constant 0 : i32
    %c0_i32_0 = arith.constant 0 : i32
    %c0_i32_1 = arith.constant 0 : i32
    return %arg0, %arg1, %c0_i32, %c0_i32_0 : i32, i32, i32, i32
  }
}

module attributes {stable_mosaic.version = 11 : i64} {
  func.func @_conv_stats_kernel(%arg0: i32, %arg1: i32, %arg2: memref<1x16x16x128xbf16, #tpu.memory_space<vmem>>, %arg3: memref<1x1x16x128xbf16, #tpu.memory_space<vmem>>, %arg4: memref<1x1x16x128xbf16, #tpu.memory_space<vmem>>, %arg5: memref<3x384x128xbf16, #tpu.memory_space<vmem>>, %arg6: memref<1x128xf32, #tpu.memory_space<vmem>>, %arg7: memref<1x128xf32, #tpu.memory_space<vmem>>, %arg8: memref<1x16x16x128xbf16, #tpu.memory_space<vmem>>, %arg9: memref<1x1x2x128xf32, #tpu.memory_space<vmem>>) attributes {dimension_semantics = [#tpu.dimension_semantics<parallel>, #tpu.dimension_semantics<parallel>], iteration_bounds = array<i64: 2, 1>, scalar_prefetch = 0 : i64, scratch_operands = 0 : i64, tpu.core_type = #tpu.core_type<tc>, window_params = [{transform_indices = @transform_0, window_bounds = array<i64: 1, 16, 16, 128>}, {transform_indices = @transform_1, window_bounds = array<i64: 1, 1, 16, 128>}, {transform_indices = @transform_2, window_bounds = array<i64: 1, 1, 16, 128>}, {pipeline_mode = #tpu.pipeline_mode<synchronous>, transform_indices = @transform_3, window_bounds = array<i64: 3, 384, 128>}, {pipeline_mode = #tpu.pipeline_mode<synchronous>, transform_indices = @transform_4, window_bounds = array<i64: 1, 128>}, {pipeline_mode = #tpu.pipeline_mode<synchronous>, transform_indices = @transform_5, window_bounds = array<i64: 1, 128>}, {transform_indices = @transform_6, window_bounds = array<i64: 1, 16, 16, 128>}, {transform_indices = @transform_7, window_bounds = array<i64: 1, 1, 2, 128>}]} {
    %c0 = arith.constant 0 : index
    %c0_0 = arith.constant 0 : index
    %0 = vector.load %arg6[%c0, %c0_0] : memref<1x128xf32, #tpu.memory_space<vmem>>, vector<1x128xf32>
    %1 = vector.shape_cast %0 : vector<1x128xf32> to vector<1x1x128xf32>
    %c0_1 = arith.constant 0 : index
    %c0_2 = arith.constant 0 : index
    %2 = vector.load %arg7[%c0_1, %c0_2] : memref<1x128xf32, #tpu.memory_space<vmem>>, vector<1x128xf32>
    %3 = vector.shape_cast %2 : vector<1x128xf32> to vector<1x1x128xf32>
    %c0_3 = arith.constant 0 : index
    %c0_4 = arith.constant 0 : index
    %c0_5 = arith.constant 0 : index
    %c0_6 = arith.constant 0 : index
    %4 = vector.load %arg2[%c0_3, %c0_4, %c0_5, %c0_6] : memref<1x16x16x128xbf16, #tpu.memory_space<vmem>>, vector<1x16x16x128xbf16>
    %5 = vector.shape_cast %4 : vector<1x16x16x128xbf16> to vector<16x16x128xbf16>
    %6 = arith.extf %5 : vector<16x16x128xbf16> to vector<16x16x128xf32>
    %7 = vector.broadcast %1 : vector<1x1x128xf32> to vector<16x16x128xf32>
    %8 = arith.mulf %6, %7 : vector<16x16x128xf32>
    %9 = vector.broadcast %3 : vector<1x1x128xf32> to vector<16x16x128xf32>
    %10 = arith.addf %8, %9 : vector<16x16x128xf32>
    %cst = arith.constant 0.000000e+00 : f32
    %11 = vector.broadcast %cst : f32 to vector<16x16x128xf32>
    %12 = arith.maximumf %10, %11 : vector<16x16x128xf32>
    %13 = arith.truncf %12 : vector<16x16x128xf32> to vector<16x16x128xbf16>
    %c0_7 = arith.constant 0 : index
    %c0_8 = arith.constant 0 : index
    %c0_9 = arith.constant 0 : index
    %c0_10 = arith.constant 0 : index
    %14 = vector.load %arg3[%c0_7, %c0_8, %c0_9, %c0_10] : memref<1x1x16x128xbf16, #tpu.memory_space<vmem>>, vector<1x1x16x128xbf16>
    %15 = vector.shape_cast %14 : vector<1x1x16x128xbf16> to vector<1x16x128xbf16>
    %16 = arith.extf %15 : vector<1x16x128xbf16> to vector<1x16x128xf32>
    %17 = vector.broadcast %1 : vector<1x1x128xf32> to vector<1x16x128xf32>
    %18 = arith.mulf %16, %17 : vector<1x16x128xf32>
    %19 = vector.broadcast %3 : vector<1x1x128xf32> to vector<1x16x128xf32>
    %20 = arith.addf %18, %19 : vector<1x16x128xf32>
    %cst_11 = arith.constant 0.000000e+00 : f32
    %21 = vector.broadcast %cst_11 : f32 to vector<1x16x128xf32>
    %22 = arith.maximumf %20, %21 : vector<1x16x128xf32>
    %c0_12 = arith.constant 0 : index
    %c0_13 = arith.constant 0 : index
    %c0_14 = arith.constant 0 : index
    %c0_15 = arith.constant 0 : index
    %23 = vector.load %arg4[%c0_12, %c0_13, %c0_14, %c0_15] : memref<1x1x16x128xbf16, #tpu.memory_space<vmem>>, vector<1x1x16x128xbf16>
    %24 = vector.shape_cast %23 : vector<1x1x16x128xbf16> to vector<1x16x128xbf16>
    %25 = arith.extf %24 : vector<1x16x128xbf16> to vector<1x16x128xf32>
    %26 = vector.broadcast %1 : vector<1x1x128xf32> to vector<1x16x128xf32>
    %27 = arith.mulf %25, %26 : vector<1x16x128xf32>
    %28 = vector.broadcast %3 : vector<1x1x128xf32> to vector<1x16x128xf32>
    %29 = arith.addf %27, %28 : vector<1x16x128xf32>
    %cst_16 = arith.constant 0.000000e+00 : f32
    %30 = vector.broadcast %cst_16 : f32 to vector<1x16x128xf32>
    %31 = arith.maximumf %29, %30 : vector<1x16x128xf32>
    %c0_i32 = arith.constant 0 : i32
    %32 = arith.cmpi sgt, %arg1, %c0_i32 : i32
    %33 = arith.extui %32 : i1 to i32
    %34 = arith.sitofp %33 : i32 to f32
    %c0_i32_17 = arith.constant 0 : i32
    %35 = arith.cmpi slt, %arg1, %c0_i32_17 : i32
    %36 = arith.extui %35 : i1 to i32
    %37 = arith.sitofp %36 : i32 to f32
    %38 = vector.broadcast %34 : f32 to vector<1x16x128xf32>
    %39 = arith.mulf %22, %38 : vector<1x16x128xf32>
    %40 = arith.truncf %39 : vector<1x16x128xf32> to vector<1x16x128xbf16>
    %41 = vector.broadcast %37 : f32 to vector<1x16x128xf32>
    %42 = arith.mulf %31, %41 : vector<1x16x128xf32>
    %43 = arith.truncf %42 : vector<1x16x128xf32> to vector<1x16x128xbf16>
    %44 = tpu.concatenate %40, %13, %43 in 0 : vector<1x16x128xbf16>, vector<16x16x128xbf16>, vector<1x16x128xbf16> -> vector<18x16x128xbf16>
    %cst_18 = arith.constant 0.000000e+00 : bf16
    %45 = vector.broadcast %cst_18 : bf16 to vector<18x1x128xbf16>
    %46 = tpu.concatenate %45, %44, %45 in 1 : vector<18x1x128xbf16>, vector<18x16x128xbf16>, vector<18x1x128xbf16> -> vector<18x18x128xbf16>
    %cst_19 = arith.constant 0.000000e+00 : f32
    %47 = vector.broadcast %cst_19 : f32 to vector<256x128xf32>
    %48 = vector.extract_strided_slice %46 {offsets = [0, 0, 0], sizes = [16, 18, 128], strides = [1, 1, 1]} : vector<18x18x128xbf16> to vector<16x18x128xbf16>
    %49 = vector.extract_strided_slice %48 {offsets = [0, 0, 0], sizes = [16, 16, 128], strides = [1, 1, 1]} : vector<16x18x128xbf16> to vector<16x16x128xbf16>
    %50 = vector.extract_strided_slice %48 {offsets = [0, 1, 0], sizes = [16, 16, 128], strides = [1, 1, 1]} : vector<16x18x128xbf16> to vector<16x16x128xbf16>
    %51 = vector.extract_strided_slice %48 {offsets = [0, 2, 0], sizes = [16, 16, 128], strides = [1, 1, 1]} : vector<16x18x128xbf16> to vector<16x16x128xbf16>
    %52 = tpu.concatenate %49, %50, %51 in 2 : vector<16x16x128xbf16>, vector<16x16x128xbf16>, vector<16x16x128xbf16> -> vector<16x16x384xbf16>
    %53 = vector.shape_cast %52 : vector<16x16x384xbf16> to vector<256x384xbf16>
    %c0_20 = arith.constant 0 : index
    %c0_21 = arith.constant 0 : index
    %c0_22 = arith.constant 0 : index
    %54 = vector.load %arg5[%c0_20, %c0_21, %c0_22] : memref<3x384x128xbf16, #tpu.memory_space<vmem>>, vector<1x384x128xbf16>
    %55 = vector.shape_cast %54 : vector<1x384x128xbf16> to vector<384x128xbf16>
    %cst_23 = arith.constant dense<0.000000e+00> : vector<256x128xf32>
    %56 = tpu.matmul %53, %55, %cst_23 {dimension_numbers = #tpu.dot_dimension_numbers<[1], [0], [0], [1], [0, 0, 1, 1], [], []>} : vector<256x384xbf16>, vector<384x128xbf16>, vector<256x128xf32> -> vector<256x128xf32>
    %57 = arith.addf %47, %56 : vector<256x128xf32>
    %58 = vector.extract_strided_slice %46 {offsets = [1, 0, 0], sizes = [16, 18, 128], strides = [1, 1, 1]} : vector<18x18x128xbf16> to vector<16x18x128xbf16>
    %59 = vector.extract_strided_slice %58 {offsets = [0, 0, 0], sizes = [16, 16, 128], strides = [1, 1, 1]} : vector<16x18x128xbf16> to vector<16x16x128xbf16>
    %60 = vector.extract_strided_slice %58 {offsets = [0, 1, 0], sizes = [16, 16, 128], strides = [1, 1, 1]} : vector<16x18x128xbf16> to vector<16x16x128xbf16>
    %61 = vector.extract_strided_slice %58 {offsets = [0, 2, 0], sizes = [16, 16, 128], strides = [1, 1, 1]} : vector<16x18x128xbf16> to vector<16x16x128xbf16>
    %62 = tpu.concatenate %59, %60, %61 in 2 : vector<16x16x128xbf16>, vector<16x16x128xbf16>, vector<16x16x128xbf16> -> vector<16x16x384xbf16>
    %63 = vector.shape_cast %62 : vector<16x16x384xbf16> to vector<256x384xbf16>
    %c1 = arith.constant 1 : index
    %c0_24 = arith.constant 0 : index
    %c0_25 = arith.constant 0 : index
    %64 = vector.load %arg5[%c1, %c0_24, %c0_25] : memref<3x384x128xbf16, #tpu.memory_space<vmem>>, vector<1x384x128xbf16>
    %65 = vector.shape_cast %64 : vector<1x384x128xbf16> to vector<384x128xbf16>
    %cst_26 = arith.constant dense<0.000000e+00> : vector<256x128xf32>
    %66 = tpu.matmul %63, %65, %cst_26 {dimension_numbers = #tpu.dot_dimension_numbers<[1], [0], [0], [1], [0, 0, 1, 1], [], []>} : vector<256x384xbf16>, vector<384x128xbf16>, vector<256x128xf32> -> vector<256x128xf32>
    %67 = arith.addf %57, %66 : vector<256x128xf32>
    %68 = vector.extract_strided_slice %46 {offsets = [2, 0, 0], sizes = [16, 18, 128], strides = [1, 1, 1]} : vector<18x18x128xbf16> to vector<16x18x128xbf16>
    %69 = vector.extract_strided_slice %68 {offsets = [0, 0, 0], sizes = [16, 16, 128], strides = [1, 1, 1]} : vector<16x18x128xbf16> to vector<16x16x128xbf16>
    %70 = vector.extract_strided_slice %68 {offsets = [0, 1, 0], sizes = [16, 16, 128], strides = [1, 1, 1]} : vector<16x18x128xbf16> to vector<16x16x128xbf16>
    %71 = vector.extract_strided_slice %68 {offsets = [0, 2, 0], sizes = [16, 16, 128], strides = [1, 1, 1]} : vector<16x18x128xbf16> to vector<16x16x128xbf16>
    %72 = tpu.concatenate %69, %70, %71 in 2 : vector<16x16x128xbf16>, vector<16x16x128xbf16>, vector<16x16x128xbf16> -> vector<16x16x384xbf16>
    %73 = vector.shape_cast %72 : vector<16x16x384xbf16> to vector<256x384xbf16>
    %c2 = arith.constant 2 : index
    %c0_27 = arith.constant 0 : index
    %c0_28 = arith.constant 0 : index
    %74 = vector.load %arg5[%c2, %c0_27, %c0_28] : memref<3x384x128xbf16, #tpu.memory_space<vmem>>, vector<1x384x128xbf16>
    %75 = vector.shape_cast %74 : vector<1x384x128xbf16> to vector<384x128xbf16>
    %cst_29 = arith.constant dense<0.000000e+00> : vector<256x128xf32>
    %76 = tpu.matmul %73, %75, %cst_29 {dimension_numbers = #tpu.dot_dimension_numbers<[1], [0], [0], [1], [0, 0, 1, 1], [], []>} : vector<256x384xbf16>, vector<384x128xbf16>, vector<256x128xf32> -> vector<256x128xf32>
    %77 = arith.addf %67, %76 : vector<256x128xf32>
    %78 = vector.shape_cast %77 : vector<256x128xf32> to vector<1x16x16x128xf32>
    %79 = arith.truncf %78 : vector<1x16x16x128xf32> to vector<1x16x16x128xbf16>
    %c0_30 = arith.constant 0 : index
    %c0_31 = arith.constant 0 : index
    %c0_32 = arith.constant 0 : index
    %c0_33 = arith.constant 0 : index
    %80 = vector.load %arg8[%c0_30, %c0_31, %c0_32, %c0_33] : memref<1x16x16x128xbf16, #tpu.memory_space<vmem>>, vector<1x16x16x128xbf16>
    tpu.vector_store %arg8[%c0_30, %c0_31, %c0_32, %c0_33], %79 {strides = array<i32>} : memref<1x16x16x128xbf16, #tpu.memory_space<vmem>>, vector<1x16x16x128xbf16>,
    %cst_34 = arith.constant dense<0.000000e+00> : vector<128xf32>
    %81 = vector.multi_reduction <add>, %77, %cst_34 [0] : vector<256x128xf32> to vector<128xf32>
    %82 = vector.shape_cast %81 : vector<128xf32> to vector<1x128xf32>
    %83 = arith.mulf %77, %77 : vector<256x128xf32>
    %cst_35 = arith.constant dense<0.000000e+00> : vector<128xf32>
    %84 = vector.multi_reduction <add>, %83, %cst_35 [0] : vector<256x128xf32> to vector<128xf32>
    %85 = vector.shape_cast %84 : vector<128xf32> to vector<1x128xf32>
    %86 = tpu.concatenate %82, %85 in 0 : vector<1x128xf32>, vector<1x128xf32> -> vector<2x128xf32>
    %87 = vector.shape_cast %86 : vector<2x128xf32> to vector<1x1x2x128xf32>
    %c0_36 = arith.constant 0 : index
    %c0_37 = arith.constant 0 : index
    %c0_38 = arith.constant 0 : index
    %c0_39 = arith.constant 0 : index
    %88 = vector.load %arg9[%c0_36, %c0_37, %c0_38, %c0_39] : memref<1x1x2x128xf32, #tpu.memory_space<vmem>>, vector<1x1x2x128xf32>
    tpu.vector_store %arg9[%c0_36, %c0_37, %c0_38, %c0_39], %87 {strides = array<i32>} : memref<1x1x2x128xf32, #tpu.memory_space<vmem>>, vector<1x1x2x128xf32>,
    return
  }
  func.func @transform_0(%arg0: i32, %arg1: i32) -> (i32, i32, i32, i32) {
    %c0_i32 = arith.constant 0 : i32
    %c0_i32_0 = arith.constant 0 : i32
    %c0_i32_1 = arith.constant 0 : i32
    return %arg0, %arg1, %c0_i32, %c0_i32_0 : i32, i32, i32, i32
  }
  func.func @transform_1(%arg0: i32, %arg1: i32) -> (i32, i32, i32, i32) {
    %c0_i32 = arith.constant 0 : i32
    %c0_i32_0 = arith.constant 0 : i32
    %c0_i32_1 = arith.constant 0 : i32
    return %arg0, %arg1, %c0_i32, %c0_i32_0 : i32, i32, i32, i32
  }
  func.func @transform_2(%arg0: i32, %arg1: i32) -> (i32, i32, i32, i32) {
    %c0_i32 = arith.constant 0 : i32
    %c0_i32_0 = arith.constant 0 : i32
    %c0_i32_1 = arith.constant 0 : i32
    return %arg0, %arg1, %c0_i32, %c0_i32_0 : i32, i32, i32, i32
  }
  func.func @transform_3(%arg0: i32, %arg1: i32) -> (i32, i32, i32) {
    %c0_i32 = arith.constant 0 : i32
    %c0_i32_0 = arith.constant 0 : i32
    %c0_i32_1 = arith.constant 0 : i32
    %c0_i32_2 = arith.constant 0 : i32
    return %c0_i32, %c0_i32_0, %c0_i32_1 : i32, i32, i32
  }
  func.func @transform_4(%arg0: i32, %arg1: i32) -> (i32, i32) {
    %c0_i32 = arith.constant 0 : i32
    %c0_i32_0 = arith.constant 0 : i32
    %c0_i32_1 = arith.constant 0 : i32
    return %c0_i32, %c0_i32_0 : i32, i32
  }
  func.func @transform_5(%arg0: i32, %arg1: i32) -> (i32, i32) {
    %c0_i32 = arith.constant 0 : i32
    %c0_i32_0 = arith.constant 0 : i32
    %c0_i32_1 = arith.constant 0 : i32
    return %c0_i32, %c0_i32_0 : i32, i32
  }
  func.func @transform_6(%arg0: i32, %arg1: i32) -> (i32, i32, i32, i32) {
    %c0_i32 = arith.constant 0 : i32
    %c0_i32_0 = arith.constant 0 : i32
    %c0_i32_1 = arith.constant 0 : i32
    return %arg0, %arg1, %c0_i32, %c0_i32_0 : i32, i32, i32, i32
  }
  func.func @transform_7(%arg0: i32, %arg1: i32) -> (i32, i32, i32, i32) {
    %c0_i32 = arith.constant 0 : i32
    %c0_i32_0 = arith.constant 0 : i32
    %c0_i32_1 = arith.constant 0 : i32
    return %arg0, %arg1, %c0_i32, %c0_i32_0 : i32, i32, i32, i32
  }
}

</mosaic_0001>

<llo_original>
// kernel: double_conv.5
$region0: #{double_conv.5}
  #allocation0 [shape = 'u32[]', space=smem, size = 0x4, offset = 0x4, fixed_abs, tag = 'smem constant byte address 0x4 - core index']
  #allocation1 [shape = 'u32[144,128]{1,0:T(1,128)}', space=vmem, size = 0x12000, scoped, tag = 'internal scratch']
  %s0 = inlined_call_operand.vmem [shape: bf16[2,16,16,128], index: 0, kind: input, shape index: {}]
  %s1 = inlined_call_operand.vmem [shape: f32[1,128], index: 1, kind: input, shape index: {}]
  %s2 = inlined_call_operand.vmem [shape: f32[1,128], index: 2, kind: input, shape index: {}]
  %s3 = inlined_call_operand.vmem [shape: f32[2,16,16,8], index: 3, kind: output, shape index: {}]
  %s4 = sld [smem:[#allocation0]]
  $region45: #{double_conv.5} parent=0
    _
  %s6 = ssub.s32 1, %s4
  %s7 = scalar_select 0, %s6, %s4
  loop: start=0, step=1, limit=4
  $region2: #{double_conv.5} parent=0 // loop_pre_header
    _
  $region3: #{double_conv.5} parent=0 // loop_header
    %s9 = sphi 0, %s13
    %p10 = scmp.ge.s32.totalorder %s9, 4
    %s16 = sphi 0, %s28
    %s17 = sphi 0, %s24
    %s18 = sphi 0, %s16
    %s19 = sphi 0, %s17
    %s20 = sphi 0, %s18
    %s21 = sphi 0, %s19
    %s33 = sphi 0, %s35
    %s36 = sphi 0, %s33
    %s37 = sphi 0, %s36
    %s53 = sphi 0, %s37
    %s57 = sphi 0, %s57
    %s59 = sphi 0, %s57
    %s60 = sphi 0, %s59
    %s74 = sphi 0, %s60
    %s78 = sphi 0, %s78
    %s80 = sphi 0, %s78
    %s81 = sphi 0, %s80
    %s95 = sphi 0, %s81
    %s103 = sphi 0, %s105
    %s106 = sphi 0, %s103
    %s107 = sphi 0, %s106
    %s123 = sphi 0, %s107
  $region4: #{double_conv.5} parent=0 // loop_header_branch
    %12 = sbr.rel (%p10) target = $region8
  $region5: #{double_conv.5} parent=0 // loop_body
    %s14 = ssub.s32 %s9, 1
    %s15 = ssub.s32 %s9, 2
    %s22 = sadd.s32 1, %s17
    %p23 = scmp.ge.s32.totalorder %s22, 1
    %s24 = scalar_select %p23, 0, %s22
    %s25 = sadd.s32 1, %s16
    %s26 = scalar_select %p23, %s25, %s16
    %p27 = scmp.ge.s32.totalorder %s26, 2
    %s28 = scalar_select %p27, 0, %s26
    %s29 = ssub.s32 %s16, %s28
    %s30 = ssub.s32 %s17, %s24
    %s31 = sor.u32 %s29, %s30
    %p32 = scmp.eq.s32.totalorder %s31, 0
    %s34 = sadd.s32 %s33, 1
    %s35 = scalar_select %p32, %s33, %s34
    %p38 = pneg %p32
    %p39 = scmp.eq.s32.totalorder %s9, 1
    %p40 = por %p38, %p39
    %p41 = scmp.ne.s32.totalorder %s33, %s36
    %p42 = scmp.eq.s32.totalorder %s9, 0
    %p43 = por %p41, %p42
    %p44 = scmp.ne.s32.totalorder %s33, %s36
    %p45 = scmp.eq.s32.totalorder %s14, 1
    %p46 = por %p44, %p45
    %p47 = scmp.ne.s32.totalorder %s36, %s37
    %p48 = scmp.eq.s32.totalorder %s14, 0
    %p49 = por %p47, %p48
    %p50 = scmp.ne.s32.totalorder %s36, %s37
    %p51 = scmp.eq.s32.totalorder %s15, 1
    %p52 = por %p50, %p51
    %p54 = scmp.ne.s32.totalorder %s37, %s53
    %p55 = scmp.eq.s32.totalorder %s15, 0
    %p56 = por %p54, %p55
    %s58 = sadd.s32 %s57, 1
    %p61 = scmp.eq.s32.totalorder %s9, 1
    %p62 = scmp.ne.s32.totalorder %s57, %s59
    %p63 = scmp.eq.s32.totalorder %s9, 0
    %p64 = por %p62, %p63
    %p65 = scmp.ne.s32.totalorder %s57, %s59
    %p66 = scmp.eq.s32.totalorder %s14, 1
    %p67 = por %p65, %p66
    %p68 = scmp.ne.s32.totalorder %s59, %s60
    %p69 = scmp.eq.s32.totalorder %s14, 0
    %p70 = por %p68, %p69
    %p71 = scmp.ne.s32.totalorder %s59, %s60
    %p72 = scmp.eq.s32.totalorder %s15, 1
    %p73 = por %p71, %p72
    %p75 = scmp.ne.s32.totalorder %s60, %s74
    %p76 = scmp.eq.s32.totalorder %s15, 0
    %p77 = por %p75, %p76
    %s79 = sadd.s32 %s78, 1
    %p82 = scmp.eq.s32.totalorder %s9, 1
    %p83 = scmp.ne.s32.totalorder %s78, %s80
    %p84 = scmp.eq.s32.totalorder %s9, 0
    %p85 = por %p83, %p84
    %p86 = scmp.ne.s32.totalorder %s78, %s80
    %p87 = scmp.eq.s32.totalorder %s14, 1
    %p88 = por %p86, %p87
    %p89 = scmp.ne.s32.totalorder %s80, %s81
    %p90 = scmp.eq.s32.totalorder %s14, 0
    %p91 = por %p89, %p90
    %p92 = scmp.ne.s32.totalorder %s80, %s81
    %p93 = scmp.eq.s32.totalorder %s15, 1
    %p94 = por %p92, %p93
    %p96 = scmp.ne.s32.totalorder %s81, %s95
    %p97 = scmp.eq.s32.totalorder %s15, 0
    %p98 = por %p96, %p97
    %s99 = ssub.s32 %s16, %s28
    %s100 = ssub.s32 %s17, %s24
    %s101 = sor.u32 %s99, %s100
    %p102 = scmp.eq.s32.totalorder %s101, 0
    %s104 = sadd.s32 %s103, 1
    %s105 = scalar_select %p102, %s103, %s104
    %p108 = pneg %p102
    %p109 = scmp.eq.s32.totalorder %s9, 1
    %p110 = por %p108, %p109
    %p111 = scmp.ne.s32.totalorder %s103, %s106
    %p112 = scmp.eq.s32.totalorder %s9, 0
    %p113 = por %p111, %p112
    %p114 = scmp.ne.s32.totalorder %s103, %s106
    %p115 = scmp.eq.s32.totalorder %s14, 1
    %p116 = por %p114, %p115
    %p117 = scmp.ne.s32.totalorder %s106, %s107
    %p118 = scmp.eq.s32.totalorder %s14, 0
    %p119 = por %p117, %p118
    %p120 = scmp.ne.s32.totalorder %s106, %s107
    %p121 = scmp.eq.s32.totalorder %s15, 1
    %p122 = por %p120, %p121
    %p124 = scmp.ne.s32.totalorder %s107, %s123
    %p125 = scmp.eq.s32.totalorder %s15, 0
    %p126 = por %p124, %p125
    %p127 = scmp.le.s32.totalorder 1, %s9
    %p128 = scmp.lt.s32.totalorder %s9, 3
    %p129 = pnand %p127, %p128
    %p130 = pneg %p129
    // Predicated region
    $region9: #{double_conv.5} parent=5 // pred_check
      _
    $region10: #{double_conv.5} parent=5 // pred_check_branch
      %132 = sbr.rel (%p129) target = $region12
    $region11: #{double_conv.5} parent=5 // pred_region
      %s133 = ssub.s32 %s9, 1
      // Predicated region
      $region13: #{double_conv.5} parent=11 // pred_check
        %p134 = pneg %p70
      $region14: #{double_conv.5} parent=11 // pred_check_branch
        %136 = sbr.rel (%p134) target = $region16
      $region15: #{double_conv.5} parent=11 // pred_region
        _
      $region16: #{double_conv.5} parent=11 // pred_fallthru
        _
      // Predicated region
      $region17: #{double_conv.5} parent=11 // pred_check
        %p137 = pneg %p91
      $region18: #{double_conv.5} parent=11 // pred_check_branch
        %139 = sbr.rel (%p137) target = $region20
      $region19: #{double_conv.5} parent=11 // pred_region
        _
      $region20: #{double_conv.5} parent=11 // pred_fallthru
        _
    $region12: #{double_conv.5} parent=5 // pred_fallthru
      _
    %p140 = scmp.lt.s32.totalorder %s9, 2
    // Predicated region
    $region21: #{double_conv.5} parent=5 // pred_check
      %p141 = pneg %p140
    $region22: #{double_conv.5} parent=5 // pred_check_branch
      %143 = sbr.rel (%p141) target = $region24
    $region23: #{double_conv.5} parent=5 // pred_region
      // Predicated region
      $region25: #{double_conv.5} parent=23 // pred_check
        %p144 = pneg %p43
      $region26: #{double_conv.5} parent=23 // pred_check_branch
        %146 = sbr.rel (%p144) target = $region28
      $region27: #{double_conv.5} parent=23 // pred_region
        %s147 = smul.u32 16, %s17
        %p148 = scmp.lt.s32.totalorder %s16, 1
        %s149 = scalar_select %p148, %s16, 1
        %p150 = scmp.lt.s32.totalorder %s147, 15
        %s151 = scalar_select %p150, %s147, 15
        %s152 = smul.addr %s151, 2
        %s153 = smul.addr %s149, 32
        %s154 = sadd.s32 %s152, %s153
        %s155 = smul.addr %s154, 4
        %s156 = scalar_lea.vmem %s0, %s155
        %s157 = smul.u32 16, %s17
      $region28: #{double_conv.5} parent=23 // pred_fallthru
        _
    $region24: #{double_conv.5} parent=5 // pred_fallthru
      _
    %p158 = scmp.le.s32.totalorder 1, %s9
    %p159 = scmp.lt.s32.totalorder %s9, 3
    %p160 = pnand %p158, %p159
    %p161 = pneg %p160
    // Predicated region
    $region29: #{double_conv.5} parent=5 // pred_check
      _
    $region30: #{double_conv.5} parent=5 // pred_check_branch
      %163 = sbr.rel (%p160) target = $region32
    $region31: #{double_conv.5} parent=5 // pred_region
      %s164 = ssub.s32 %s9, 1
      %s165 = smul.u32 16, %s19
      %p166 = scmp.lt.s32.totalorder %s18, 1
      %s167 = scalar_select %p166, %s18, 1
      %p168 = scmp.lt.s32.totalorder %s165, 15
      %s169 = scalar_select %p168, %s165, 15
      %s170 = smul.addr %s169, 2
      %s171 = smul.addr %s167, 32
      %s172 = sadd.s32 %s170, %s171
      %s173 = smul.addr %s172, 4
      %s174 = scalar_lea.vmem %s0, %s173
      %p175 = pneg %p49
      %p176 = pneg %p46
      %p177 = pneg %p70
      %p178 = pneg %p67
      %p179 = pneg %p91
      %p180 = pneg %p88
      %p181 = pneg %p119
      %p182 = pneg %p116
      %s183 = smul.u32 16, %s19
      %p184 = scmp.lt.s32.totalorder %s18, 1
      %s185 = scalar_select %p184, %s18, 1
      %p186 = scmp.lt.s32.totalorder %s183, 15
      %s187 = scalar_select %p186, %s183, 15
      %s188 = smul.addr %s187, 2
      %s189 = smul.addr %s185, 32
      %s190 = sadd.s32 %s188, %s189
      %s191 = smul.addr %s190, 8
      %s192 = scalar_lea.vmem %s3, %s191
      %s193 = smul.u32 16, %s19
      %p194 = scmp.lt.s32.totalorder %s18, 1
      %s195 = scalar_select %p194, %s18, 1
      %p196 = scmp.lt.s32.totalorder %s193, 15
      %s197 = scalar_select %p196, %s193, 15
      %s198 = smul.addr %s197, 2
      %s199 = smul.addr %s195, 32
      %s200 = sadd.s32 %s198, %s199
      %s201 = smul.addr %s200, 4
      %s202 = scalar_lea.vmem %s0, %s201
      %s203 = smul.u32 16, %s19
      %s204 = smul.u32 16, %s19
      %p205 = scmp.lt.s32.totalorder %s18, 1
      %s206 = scalar_select %p205, %s18, 1
      %p207 = scmp.lt.s32.totalorder %s204, 15
      %s208 = scalar_select %p207, %s204, 15
      %s209 = smul.addr %s208, 2
      %s210 = smul.addr %s206, 32
      %s211 = sadd.s32 %s209, %s210
      %s212 = smul.addr %s211, 8
      %s213 = scalar_lea.vmem %s3, %s212
      %s214 = smul.u32 16, %s19
      %v215 = vld [vmem:[%s202] sm:$0xf]
      %v216 = vld [vmem:[%s202 + $0x4] sm:$0xf]
      %v217 = vld [vmem:[%s202 + $0x8] sm:$0xf]
      %v218 = vld [vmem:[%s202 + $0xc] sm:$0xf]
      %v219 = vld [vmem:[%s202 + $0x10] sm:$0xf]
      %v220 = vld [vmem:[%s202 + $0x14] sm:$0xf]
      %v221 = vld [vmem:[%s202 + $0x18] sm:$0xf]
      %v222 = vld [vmem:[%s202 + $0x1c] sm:$0xf]
      %v223 = vld [vmem:[%s202 + $0x20] sm:$0xf]
      %v224 = vld [vmem:[%s202 + $0x24] sm:$0xf]
      %v225 = vld [vmem:[%s202 + $0x28] sm:$0xf]
      %v226 = vld [vmem:[%s202 + $0x2c] sm:$0xf]
      %v227 = vld [vmem:[%s202 + $0x30] sm:$0xf]
      %v228 = vld [vmem:[%s202 + $0x34] sm:$0xf]
      %v229 = vld [vmem:[%s202 + $0x38] sm:$0xf]
      %v230 = vld [vmem:[%s202 + $0x3c] sm:$0xf]
      %v231 = vld [vmem:[%s202 + $0x40] sm:$0xf]
      %v232 = vld [vmem:[%s202 + $0x44] sm:$0xf]
      %v233 = vld [vmem:[%s202 + $0x48] sm:$0xf]
      %v234 = vld [vmem:[%s202 + $0x4c] sm:$0xf]
      %v235 = vld [vmem:[%s202 + $0x50] sm:$0xf]
      %v236 = vld [vmem:[%s202 + $0x54] sm:$0xf]
      %v237 = vld [vmem:[%s202 + $0x58] sm:$0xf]
      %v238 = vld [vmem:[%s202 + $0x5c] sm:$0xf]
      %v239 = vld [vmem:[%s202 + $0x60] sm:$0xf]
      %v240 = vld [vmem:[%s202 + $0x64] sm:$0xf]
      %v241 = vld [vmem:[%s202 + $0x68] sm:$0xf]
      %v242 = vld [vmem:[%s202 + $0x6c] sm:$0xf]
      %v243 = vld [vmem:[%s202 + $0x70] sm:$0xf]
      %v244 = vld [vmem:[%s202 + $0x74] sm:$0xf]
      %v245 = vld [vmem:[%s202 + $0x78] sm:$0xf]
      %v246 = vld [vmem:[%s202 + $0x7c] sm:$0xf]
      %v247 = vunpack.c.l.bf16 %v215
      %v248 = vunpack.c.l.bf16 %v216
      %v249 = vunpack.c.l.bf16 %v217
      %v250 = vunpack.c.l.bf16 %v218
      %v251 = vunpack.c.l.bf16 %v219
      %v252 = vunpack.c.l.bf16 %v220
      %v253 = vunpack.c.l.bf16 %v221
      %v254 = vunpack.c.l.bf16 %v222
      %v255 = vunpack.c.l.bf16 %v223
      %v256 = vunpack.c.l.bf16 %v224
      %v257 = vunpack.c.l.bf16 %v225
      %v258 = vunpack.c.l.bf16 %v226
      %v259 = vunpack.c.l.bf16 %v227
      %v260 = vunpack.c.l.bf16 %v228
      %v261 = vunpack.c.l.bf16 %v229
      %v262 = vunpack.c.l.bf16 %v230
      %v263 = vunpack.c.l.bf16 %v231
      %v264 = vunpack.c.l.bf16 %v232
      %v265 = vunpack.c.l.bf16 %v233
      %v266 = vunpack.c.l.bf16 %v234
      %v267 = vunpack.c.l.bf16 %v235
      %v268 = vunpack.c.l.bf16 %v236
      %v269 = vunpack.c.l.bf16 %v237
      %v270 = vunpack.c.l.bf16 %v238
      %v271 = vunpack.c.l.bf16 %v239
      %v272 = vunpack.c.l.bf16 %v240
      %v273 = vunpack.c.l.bf16 %v241
      %v274 = vunpack.c.l.bf16 %v242
      %v275 = vunpack.c.l.bf16 %v243
      %v276 = vunpack.c.l.bf16 %v244
      %v277 = vunpack.c.l.bf16 %v245
      %v278 = vunpack.c.l.bf16 %v246
      %v279 = vld [vmem:[%s1] sm:$0x1]
      %v280 = vld [vmem:[%s2] sm:$0x1]
      %v282 = vlaneseq
      %v283 = vshrl.u32 %v282, 7
      %v284 = vsub.s32 0, %v283
      %v285 = vrot.slane %v279, %v284
      %v287 = vmul.f32 %v247, %v285
      %v288 = vmul.f32 %v248, %v285
      %v289 = vmul.f32 %v249, %v285
      %v290 = vmul.f32 %v250, %v285
      %v291 = vmul.f32 %v251, %v285
      %v292 = vmul.f32 %v252, %v285
      %v293 = vmul.f32 %v253, %v285
      %v294 = vmul.f32 %v254, %v285
      %v295 = vmul.f32 %v255, %v285
      %v296 = vmul.f32 %v256, %v285
      %v297 = vmul.f32 %v257, %v285
      %v298 = vmul.f32 %v258, %v285
      %v299 = vmul.f32 %v259, %v285
      %v300 = vmul.f32 %v260, %v285
      %v301 = vmul.f32 %v261, %v285
      %v302 = vmul.f32 %v262, %v285
      %v303 = vmul.f32 %v263, %v285
      %v304 = vmul.f32 %v264, %v285
      %v305 = vmul.f32 %v265, %v285
      %v306 = vmul.f32 %v266, %v285
      %v307 = vmul.f32 %v267, %v285
      %v308 = vmul.f32 %v268, %v285
      %v309 = vmul.f32 %v269, %v285
      %v310 = vmul.f32 %v270, %v285
      %v311 = vmul.f32 %v271, %v285
      %v312 = vmul.f32 %v272, %v285
      %v313 = vmul.f32 %v273, %v285
      %v314 = vmul.f32 %v274, %v285
      %v315 = vmul.f32 %v275, %v285
      %v316 = vmul.f32 %v276, %v285
      %v317 = vmul.f32 %v277, %v285
      %v318 = vmul.f32 %v278, %v285
      %v320 = vlaneseq
      %v321 = vshrl.u32 %v320, 7
      %v322 = vsub.s32 0, %v321
      %v323 = vrot.slane %v280, %v322
      %v325 = vadd.f32 %v287, %v323
      %v326 = vadd.f32 %v288, %v323
      %v327 = vadd.f32 %v289, %v323
      %v328 = vadd.f32 %v290, %v323
      %v329 = vadd.f32 %v291, %v323
      %v330 = vadd.f32 %v292, %v323
      %v331 = vadd.f32 %v293, %v323
      %v332 = vadd.f32 %v294, %v323
      %v333 = vadd.f32 %v295, %v323
      %v334 = vadd.f32 %v296, %v323
      %v335 = vadd.f32 %v297, %v323
      %v336 = vadd.f32 %v298, %v323
      %v337 = vadd.f32 %v299, %v323
      %v338 = vadd.f32 %v300, %v323
      %v339 = vadd.f32 %v301, %v323
      %v340 = vadd.f32 %v302, %v323
      %v341 = vadd.f32 %v303, %v323
      %v342 = vadd.f32 %v304, %v323
      %v343 = vadd.f32 %v305, %v323
      %v344 = vadd.f32 %v306, %v323
      %v345 = vadd.f32 %v307, %v323
      %v346 = vadd.f32 %v308, %v323
      %v347 = vadd.f32 %v309, %v323
      %v348 = vadd.f32 %v310, %v323
      %v349 = vadd.f32 %v311, %v323
      %v350 = vadd.f32 %v312, %v323
      %v351 = vadd.f32 %v313, %v323
      %v352 = vadd.f32 %v314, %v323
      %v353 = vadd.f32 %v315, %v323
      %v354 = vadd.f32 %v316, %v323
      %v355 = vadd.f32 %v317, %v323
      %v356 = vadd.f32 %v318, %v323
      %v357 = vmax.f32 %v325, 0.0
      %v358 = vmax.f32 %v326, 0.0
      %v359 = vmax.f32 %v327, 0.0
      %v360 = vmax.f32 %v328, 0.0
      %v361 = vmax.f32 %v329, 0.0
      %v362 = vmax.f32 %v330, 0.0
      %v363 = vmax.f32 %v331, 0.0
      %v364 = vmax.f32 %v332, 0.0
      %v365 = vmax.f32 %v333, 0.0
      %v366 = vmax.f32 %v334, 0.0
      %v367 = vmax.f32 %v335, 0.0
      %v368 = vmax.f32 %v336, 0.0
      %v369 = vmax.f32 %v337, 0.0
      %v370 = vmax.f32 %v338, 0.0
      %v371 = vmax.f32 %v339, 0.0
      %v372 = vmax.f32 %v340, 0.0
      %v373 = vmax.f32 %v341, 0.0
      %v374 = vmax.f32 %v342, 0.0
      %v375 = vmax.f32 %v343, 0.0
      %v376 = vmax.f32 %v344, 0.0
      %v377 = vmax.f32 %v345, 0.0
      %v378 = vmax.f32 %v346, 0.0
      %v379 = vmax.f32 %v347, 0.0
      %v380 = vmax.f32 %v348, 0.0
      %v381 = vmax.f32 %v349, 0.0
      %v382 = vmax.f32 %v350, 0.0
      %v383 = vmax.f32 %v351, 0.0
      %v384 = vmax.f32 %v352, 0.0
      %v385 = vmax.f32 %v353, 0.0
      %v386 = vmax.f32 %v354, 0.0
      %v387 = vmax.f32 %v355, 0.0
      %v388 = vmax.f32 %v356, 0.0
      %vm389 = vcmask 64512
      %390 = vst.msk [vmem:[%s213] sm:$0xff] %vm389, %v357
      %391 = vst.msk [vmem:[%s213 + $0x8] sm:$0xff] %vm389, %v358
      %392 = vst.msk [vmem:[%s213 + $0x10] sm:$0xff] %vm389, %v359
      %393 = vst.msk [vmem:[%s213 + $0x18] sm:$0xff] %vm389, %v360
      %394 = vst.msk [vmem:[%s213 + $0x20] sm:$0xff] %vm389, %v361
      %395 = vst.msk [vmem:[%s213 + $0x28] sm:$0xff] %vm389, %v362
      %396 = vst.msk [vmem:[%s213 + $0x30] sm:$0xff] %vm389, %v363
      %397 = vst.msk [vmem:[%s213 + $0x38] sm:$0xff] %vm389, %v364
      %398 = vst.msk [vmem:[%s213 + $0x40] sm:$0xff] %vm389, %v365
      %399 = vst.msk [vmem:[%s213 + $0x48] sm:$0xff] %vm389, %v366
      %400 = vst.msk [vmem:[%s213 + $0x50] sm:$0xff] %vm389, %v367
      %401 = vst.msk [vmem:[%s213 + $0x58] sm:$0xff] %vm389, %v368
      %402 = vst.msk [vmem:[%s213 + $0x60] sm:$0xff] %vm389, %v369
      %403 = vst.msk [vmem:[%s213 + $0x68] sm:$0xff] %vm389, %v370
      %404 = vst.msk [vmem:[%s213 + $0x70] sm:$0xff] %vm389, %v371
      %405 = vst.msk [vmem:[%s213 + $0x78] sm:$0xff] %vm389, %v372
      %406 = vst.msk [vmem:[%s213 + $0x80] sm:$0xff] %vm389, %v373
      %407 = vst.msk [vmem:[%s213 + $0x88] sm:$0xff] %vm389, %v374
      %408 = vst.msk [vmem:[%s213 + $0x90] sm:$0xff] %vm389, %v375
      %409 = vst.msk [vmem:[%s213 + $0x98] sm:$0xff] %vm389, %v376
      %410 = vst.msk [vmem:[%s213 + $0xa0] sm:$0xff] %vm389, %v377
      %411 = vst.msk [vmem:[%s213 + $0xa8] sm:$0xff] %vm389, %v378
      %412 = vst.msk [vmem:[%s213 + $0xb0] sm:$0xff] %vm389, %v379
      %413 = vst.msk [vmem:[%s213 + $0xb8] sm:$0xff] %vm389, %v380
      %414 = vst.msk [vmem:[%s213 + $0xc0] sm:$0xff] %vm389, %v381
      %415 = vst.msk [vmem:[%s213 + $0xc8] sm:$0xff] %vm389, %v382
      %416 = vst.msk [vmem:[%s213 + $0xd0] sm:$0xff] %vm389, %v383
      %417 = vst.msk [vmem:[%s213 + $0xd8] sm:$0xff] %vm389, %v384
      %418 = vst.msk [vmem:[%s213 + $0xe0] sm:$0xff] %vm389, %v385
      %419 = vst.msk [vmem:[%s213 + $0xe8] sm:$0xff] %vm389, %v386
      %420 = vst.msk [vmem:[%s213 + $0xf0] sm:$0xff] %vm389, %v387
      %421 = vst.msk [vmem:[%s213 + $0xf8] sm:$0xff] %vm389, %v388
      %s422 = smul.u32 16, %s19
      %p423 = scmp.lt.s32.totalorder %s18, 1
      %s424 = scalar_select %p423, %s18, 1
      %p425 = scmp.lt.s32.totalorder %s422, 15
      %s426 = scalar_select %p425, %s422, 15
      %s427 = smul.addr %s426, 2
      %s428 = smul.addr %s424, 32
      %s429 = sadd.s32 %s427, %s428
      %s430 = smul.addr %s429, 8
      %s431 = scalar_lea.vmem %s3, %s430
      // Predicated region
      $region33: #{double_conv.5} parent=31 // pred_check
        %p432 = pneg %p116
      $region34: #{double_conv.5} parent=31 // pred_check_branch
        %434 = sbr.rel (%p432) target = $region36
      $region35: #{double_conv.5} parent=31 // pred_region
        %s435 = smul.u32 16, %s19
      $region36: #{double_conv.5} parent=31 // pred_fallthru
        _
    $region32: #{double_conv.5} parent=5 // pred_fallthru
      _
    %p436 = scmp.le.s32.totalorder 2, %s9
    // Predicated region
    $region37: #{double_conv.5} parent=5 // pred_check
      %p437 = pneg %p436
    $region38: #{double_conv.5} parent=5 // pred_check_branch
      %439 = sbr.rel (%p437) target = $region40
    $region39: #{double_conv.5} parent=5 // pred_region
      %s440 = ssub.s32 %s9, 2
      // Predicated region
      $region41: #{double_conv.5} parent=39 // pred_check
        %p441 = pneg %p122
      $region42: #{double_conv.5} parent=39 // pred_check_branch
        %443 = sbr.rel (%p441) target = $region44
      $region43: #{double_conv.5} parent=39 // pred_region
        %s444 = smul.u32 16, %s21
        %p445 = scmp.lt.s32.totalorder %s20, 1
        %s446 = scalar_select %p445, %s20, 1
        %p447 = scmp.lt.s32.totalorder %s444, 15
        %s448 = scalar_select %p447, %s444, 15
        %s449 = smul.addr %s448, 2
        %s450 = smul.addr %s446, 32
        %s451 = sadd.s32 %s449, %s450
        %s452 = smul.addr %s451, 8
        %s453 = scalar_lea.vmem %s3, %s452
      $region44: #{double_conv.5} parent=39 // pred_fallthru
        _
    $region40: #{double_conv.5} parent=5 // pred_fallthru
      _
  $region6: #{double_conv.5} parent=0 // loop_footer
    %s13 = sadd.s32 1, %s9
  $region7: #{double_conv.5} parent=0 // loop_footer_branch
    %8 = sbr.rel target = $region3
  $region8: #{double_conv.5} parent=0 // loop_exit
    _

// kernel: double_conv.3
$region0: #{double_conv.3}
  #allocation0 [shape = 'u32[]', space=smem, size = 0x4, offset = 0x4, fixed_abs, tag = 'smem constant byte address 0x4 - core index']
  #allocation1 [shape = 'u32[144,128]{1,0:T(1,128)}', space=vmem, size = 0x12000, scoped, tag = 'internal scratch']
  %s0 = inlined_call_operand.vmem [shape: bf16[2,16,16,128], index: 0, kind: input, shape index: {}]
  %s1 = inlined_call_operand.vmem [shape: bf16[128,128], index: 1, kind: input, shape index: {}]
  %s2 = inlined_call_operand.vmem [shape: bf16[2,16,16,128], index: 2, kind: output, shape index: {0}]
  %s3 = inlined_call_operand.vmem [shape: f32[2,1,2,128], index: 3, kind: output, shape index: {1}]
  %4 = xla_tuple %s2, %s3
  %s5 = sld [smem:[#allocation0]]
  $region49: #{double_conv.3} parent=0
    _
  %s7 = ssub.s32 1, %s5
  %s8 = scalar_select 0, %s7, %s5
  loop: start=0, step=1, limit=4
  $region2: #{double_conv.3} parent=0 // loop_pre_header
    _
  $region3: #{double_conv.3} parent=0 // loop_header
    %s10 = sphi 0, %s14
    %p11 = scmp.ge.s32.totalorder %s10, 4
    %s17 = sphi 0, %s29
    %s18 = sphi 0, %s25
    %s19 = sphi 0, %s17
    %s20 = sphi 0, %s18
    %s21 = sphi 0, %s19
    %s22 = sphi 0, %s20
    %s34 = sphi 0, %s36
    %s37 = sphi 0, %s34
    %s38 = sphi 0, %s37
    %s54 = sphi 0, %s38
    %s58 = sphi 0, %s58
    %s60 = sphi 0, %s58
    %s61 = sphi 0, %s60
    %s75 = sphi 0, %s61
    %s83 = sphi 0, %s85
    %s86 = sphi 0, %s83
    %s87 = sphi 0, %s86
    %s103 = sphi 0, %s87
    %s111 = sphi 0, %s113
    %s114 = sphi 0, %s111
    %s115 = sphi 0, %s114
    %s131 = sphi 0, %s115
  $region4: #{double_conv.3} parent=0 // loop_header_branch
    %13 = sbr.rel (%p11) target = $region8
  $region5: #{double_conv.3} parent=0 // loop_body
    %s15 = ssub.s32 %s10, 1
    %s16 = ssub.s32 %s10, 2
    %s23 = sadd.s32 1, %s18
    %p24 = scmp.ge.s32.totalorder %s23, 1
    %s25 = scalar_select %p24, 0, %s23
    %s26 = sadd.s32 1, %s17
    %s27 = scalar_select %p24, %s26, %s17
    %p28 = scmp.ge.s32.totalorder %s27, 2
    %s29 = scalar_select %p28, 0, %s27
    %s30 = ssub.s32 %s17, %s29
    %s31 = ssub.s32 %s18, %s25
    %s32 = sor.u32 %s30, %s31
    %p33 = scmp.eq.s32.totalorder %s32, 0
    %s35 = sadd.s32 %s34, 1
    %s36 = scalar_select %p33, %s34, %s35
    %p39 = pneg %p33
    %p40 = scmp.eq.s32.totalorder %s10, 1
    %p41 = por %p39, %p40
    %p42 = scmp.ne.s32.totalorder %s34, %s37
    %p43 = scmp.eq.s32.totalorder %s10, 0
    %p44 = por %p42, %p43
    %p45 = scmp.ne.s32.totalorder %s34, %s37
    %p46 = scmp.eq.s32.totalorder %s15, 1
    %p47 = por %p45, %p46
    %p48 = scmp.ne.s32.totalorder %s37, %s38
    %p49 = scmp.eq.s32.totalorder %s15, 0
    %p50 = por %p48, %p49
    %p51 = scmp.ne.s32.totalorder %s37, %s38
    %p52 = scmp.eq.s32.totalorder %s16, 1
    %p53 = por %p51, %p52
    %p55 = scmp.ne.s32.totalorder %s38, %s54
    %p56 = scmp.eq.s32.totalorder %s16, 0
    %p57 = por %p55, %p56
    %s59 = sadd.s32 %s58, 1
    %p62 = scmp.eq.s32.totalorder %s10, 1
    %p63 = scmp.ne.s32.totalorder %s58, %s60
    %p64 = scmp.eq.s32.totalorder %s10, 0
    %p65 = por %p63, %p64
    %p66 = scmp.ne.s32.totalorder %s58, %s60
    %p67 = scmp.eq.s32.totalorder %s15, 1
    %p68 = por %p66, %p67
    %p69 = scmp.ne.s32.totalorder %s60, %s61
    %p70 = scmp.eq.s32.totalorder %s15, 0
    %p71 = por %p69, %p70
    %p72 = scmp.ne.s32.totalorder %s60, %s61
    %p73 = scmp.eq.s32.totalorder %s16, 1
    %p74 = por %p72, %p73
    %p76 = scmp.ne.s32.totalorder %s61, %s75
    %p77 = scmp.eq.s32.totalorder %s16, 0
    %p78 = por %p76, %p77
    %s79 = ssub.s32 %s17, %s29
    %s80 = ssub.s32 %s18, %s25
    %s81 = sor.u32 %s79, %s80
    %p82 = scmp.eq.s32.totalorder %s81, 0
    %s84 = sadd.s32 %s83, 1
    %s85 = scalar_select %p82, %s83, %s84
    %p88 = pneg %p82
    %p89 = scmp.eq.s32.totalorder %s10, 1
    %p90 = por %p88, %p89
    %p91 = scmp.ne.s32.totalorder %s83, %s86
    %p92 = scmp.eq.s32.totalorder %s10, 0
    %p93 = por %p91, %p92
    %p94 = scmp.ne.s32.totalorder %s83, %s86
    %p95 = scmp.eq.s32.totalorder %s15, 1
    %p96 = por %p94, %p95
    %p97 = scmp.ne.s32.totalorder %s86, %s87
    %p98 = scmp.eq.s32.totalorder %s15, 0
    %p99 = por %p97, %p98
    %p100 = scmp.ne.s32.totalorder %s86, %s87
    %p101 = scmp.eq.s32.totalorder %s16, 1
    %p102 = por %p100, %p101
    %p104 = scmp.ne.s32.totalorder %s87, %s103
    %p105 = scmp.eq.s32.totalorder %s16, 0
    %p106 = por %p104, %p105
    %s107 = ssub.s32 %s17, %s29
    %s108 = ssub.s32 %s18, %s25
    %s109 = sor.u32 %s107, %s108
    %p110 = scmp.eq.s32.totalorder %s109, 0
    %s112 = sadd.s32 %s111, 1
    %s113 = scalar_select %p110, %s111, %s112
    %p116 = pneg %p110
    %p117 = scmp.eq.s32.totalorder %s10, 1
    %p118 = por %p116, %p117
    %p119 = scmp.ne.s32.totalorder %s111, %s114
    %p120 = scmp.eq.s32.totalorder %s10, 0
    %p121 = por %p119, %p120
    %p122 = scmp.ne.s32.totalorder %s111, %s114
    %p123 = scmp.eq.s32.totalorder %s15, 1
    %p124 = por %p122, %p123
    %p125 = scmp.ne.s32.totalorder %s114, %s115
    %p126 = scmp.eq.s32.totalorder %s15, 0
    %p127 = por %p125, %p126
    %p128 = scmp.ne.s32.totalorder %s114, %s115
    %p129 = scmp.eq.s32.totalorder %s16, 1
    %p130 = por %p128, %p129
    %p132 = scmp.ne.s32.totalorder %s115, %s131
    %p133 = scmp.eq.s32.totalorder %s16, 0
    %p134 = por %p132, %p133
    %p135 = scmp.le.s32.totalorder 1, %s10
    %p136 = scmp.lt.s32.totalorder %s10, 3
    %p137 = pnand %p135, %p136
    %p138 = pneg %p137
    // Predicated region
    $region9: #{double_conv.3} parent=5 // pred_check
      _
    $region10: #{double_conv.3} parent=5 // pred_check_branch
      %140 = sbr.rel (%p137) target = $region12
    $region11: #{double_conv.3} parent=5 // pred_region
      %s141 = ssub.s32 %s10, 1
      // Predicated region
      $region13: #{double_conv.3} parent=11 // pred_check
        %p142 = pneg %p71
      $region14: #{double_conv.3} parent=11 // pred_check_branch
        %144 = sbr.rel (%p142) target = $region16
      $region15: #{double_conv.3} parent=11 // pred_region
        _
      $region16: #{double_conv.3} parent=11 // pred_fallthru
        _
    $region12: #{double_conv.3} parent=5 // pred_fallthru
      _
    %p145 = scmp.lt.s32.totalorder %s10, 2
    // Predicated region
    $region17: #{double_conv.3} parent=5 // pred_check
      %p146 = pneg %p145
    $region18: #{double_conv.3} parent=5 // pred_check_branch
      %148 = sbr.rel (%p146) target = $region20
    $region19: #{double_conv.3} parent=5 // pred_region
      // Predicated region
      $region21: #{double_conv.3} parent=19 // pred_check
        %p149 = pneg %p44
      $region22: #{double_conv.3} parent=19 // pred_check_branch
        %151 = sbr.rel (%p149) target = $region24
      $region23: #{double_conv.3} parent=19 // pred_region
        %s152 = smul.u32 16, %s18
        %p153 = scmp.lt.s32.totalorder %s17, 1
        %s154 = scalar_select %p153, %s17, 1
        %p155 = scmp.lt.s32.totalorder %s152, 15
        %s156 = scalar_select %p155, %s152, 15
        %s157 = smul.addr %s156, 2
        %s158 = smul.addr %s154, 32
        %s159 = sadd.s32 %s157, %s158
        %s160 = smul.addr %s159, 4
        %s161 = scalar_lea.vmem %s0, %s160
        %s162 = smul.u32 16, %s18
      $region24: #{double_conv.3} parent=19 // pred_fallthru
        _
    $region20: #{double_conv.3} parent=5 // pred_fallthru
      _
    %p163 = scmp.le.s32.totalorder 1, %s10
    %p164 = scmp.lt.s32.totalorder %s10, 3
    %p165 = pnand %p163, %p164
    %p166 = pneg %p165
    // Predicated region
    $region25: #{double_conv.3} parent=5 // pred_check
      _
    $region26: #{double_conv.3} parent=5 // pred_check_branch
      %168 = sbr.rel (%p165) target = $region28
    $region27: #{double_conv.3} parent=5 // pred_region
      %s169 = ssub.s32 %s10, 1
      %s170 = smul.u32 16, %s20
      %p171 = scmp.lt.s32.totalorder %s19, 1
      %s172 = scalar_select %p171, %s19, 1
      %p173 = scmp.lt.s32.totalorder %s170, 15
      %s174 = scalar_select %p173, %s170, 15
      %s175 = smul.addr %s174, 2
      %s176 = smul.addr %s172, 32
      %s177 = sadd.s32 %s175, %s176
      %s178 = smul.addr %s177, 4
      %s179 = scalar_lea.vmem %s0, %s178
      %p180 = pneg %p50
      %p181 = pneg %p47
      %p182 = pneg %p71
      %p183 = pneg %p68
      %p184 = pneg %p99
      %p185 = pneg %p96
      %s186 = smul.u32 16, %s20
      %p187 = scmp.lt.s32.totalorder %s19, 1
      %s188 = scalar_select %p187, %s19, 1
      %p189 = scmp.lt.s32.totalorder %s186, 15
      %s190 = scalar_select %p189, %s186, 15
      %s191 = smul.addr %s190, 2
      %s192 = smul.addr %s188, 32
      %s193 = sadd.s32 %s191, %s192
      %s194 = smul.addr %s193, 4
      %s195 = scalar_lea.vmem %s2, %s194
      %p196 = pneg %p127
      %p197 = pneg %p124
      %p198 = scmp.lt.s32.totalorder %s19, 1
      %s199 = scalar_select %p198, %s19, 1
      %p200 = scmp.lt.s32.totalorder %s20, 0
      %s201 = scalar_select %p200, %s20, 0
      %s202 = sadd.s32 %s201, %s199
      %s203 = smul.addr %s202, 2
      %s204 = scalar_lea.vmem %s3, %s203
      %s205 = smul.u32 16, %s20
      %p206 = scmp.lt.s32.totalorder %s19, 1
      %s207 = scalar_select %p206, %s19, 1
      %p208 = scmp.lt.s32.totalorder %s205, 15
      %s209 = scalar_select %p208, %s205, 15
      %s210 = smul.addr %s209, 2
      %s211 = smul.addr %s207, 32
      %s212 = sadd.s32 %s210, %s211
      %s213 = smul.addr %s212, 4
      %s214 = scalar_lea.vmem %s0, %s213
      %s215 = smul.u32 16, %s20
      %s216 = smul.u32 16, %s20
      %p217 = scmp.lt.s32.totalorder %s19, 1
      %s218 = scalar_select %p217, %s19, 1
      %p219 = scmp.lt.s32.totalorder %s216, 15
      %s220 = scalar_select %p219, %s216, 15
      %s221 = smul.addr %s220, 2
      %s222 = smul.addr %s218, 32
      %s223 = sadd.s32 %s221, %s222
      %s224 = smul.addr %s223, 4
      %s225 = scalar_lea.vmem %s2, %s224
      %s226 = smul.u32 16, %s20
      %p227 = scmp.lt.s32.totalorder %s19, 1
      %s228 = scalar_select %p227, %s19, 1
      %p229 = scmp.lt.s32.totalorder %s20, 0
      %s230 = scalar_select %p229, %s20, 0
      %s231 = sadd.s32 %s230, %s228
      %s232 = smul.addr %s231, 2
      %s233 = scalar_lea.vmem %s3, %s232
      %v235 = vld [vmem:[%s214] sm:$0xf]
      %v236 = vld [vmem:[%s214 + $0x4] sm:$0xf]
      %v237 = vld [vmem:[%s214 + $0x8] sm:$0xf]
      %v238 = vld [vmem:[%s214 + $0xc] sm:$0xf]
      %v239 = vld [vmem:[%s214 + $0x10] sm:$0xf]
      %v240 = vld [vmem:[%s214 + $0x14] sm:$0xf]
      %v241 = vld [vmem:[%s214 + $0x18] sm:$0xf]
      %v242 = vld [vmem:[%s214 + $0x1c] sm:$0xf]
      %v243 = vld [vmem:[%s214 + $0x20] sm:$0xf]
      %v244 = vld [vmem:[%s214 + $0x24] sm:$0xf]
      %v245 = vld [vmem:[%s214 + $0x28] sm:$0xf]
      %v246 = vld [vmem:[%s214 + $0x2c] sm:$0xf]
      %v247 = vld [vmem:[%s214 + $0x30] sm:$0xf]
      %v248 = vld [vmem:[%s214 + $0x34] sm:$0xf]
      %v249 = vld [vmem:[%s214 + $0x38] sm:$0xf]
      %v250 = vld [vmem:[%s214 + $0x3c] sm:$0xf]
      %v251 = vld [vmem:[%s214 + $0x40] sm:$0xf]
      %v252 = vld [vmem:[%s214 + $0x44] sm:$0xf]
      %v253 = vld [vmem:[%s214 + $0x48] sm:$0xf]
      %v254 = vld [vmem:[%s214 + $0x4c] sm:$0xf]
      %v255 = vld [vmem:[%s214 + $0x50] sm:$0xf]
      %v256 = vld [vmem:[%s214 + $0x54] sm:$0xf]
      %v257 = vld [vmem:[%s214 + $0x58] sm:$0xf]
      %v258 = vld [vmem:[%s214 + $0x5c] sm:$0xf]
      %v259 = vld [vmem:[%s214 + $0x60] sm:$0xf]
      %v260 = vld [vmem:[%s214 + $0x64] sm:$0xf]
      %v261 = vld [vmem:[%s214 + $0x68] sm:$0xf]
      %v262 = vld [vmem:[%s214 + $0x6c] sm:$0xf]
      %v263 = vld [vmem:[%s214 + $0x70] sm:$0xf]
      %v264 = vld [vmem:[%s214 + $0x74] sm:$0xf]
      %v265 = vld [vmem:[%s214 + $0x78] sm:$0xf]
      %v266 = vld [vmem:[%s214 + $0x7c] sm:$0xf]
      %v267 = vld [vmem:[%s1] sm:$0xf]
      %v268 = vld [vmem:[%s1 + $0x4] sm:$0xf]
      %v269 = vld [vmem:[%s1 + $0x8] sm:$0xf]
      %v270 = vld [vmem:[%s1 + $0xc] sm:$0xf]
      %v271 = vld [vmem:[%s1 + $0x10] sm:$0xf]
      %v272 = vld [vmem:[%s1 + $0x14] sm:$0xf]
      %v273 = vld [vmem:[%s1 + $0x18] sm:$0xf]
      %v274 = vld [vmem:[%s1 + $0x1c] sm:$0xf]
      %v275 = vld [vmem:[%s1 + $0x20] sm:$0xf]
      %v276 = vld [vmem:[%s1 + $0x24] sm:$0xf]
      %v277 = vld [vmem:[%s1 + $0x28] sm:$0xf]
      %v278 = vld [vmem:[%s1 + $0x2c] sm:$0xf]
      %v279 = vld [vmem:[%s1 + $0x30] sm:$0xf]
      %v280 = vld [vmem:[%s1 + $0x34] sm:$0xf]
      %v281 = vld [vmem:[%s1 + $0x38] sm:$0xf]
      %v282 = vld [vmem:[%s1 + $0x3c] sm:$0xf]
      %v315 = vunpack.c.l.b16 %v235
      %v316 = vunpack.c.l.b16 %v236
      %v317 = vunpack.c.l.b16 %v237
      %v318 = vunpack.c.l.b16 %v238
      %v319 = vunpack.c.l.b16 %v239
      %v320 = vunpack.c.l.b16 %v240
      %v321 = vunpack.c.l.b16 %v241
      %v322 = vunpack.c.l.b16 %v242
      %v323 = vunpack.c.l.b16 %v243
      %v324 = vunpack.c.l.b16 %v244
      %v325 = vunpack.c.l.b16 %v245
      %v326 = vunpack.c.l.b16 %v246
      %v327 = vunpack.c.l.b16 %v247
      %v328 = vunpack.c.l.b16 %v248
      %v329 = vunpack.c.l.b16 %v249
      %v330 = vunpack.c.l.b16 %v250
      %v331 = vunpack.c.l.b16 %v251
      %v332 = vunpack.c.l.b16 %v252
      %v333 = vunpack.c.l.b16 %v253
      %v334 = vunpack.c.l.b16 %v254
      %v335 = vunpack.c.l.b16 %v255
      %v336 = vunpack.c.l.b16 %v256
      %v337 = vunpack.c.l.b16 %v257
      %v338 = vunpack.c.l.b16 %v258
      %v339 = vunpack.c.l.b16 %v259
      %v340 = vunpack.c.l.b16 %v260
      %v341 = vunpack.c.l.b16 %v261
      %v342 = vunpack.c.l.b16 %v262
      %v343 = vunpack.c.l.b16 %v263
      %v344 = vunpack.c.l.b16 %v264
      %v345 = vunpack.c.l.b16 %v265
      %v346 = vunpack.c.l.b16 %v266
      %v347 = vpack.c.b16 %v316, %v315
      %v348 = vpack.c.b16 %v318, %v317
      %v349 = vpack.c.b16 %v320, %v319
      %v350 = vpack.c.b16 %v322, %v321
      %v351 = vpack.c.b16 %v324, %v323
      %v352 = vpack.c.b16 %v326, %v325
      %v353 = vpack.c.b16 %v328, %v327
      %v354 = vpack.c.b16 %v330, %v329
      %v355 = vpack.c.b16 %v332, %v331
      %v356 = vpack.c.b16 %v334, %v333
      %v357 = vpack.c.b16 %v336, %v335
      %v358 = vpack.c.b16 %v338, %v337
      %v359 = vpack.c.b16 %v340, %v339
      %v360 = vpack.c.b16 %v342, %v341
      %v361 = vpack.c.b16 %v344, %v343
      %v362 = vpack.c.b16 %v346, %v345
      %v395 = vunpack.c.l.b16 %v267
      %v396 = vunpack.c.l.b16 %v268
      %v397 = vunpack.c.l.b16 %v269
      %v398 = vunpack.c.l.b16 %v270
      %v399 = vunpack.c.l.b16 %v271
      %v400 = vunpack.c.l.b16 %v272
      %v401 = vunpack.c.l.b16 %v273
      %v402 = vunpack.c.l.b16 %v274
      %v403 = vunpack.c.l.b16 %v275
      %v404 = vunpack.c.l.b16 %v276
      %v405 = vunpack.c.l.b16 %v277
      %v406 = vunpack.c.l.b16 %v278
      %v407 = vunpack.c.l.b16 %v279
      %v408 = vunpack.c.l.b16 %v280
      %v409 = vunpack.c.l.b16 %v281
      %v410 = vunpack.c.l.b16 %v282
      %v411 = vpack.c.b16 %v396, %v395
      %v412 = vpack.c.b16 %v398, %v397
      %v413 = vpack.c.b16 %v400, %v399
      %v414 = vpack.c.b16 %v402, %v401
      %v415 = vpack.c.b16 %v404, %v403
      %v416 = vpack.c.b16 %v406, %v405
      %v417 = vpack.c.b16 %v408, %v407
      %v418 = vpack.c.b16 %v410, %v409
      %427 = vmatprep.subr.bf16.mxu0 0
      %428 = vmatpush1.bf16.msra.mxu0 %v418
      %429 = vmatprep.subr.bf16.mxu0 0
      %430 = vmatpush1.bf16.msra.mxu0 %v417
      %431 = vmatprep.subr.bf16.mxu0 0
      %432 = vmatpush1.bf16.msra.mxu0 %v416
      %433 = vmatprep.subr.bf16.mxu0 0
      %434 = vmatpush1.bf16.msra.mxu0 %v415
      %435 = vmatprep.subr.bf16.mxu0 0
      %436 = vmatpush1.bf16.msra.mxu0 %v414
      %437 = vmatprep.subr.bf16.mxu0 0
      %438 = vmatpush1.bf16.msra.mxu0 %v413
      %439 = vmatprep.subr.bf16.mxu0 0
      %440 = vmatpush1.bf16.msra.mxu0 %v412
      %441 = vmatprep.subr.bf16.mxu0 0
      %442 = vmatpush1.bf16.msra.mxu0 %v411
      %443 = vmatprep.subr.bf16.mxu0 0
      %444 = vmatpush2.bf16.msra.mxu0 0
      %445 = vmatprep.subr.bf16.mxu0 0
      %446 = vmatpush2.bf16.msra.mxu0 0
      %447 = vmatprep.subr.bf16.mxu0 0
      %448 = vmatpush2.bf16.msra.mxu0 0
      %449 = vmatprep.subr.bf16.mxu0 0
      %450 = vmatpush2.bf16.msra.mxu0 0
      %451 = vmatprep.subr.bf16.mxu0 0
      %452 = vmatpush2.bf16.msra.mxu0 0
      %453 = vmatprep.subr.bf16.mxu0 0
      %454 = vmatpush2.bf16.msra.mxu0 0
      %455 = vmatprep.subr.bf16.mxu0 0
      %456 = vmatpush2.bf16.msra.mxu0 0
      %457 = vmatprep.subr.bf16.mxu0 0
      %458 = vmatpush2.bf16.msra.mxu0 0
      %459 = vmatprep.mubr.bf16.mxu0 0
      %460 = vmatmul.mubr.bf16.gmra.mxu0 %v347
      %v461 = vpop.f32.mrf.mxu0
      %v462 = vadd.f32 0.0, %v461
      %v463 = vpop.f32.mrf.mxu0
      %v464 = vpop.f32.mrf.mxu0
      %v465 = vadd.f32 0.0, %v464
      %v466 = vpop.f32.mrf.mxu0
      %467 = vmatprep.mubr.bf16.mxu0 0
      %468 = vmatmul.mubr.bf16.gmra.mxu0 %v348
      %v469 = vpop.f32.mrf.mxu0
      %v470 = vadd.f32 0.0, %v469
      %v471 = vpop.f32.mrf.mxu0
      %v472 = vpop.f32.mrf.mxu0
      %v473 = vadd.f32 0.0, %v472
      %v474 = vpop.f32.mrf.mxu0
      %475 = vmatprep.mubr.bf16.mxu0 0
      %476 = vmatmul.mubr.bf16.gmra.mxu0 %v349
      %v477 = vpop.f32.mrf.mxu0
      %v478 = vadd.f32 0.0, %v477
      %v479 = vpop.f32.mrf.mxu0
      %v480 = vpop.f32.mrf.mxu0
      %v481 = vadd.f32 0.0, %v480
      %v482 = vpop.f32.mrf.mxu0
      %483 = vmatprep.mubr.bf16.mxu0 0
      %484 = vmatmul.mubr.bf16.gmra.mxu0 %v350
      %v485 = vpop.f32.mrf.mxu0
      %v486 = vadd.f32 0.0, %v485
      %v487 = vpop.f32.mrf.mxu0
      %v488 = vpop.f32.mrf.mxu0
      %v489 = vadd.f32 0.0, %v488
      %v490 = vpop.f32.mrf.mxu0
      %491 = vmatprep.mubr.bf16.mxu0 0
      %492 = vmatmul.mubr.bf16.gmra.mxu0 %v351
      %v493 = vpop.f32.mrf.mxu0
      %v494 = vadd.f32 0.0, %v493
      %v495 = vpop.f32.mrf.mxu0
      %v496 = vpop.f32.mrf.mxu0
      %v497 = vadd.f32 0.0, %v496
      %v498 = vpop.f32.mrf.mxu0
      %499 = vmatprep.mubr.bf16.mxu0 0
      %500 = vmatmul.mubr.bf16.gmra.mxu0 %v352
      %v501 = vpop.f32.mrf.mxu0
      %v502 = vadd.f32 0.0, %v501
      %v503 = vpop.f32.mrf.mxu0
      %v504 = vpop.f32.mrf.mxu0
      %v505 = vadd.f32 0.0, %v504
      %v506 = vpop.f32.mrf.mxu0
      %507 = vmatprep.mubr.bf16.mxu0 0
      %508 = vmatmul.mubr.bf16.gmra.mxu0 %v353
      %v509 = vpop.f32.mrf.mxu0
      %v510 = vadd.f32 0.0, %v509
      %v511 = vpop.f32.mrf.mxu0
      %v512 = vpop.f32.mrf.mxu0
      %v513 = vadd.f32 0.0, %v512
      %v514 = vpop.f32.mrf.mxu0
      %515 = vmatprep.mubr.bf16.mxu0 0
      %516 = vmatmul.mubr.bf16.gmra.mxu0 %v354
      %v517 = vpop.f32.mrf.mxu0
      %v518 = vadd.f32 0.0, %v517
      %v519 = vpop.f32.mrf.mxu0
      %v520 = vpop.f32.mrf.mxu0
      %v521 = vadd.f32 0.0, %v520
      %v522 = vpop.f32.mrf.mxu0
      %523 = vmatprep.mubr.bf16.mxu0 0
      %524 = vmatmul.mubr.bf16.gmra.mxu0 %v355
      %v525 = vpop.f32.mrf.mxu0
      %v526 = vadd.f32 0.0, %v525
      %v527 = vpop.f32.mrf.mxu0
      %v528 = vpop.f32.mrf.mxu0
      %v529 = vadd.f32 0.0, %v528
      %v530 = vpop.f32.mrf.mxu0
      %531 = vmatprep.mubr.bf16.mxu0 0
      %532 = vmatmul.mubr.bf16.gmra.mxu0 %v356
      %v533 = vpop.f32.mrf.mxu0
      %v534 = vadd.f32 0.0, %v533
      %v535 = vpop.f32.mrf.mxu0
      %v536 = vpop.f32.mrf.mxu0
      %v537 = vadd.f32 0.0, %v536
      %v538 = vpop.f32.mrf.mxu0
      %539 = vmatprep.mubr.bf16.mxu0 0
      %540 = vmatmul.mubr.bf16.gmra.mxu0 %v357
      %v541 = vpop.f32.mrf.mxu0
      %v542 = vadd.f32 0.0, %v541
      %v543 = vpop.f32.mrf.mxu0
      %v544 = vpop.f32.mrf.mxu0
      %v545 = vadd.f32 0.0, %v544
      %v546 = vpop.f32.mrf.mxu0
      %547 = vmatprep.mubr.bf16.mxu0 0
      %548 = vmatmul.mubr.bf16.gmra.mxu0 %v358
      %v549 = vpop.f32.mrf.mxu0
      %v550 = vadd.f32 0.0, %v549
      %v551 = vpop.f32.mrf.mxu0
      %v552 = vpop.f32.mrf.mxu0
      %v553 = vadd.f32 0.0, %v552
      %v554 = vpop.f32.mrf.mxu0
      %555 = vmatprep.mubr.bf16.mxu0 0
      %556 = vmatmul.mubr.bf16.gmra.mxu0 %v359
      %v557 = vpop.f32.mrf.mxu0
      %v558 = vadd.f32 0.0, %v557
      %v559 = vpop.f32.mrf.mxu0
      %v560 = vpop.f32.mrf.mxu0
      %v561 = vadd.f32 0.0, %v560
      %v562 = vpop.f32.mrf.mxu0
      %563 = vmatprep.mubr.bf16.mxu0 0
      %564 = vmatmul.mubr.bf16.gmra.mxu0 %v360
      %v565 = vpop.f32.mrf.mxu0
      %v566 = vadd.f32 0.0, %v565
      %v567 = vpop.f32.mrf.mxu0
      %v568 = vpop.f32.mrf.mxu0
      %v569 = vadd.f32 0.0, %v568
      %v570 = vpop.f32.mrf.mxu0
      %571 = vmatprep.mubr.bf16.mxu0 0
      %572 = vmatmul.mubr.bf16.gmra.mxu0 %v361
      %v573 = vpop.f32.mrf.mxu0
      %v574 = vadd.f32 0.0, %v573
      %v575 = vpop.f32.mrf.mxu0
      %v576 = vpop.f32.mrf.mxu0
      %v577 = vadd.f32 0.0, %v576
      %v578 = vpop.f32.mrf.mxu0
      %579 = vmatprep.mubr.bf16.mxu0 0
      %580 = vmatmul.mubr.bf16.gmra.mxu0 %v362
      %v581 = vpop.f32.mrf.mxu0
      %v582 = vadd.f32 0.0, %v581
      %v583 = vpop.f32.mrf.mxu0
      %v584 = vpop.f32.mrf.mxu0
      %v585 = vadd.f32 0.0, %v584
      %v586 = vpop.f32.mrf.mxu0
      %587 = vdwg.mxu0
      %v588 = vpack.c.bf16 %v465, %v462
      %v589 = vpack.c.bf16 %v473, %v470
      %v590 = vpack.c.bf16 %v481, %v478
      %v591 = vpack.c.bf16 %v489, %v486
      %v592 = vpack.c.bf16 %v497, %v494
      %v593 = vpack.c.bf16 %v505, %v502
      %v594 = vpack.c.bf16 %v513, %v510
      %v595 = vpack.c.bf16 %v521, %v518
      %v596 = vpack.c.bf16 %v529, %v526
      %v597 = vpack.c.bf16 %v537, %v534
      %v598 = vpack.c.bf16 %v545, %v542
      %v599 = vpack.c.bf16 %v553, %v550
      %v600 = vpack.c.bf16 %v561, %v558
      %v601 = vpack.c.bf16 %v569, %v566
      %v602 = vpack.c.bf16 %v577, %v574
      %v603 = vpack.c.bf16 %v585, %v582
      %v620 = vunpack.c.l.b16 %v588
      %v621 = vunpack.c.h.b16 %v588
      %v622 = vunpack.c.l.b16 %v589
      %v623 = vunpack.c.h.b16 %v589
      %v624 = vunpack.c.l.b16 %v590
      %v625 = vunpack.c.h.b16 %v590
      %v626 = vunpack.c.l.b16 %v591
      %v627 = vunpack.c.h.b16 %v591
      %v628 = vunpack.c.l.b16 %v592
      %v629 = vunpack.c.h.b16 %v592
      %v630 = vunpack.c.l.b16 %v593
      %v631 = vunpack.c.h.b16 %v593
      %v632 = vunpack.c.l.b16 %v594
      %v633 = vunpack.c.h.b16 %v594
      %v634 = vunpack.c.l.b16 %v595
      %v635 = vunpack.c.h.b16 %v595
      %v636 = vunpack.c.l.b16 %v596
      %v637 = vunpack.c.h.b16 %v596
      %v638 = vunpack.c.l.b16 %v597
      %v639 = vunpack.c.h.b16 %v597
      %v640 = vunpack.c.l.b16 %v598
      %v641 = vunpack.c.h.b16 %v598
      %v642 = vunpack.c.l.b16 %v599
      %v643 = vunpack.c.h.b16 %v599
      %v644 = vunpack.c.l.b16 %v600
      %v645 = vunpack.c.h.b16 %v600
      %v646 = vunpack.c.l.b16 %v601
      %v647 = vunpack.c.h.b16 %v601
      %v648 = vunpack.c.l.b16 %v602
      %v649 = vunpack.c.h.b16 %v602
      %v650 = vunpack.c.l.b16 %v603
      %v651 = vunpack.c.h.b16 %v603
      %v652 = vpack.c.b16 %v620, %v620
      %v653 = vpack.c.b16 %v621, %v621
      %v654 = vpack.c.b16 %v622, %v622
      %v655 = vpack.c.b16 %v623, %v623
      %v656 = vpack.c.b16 %v624, %v624
      %v657 = vpack.c.b16 %v625, %v625
      %v658 = vpack.c.b16 %v626, %v626
      %v659 = vpack.c.b16 %v627, %v627
      %v660 = vpack.c.b16 %v628, %v628
      %v661 = vpack.c.b16 %v629, %v629
      %v662 = vpack.c.b16 %v630, %v630
      %v663 = vpack.c.b16 %v631, %v631
      %v664 = vpack.c.b16 %v632, %v632
      %v665 = vpack.c.b16 %v633, %v633
      %v666 = vpack.c.b16 %v634, %v634
      %v667 = vpack.c.b16 %v635, %v635
      %v668 = vpack.c.b16 %v636, %v636
      %v669 = vpack.c.b16 %v637, %v637
      %v670 = vpack.c.b16 %v638, %v638
      %v671 = vpack.c.b16 %v639, %v639
      %v672 = vpack.c.b16 %v640, %v640
      %v673 = vpack.c.b16 %v641, %v641
      %v674 = vpack.c.b16 %v642, %v642
      %v675 = vpack.c.b16 %v643, %v643
      %v676 = vpack.c.b16 %v644, %v644
      %v677 = vpack.c.b16 %v645, %v645
      %v678 = vpack.c.b16 %v646, %v646
      %v679 = vpack.c.b16 %v647, %v647
      %v680 = vpack.c.b16 %v648, %v648
      %v681 = vpack.c.b16 %v649, %v649
      %v682 = vpack.c.b16 %v650, %v650
      %v683 = vpack.c.b16 %v651, %v651
      %716 = vst [vmem:[%s225] sm:$0xf] %v652
      %717 = vst [vmem:[%s225 + $0x4] sm:$0xf] %v653
      %718 = vst [vmem:[%s225 + $0x8] sm:$0xf] %v654
      %719 = vst [vmem:[%s225 + $0xc] sm:$0xf] %v655
      %720 = vst [vmem:[%s225 + $0x10] sm:$0xf] %v656
      %721 = vst [vmem:[%s225 + $0x14] sm:$0xf] %v657
      %722 = vst [vmem:[%s225 + $0x18] sm:$0xf] %v658
      %723 = vst [vmem:[%s225 + $0x1c] sm:$0xf] %v659
      %724 = vst [vmem:[%s225 + $0x20] sm:$0xf] %v660
      %725 = vst [vmem:[%s225 + $0x24] sm:$0xf] %v661
      %726 = vst [vmem:[%s225 + $0x28] sm:$0xf] %v662
      %727 = vst [vmem:[%s225 + $0x2c] sm:$0xf] %v663
      %728 = vst [vmem:[%s225 + $0x30] sm:$0xf] %v664
      %729 = vst [vmem:[%s225 + $0x34] sm:$0xf] %v665
      %730 = vst [vmem:[%s225 + $0x38] sm:$0xf] %v666
      %731 = vst [vmem:[%s225 + $0x3c] sm:$0xf] %v667
      %732 = vst [vmem:[%s225 + $0x40] sm:$0xf] %v668
      %733 = vst [vmem:[%s225 + $0x44] sm:$0xf] %v669
      %734 = vst [vmem:[%s225 + $0x48] sm:$0xf] %v670
      %735 = vst [vmem:[%s225 + $0x4c] sm:$0xf] %v671
      %736 = vst [vmem:[%s225 + $0x50] sm:$0xf] %v672
      %737 = vst [vmem:[%s225 + $0x54] sm:$0xf] %v673
      %738 = vst [vmem:[%s225 + $0x58] sm:$0xf] %v674
      %739 = vst [vmem:[%s225 + $0x5c] sm:$0xf] %v675
      %740 = vst [vmem:[%s225 + $0x60] sm:$0xf] %v676
      %741 = vst [vmem:[%s225 + $0x64] sm:$0xf] %v677
      %742 = vst [vmem:[%s225 + $0x68] sm:$0xf] %v678
      %743 = vst [vmem:[%s225 + $0x6c] sm:$0xf] %v679
      %744 = vst [vmem:[%s225 + $0x70] sm:$0xf] %v680
      %745 = vst [vmem:[%s225 + $0x74] sm:$0xf] %v681
      %746 = vst [vmem:[%s225 + $0x78] sm:$0xf] %v682
      %747 = vst [vmem:[%s225 + $0x7c] sm:$0xf] %v683
      %v748 = vadd.f32 %v462, %v465
      %v749 = vadd.f32 %v748, %v470
      %v750 = vadd.f32 %v749, %v473
      %v751 = vadd.f32 %v750, %v478
      %v752 = vadd.f32 %v751, %v481
      %v753 = vadd.f32 %v752, %v486
      %v754 = vadd.f32 %v753, %v489
      %v755 = vadd.f32 %v754, %v494
      %v756 = vadd.f32 %v755, %v497
      %v757 = vadd.f32 %v756, %v502
      %v758 = vadd.f32 %v757, %v505
      %v759 = vadd.f32 %v758, %v510
      %v760 = vadd.f32 %v759, %v513
      %v761 = vadd.f32 %v760, %v518
      %v762 = vadd.f32 %v761, %v521
      %v763 = vadd.f32 %v762, %v526
      %v764 = vadd.f32 %v763, %v529
      %v765 = vadd.f32 %v764, %v534
      %v766 = vadd.f32 %v765, %v537
      %v767 = vadd.f32 %v766, %v542
      %v768 = vadd.f32 %v767, %v545
      %v769 = vadd.f32 %v768, %v550
      %v770 = vadd.f32 %v769, %v553
      %v771 = vadd.f32 %v770, %v558
      %v772 = vadd.f32 %v771, %v561
      %v773 = vadd.f32 %v772, %v566
      %v774 = vadd.f32 %v773, %v569
      %v775 = vadd.f32 %v774, %v574
      %v776 = vadd.f32 %v775, %v577
      %v777 = vadd.f32 %v776, %v582
      %v778 = vadd.f32 %v777, %v585
      %v779 = vrot.slane %v778, 4
      %v780 = vadd.f32 %v778, %v779
      %v781 = vrot.slane %v780, 2
      %v782 = vadd.f32 %v780, %v781
      %v783 = vrot.slane %v782, 1
      %v784 = vadd.f32 %v782, %v783
      %v785 = vmul.f32 %v462, %v462
      %v786 = vmul.f32 %v465, %v465
      %v787 = vmul.f32 %v470, %v470
      %v788 = vmul.f32 %v473, %v473
      %v789 = vmul.f32 %v478, %v478
      %v790 = vmul.f32 %v481, %v481
      %v791 = vmul.f32 %v486, %v486
      %v792 = vmul.f32 %v489, %v489
      %v793 = vmul.f32 %v494, %v494
      %v794 = vmul.f32 %v497, %v497
      %v795 = vmul.f32 %v502, %v502
      %v796 = vmul.f32 %v505, %v505
      %v797 = vmul.f32 %v510, %v510
      %v798 = vmul.f32 %v513, %v513
      %v799 = vmul.f32 %v518, %v518
      %v800 = vmul.f32 %v521, %v521
      %v801 = vmul.f32 %v526, %v526
      %v802 = vmul.f32 %v529, %v529
      %v803 = vmul.f32 %v534, %v534
      %v804 = vmul.f32 %v537, %v537
      %v805 = vmul.f32 %v542, %v542
      %v806 = vmul.f32 %v545, %v545
      %v807 = vmul.f32 %v550, %v550
      %v808 = vmul.f32 %v553, %v553
      %v809 = vmul.f32 %v558, %v558
      %v810 = vmul.f32 %v561, %v561
      %v811 = vmul.f32 %v566, %v566
      %v812 = vmul.f32 %v569, %v569
      %v813 = vmul.f32 %v574, %v574
      %v814 = vmul.f32 %v577, %v577
      %v815 = vmul.f32 %v582, %v582
      %v816 = vmul.f32 %v585, %v585
      %v817 = vadd.f32 %v785, %v786
      %v818 = vadd.f32 %v817, %v787
      %v819 = vadd.f32 %v818, %v788
      %v820 = vadd.f32 %v819, %v789
      %v821 = vadd.f32 %v820, %v790
      %v822 = vadd.f32 %v821, %v791
      %v823 = vadd.f32 %v822, %v792
      %v824 = vadd.f32 %v823, %v793
      %v825 = vadd.f32 %v824, %v794
      %v826 = vadd.f32 %v825, %v795
      %v827 = vadd.f32 %v826, %v796
      %v828 = vadd.f32 %v827, %v797
      %v829 = vadd.f32 %v828, %v798
      %v830 = vadd.f32 %v829, %v799
      %v831 = vadd.f32 %v830, %v800
      %v832 = vadd.f32 %v831, %v801
      %v833 = vadd.f32 %v832, %v802
      %v834 = vadd.f32 %v833, %v803
      %v835 = vadd.f32 %v834, %v804
      %v836 = vadd.f32 %v835, %v805
      %v837 = vadd.f32 %v836, %v806
      %v838 = vadd.f32 %v837, %v807
      %v839 = vadd.f32 %v838, %v808
      %v840 = vadd.f32 %v839, %v809
      %v841 = vadd.f32 %v840, %v810
      %v842 = vadd.f32 %v841, %v811
      %v843 = vadd.f32 %v842, %v812
      %v844 = vadd.f32 %v843, %v813
      %v845 = vadd.f32 %v844, %v814
      %v846 = vadd.f32 %v845, %v815
      %v847 = vadd.f32 %v846, %v816
      %v848 = vrot.slane %v847, 4
      %v849 = vadd.f32 %v847, %v848
      %v850 = vrot.slane %v849, 2
      %v851 = vadd.f32 %v849, %v850
      %v852 = vrot.slane %v851, 1
      %v853 = vadd.f32 %v851, %v852
      %vm854 = vcmask 1040384
      %v855 = vsel %vm854, %v784, %v853
      %856 = vst [vmem:[%s233] sm:$0x3] %v855
      %s857 = smul.u32 16, %s20
      %p858 = scmp.lt.s32.totalorder %s19, 1
      %s859 = scalar_select %p858, %s19, 1
      %p860 = scmp.lt.s32.totalorder %s857, 15
      %s861 = scalar_select %p860, %s857, 15
      %s862 = smul.addr %s861, 2
      %s863 = smul.addr %s859, 32
      %s864 = sadd.s32 %s862, %s863
      %s865 = smul.addr %s864, 4
      %s866 = scalar_lea.vmem %s2, %s865
      %p867 = scmp.lt.s32.totalorder %s19, 1
      %s868 = scalar_select %p867, %s19, 1
      %p869 = scmp.lt.s32.totalorder %s20, 0
      %s870 = scalar_select %p869, %s20, 0
      %s871 = sadd.s32 %s870, %s868
      %s872 = smul.addr %s871, 2
      %s873 = scalar_lea.vmem %s3, %s872
      // Predicated region
      $region29: #{double_conv.3} parent=27 // pred_check
        %p874 = pneg %p96
      $region30: #{double_conv.3} parent=27 // pred_check_branch
        %876 = sbr.rel (%p874) target = $region32
      $region31: #{double_conv.3} parent=27 // pred_region
        %s877 = smul.u32 16, %s20
      $region32: #{double_conv.3} parent=27 // pred_fallthru
        _
      // Predicated region
      $region33: #{double_conv.3} parent=27 // pred_check
        %p878 = pneg %p124
      $region34: #{double_conv.3} parent=27 // pred_check_branch
        %880 = sbr.rel (%p878) target = $region36
      $region35: #{double_conv.3} parent=27 // pred_region
        _
      $region36: #{double_conv.3} parent=27 // pred_fallthru
        _
    $region28: #{double_conv.3} parent=5 // pred_fallthru
      _
    %p881 = scmp.le.s32.totalorder 2, %s10
    // Predicated region
    $region37: #{double_conv.3} parent=5 // pred_check
      %p882 = pneg %p881
    $region38: #{double_conv.3} parent=5 // pred_check_branch
      %884 = sbr.rel (%p882) target = $region40
    $region39: #{double_conv.3} parent=5 // pred_region
      %s885 = ssub.s32 %s10, 2
      // Predicated region
      $region41: #{double_conv.3} parent=39 // pred_check
        %p886 = pneg %p102
      $region42: #{double_conv.3} parent=39 // pred_check_branch
        %888 = sbr.rel (%p886) target = $region44
      $region43: #{double_conv.3} parent=39 // pred_region
        %s889 = smul.u32 16, %s22
        %p890 = scmp.lt.s32.totalorder %s21, 1
        %s891 = scalar_select %p890, %s21, 1
        %p892 = scmp.lt.s32.totalorder %s889, 15
        %s893 = scalar_select %p892, %s889, 15
        %s894 = smul.addr %s893, 2
        %s895 = smul.addr %s891, 32
        %s896 = sadd.s32 %s894, %s895
        %s897 = smul.addr %s896, 4
        %s898 = scalar_lea.vmem %s2, %s897
      $region44: #{double_conv.3} parent=39 // pred_fallthru
        _
      // Predicated region
      $region45: #{double_conv.3} parent=39 // pred_check
        %p899 = pneg %p130
      $region46: #{double_conv.3} parent=39 // pred_check_branch
        %901 = sbr.rel (%p899) target = $region48
      $region47: #{double_conv.3} parent=39 // pred_region
        %p902 = scmp.lt.s32.totalorder %s21, 1
        %s903 = scalar_select %p902, %s21, 1
        %p904 = scmp.lt.s32.totalorder %s22, 0
        %s905 = scalar_select %p904, %s22, 0
        %s906 = sadd.s32 %s905, %s903
        %s907 = smul.addr %s906, 2
        %s908 = scalar_lea.vmem %s3, %s907
      $region48: #{double_conv.3} parent=39 // pred_fallthru
        _
    $region40: #{double_conv.3} parent=5 // pred_fallthru
      _
  $region6: #{double_conv.3} parent=0 // loop_footer
    %s14 = sadd.s32 1, %s10
  $region7: #{double_conv.3} parent=0 // loop_footer_branch
    %9 = sbr.rel target = $region3
  $region8: #{double_conv.3} parent=0 // loop_exit
    _

// kernel: double_conv.4
$region0: #{double_conv.4}
  #allocation0 [shape = 'u32[]', space=smem, size = 0x4, offset = 0x4, fixed_abs, tag = 'smem constant byte address 0x4 - core index']
  #allocation1 [shape = 'u32[144,128]{1,0:T(1,128)}', space=vmem, size = 0x12000, scoped, tag = 'internal scratch']
  %s0 = inlined_call_operand.vmem [shape: bf16[2,16,16,128], index: 0, kind: input, shape index: {}]
  %s1 = inlined_call_operand.vmem [shape: bf16[2,1,16,128], index: 1, kind: input, shape index: {}, may-alias: {1,2}]
  %s2 = inlined_call_operand.vmem [shape: bf16[2,1,16,128], index: 2, kind: input, shape index: {}, may-alias: {1,2}]
  %s3 = inlined_call_operand.vmem [shape: bf16[3,384,128], index: 3, kind: input, shape index: {}]
  %s4 = inlined_call_operand.vmem [shape: f32[1,128], index: 4, kind: input, shape index: {}]
  %s5 = inlined_call_operand.vmem [shape: f32[1,128], index: 5, kind: input, shape index: {}]
  %s6 = inlined_call_operand.vmem [shape: bf16[2,16,16,128], index: 6, kind: output, shape index: {0}]
  %s7 = inlined_call_operand.vmem [shape: f32[2,1,2,128], index: 7, kind: output, shape index: {1}]
  %8 = xla_tuple %s6, %s7
  %s9 = sld [smem:[#allocation0]]
  $region65: #{double_conv.4} parent=0
    _
  %s11 = ssub.s32 1, %s9
  %s12 = scalar_select 0, %s11, %s9
  loop: start=0, step=1, limit=4
  $region2: #{double_conv.4} parent=0 // loop_pre_header
    _
  $region3: #{double_conv.4} parent=0 // loop_header
    %s14 = sphi 0, %s18
    %p15 = scmp.ge.s32.totalorder %s14, 4
    %s21 = sphi 0, %s33
    %s22 = sphi 0, %s29
    %s23 = sphi 0, %s21
    %s24 = sphi 0, %s22
    %s25 = sphi 0, %s23
    %s26 = sphi 0, %s24
    %s38 = sphi 0, %s40
    %s41 = sphi 0, %s38
    %s42 = sphi 0, %s41
    %s58 = sphi 0, %s42
    %s66 = sphi 0, %s68
    %s69 = sphi 0, %s66
    %s70 = sphi 0, %s69
    %s86 = sphi 0, %s70
    %s94 = sphi 0, %s96
    %s97 = sphi 0, %s94
    %s98 = sphi 0, %s97
    %s114 = sphi 0, %s98
    %s118 = sphi 0, %s118
    %s120 = sphi 0, %s118
    %s121 = sphi 0, %s120
    %s135 = sphi 0, %s121
    %s139 = sphi 0, %s139
    %s141 = sphi 0, %s139
    %s142 = sphi 0, %s141
    %s156 = sphi 0, %s142
    %s160 = sphi 0, %s160
    %s162 = sphi 0, %s160
    %s163 = sphi 0, %s162
    %s177 = sphi 0, %s163
    %s185 = sphi 0, %s187
    %s188 = sphi 0, %s185
    %s189 = sphi 0, %s188
    %s205 = sphi 0, %s189
    %s213 = sphi 0, %s215
    %s216 = sphi 0, %s213
    %s217 = sphi 0, %s216
    %s233 = sphi 0, %s217
  $region4: #{double_conv.4} parent=0 // loop_header_branch
    %17 = sbr.rel (%p15) target = $region8
  $region5: #{double_conv.4} parent=0 // loop_body
    %s19 = ssub.s32 %s14, 1
    %s20 = ssub.s32 %s14, 2
    %s27 = sadd.s32 1, %s22
    %p28 = scmp.ge.s32.totalorder %s27, 1
    %s29 = scalar_select %p28, 0, %s27
    %s30 = sadd.s32 1, %s21
    %s31 = scalar_select %p28, %s30, %s21
    %p32 = scmp.ge.s32.totalorder %s31, 2
    %s33 = scalar_select %p32, 0, %s31
    %s34 = ssub.s32 %s21, %s33
    %s35 = ssub.s32 %s22, %s29
    %s36 = sor.u32 %s34, %s35
    %p37 = scmp.eq.s32.totalorder %s36, 0
    %s39 = sadd.s32 %s38, 1
    %s40 = scalar_select %p37, %s38, %s39
    %p43 = pneg %p37
    %p44 = scmp.eq.s32.totalorder %s14, 1
    %p45 = por %p43, %p44
    %p46 = scmp.ne.s32.totalorder %s38, %s41
    %p47 = scmp.eq.s32.totalorder %s14, 0
    %p48 = por %p46, %p47
    %p49 = scmp.ne.s32.totalorder %s38, %s41
    %p50 = scmp.eq.s32.totalorder %s19, 1
    %p51 = por %p49, %p50
    %p52 = scmp.ne.s32.totalorder %s41, %s42
    %p53 = scmp.eq.s32.totalorder %s19, 0
    %p54 = por %p52, %p53
    %p55 = scmp.ne.s32.totalorder %s41, %s42
    %p56 = scmp.eq.s32.totalorder %s20, 1
    %p57 = por %p55, %p56
    %p59 = scmp.ne.s32.totalorder %s42, %s58
    %p60 = scmp.eq.s32.totalorder %s20, 0
    %p61 = por %p59, %p60
    %s62 = ssub.s32 %s21, %s33
    %s63 = ssub.s32 %s22, %s29
    %s64 = sor.u32 %s62, %s63
    %p65 = scmp.eq.s32.totalorder %s64, 0
    %s67 = sadd.s32 %s66, 1
    %s68 = scalar_select %p65, %s66, %s67
    %p71 = pneg %p65
    %p72 = scmp.eq.s32.totalorder %s14, 1
    %p73 = por %p71, %p72
    %p74 = scmp.ne.s32.totalorder %s66, %s69
    %p75 = scmp.eq.s32.totalorder %s14, 0
    %p76 = por %p74, %p75
    %p77 = scmp.ne.s32.totalorder %s66, %s69
    %p78 = scmp.eq.s32.totalorder %s19, 1
    %p79 = por %p77, %p78
    %p80 = scmp.ne.s32.totalorder %s69, %s70
    %p81 = scmp.eq.s32.totalorder %s19, 0
    %p82 = por %p80, %p81
    %p83 = scmp.ne.s32.totalorder %s69, %s70
    %p84 = scmp.eq.s32.totalorder %s20, 1
    %p85 = por %p83, %p84
    %p87 = scmp.ne.s32.totalorder %s70, %s86
    %p88 = scmp.eq.s32.totalorder %s20, 0
    %p89 = por %p87, %p88
    %s90 = ssub.s32 %s21, %s33
    %s91 = ssub.s32 %s22, %s29
    %s92 = sor.u32 %s90, %s91
    %p93 = scmp.eq.s32.totalorder %s92, 0
    %s95 = sadd.s32 %s94, 1
    %s96 = scalar_select %p93, %s94, %s95
    %p99 = pneg %p93
    %p100 = scmp.eq.s32.totalorder %s14, 1
    %p101 = por %p99, %p100
    %p102 = scmp.ne.s32.totalorder %s94, %s97
    %p103 = scmp.eq.s32.totalorder %s14, 0
    %p104 = por %p102, %p103
    %p105 = scmp.ne.s32.totalorder %s94, %s97
    %p106 = scmp.eq.s32.totalorder %s19, 1
    %p107 = por %p105, %p106
    %p108 = scmp.ne.s32.totalorder %s97, %s98
    %p109 = scmp.eq.s32.totalorder %s19, 0
    %p110 = por %p108, %p109
    %p111 = scmp.ne.s32.totalorder %s97, %s98
    %p112 = scmp.eq.s32.totalorder %s20, 1
    %p113 = por %p111, %p112
    %p115 = scmp.ne.s32.totalorder %s98, %s114
    %p116 = scmp.eq.s32.totalorder %s20, 0
    %p117 = por %p115, %p116
    %s119 = sadd.s32 %s118, 1
    %p122 = scmp.eq.s32.totalorder %s14, 1
    %p123 = scmp.ne.s32.totalorder %s118, %s120
    %p124 = scmp.eq.s32.totalorder %s14, 0
    %p125 = por %p123, %p124
    %p126 = scmp.ne.s32.totalorder %s118, %s120
    %p127 = scmp.eq.s32.totalorder %s19, 1
    %p128 = por %p126, %p127
    %p129 = scmp.ne.s32.totalorder %s120, %s121
    %p130 = scmp.eq.s32.totalorder %s19, 0
    %p131 = por %p129, %p130
    %p132 = scmp.ne.s32.totalorder %s120, %s121
    %p133 = scmp.eq.s32.totalorder %s20, 1
    %p134 = por %p132, %p133
    %p136 = scmp.ne.s32.totalorder %s121, %s135
    %p137 = scmp.eq.s32.totalorder %s20, 0
    %p138 = por %p136, %p137
    %s140 = sadd.s32 %s139, 1
    %p143 = scmp.eq.s32.totalorder %s14, 1
    %p144 = scmp.ne.s32.totalorder %s139, %s141
    %p145 = scmp.eq.s32.totalorder %s14, 0
    %p146 = por %p144, %p145
    %p147 = scmp.ne.s32.totalorder %s139, %s141
    %p148 = scmp.eq.s32.totalorder %s19, 1
    %p149 = por %p147, %p148
    %p150 = scmp.ne.s32.totalorder %s141, %s142
    %p151 = scmp.eq.s32.totalorder %s19, 0
    %p152 = por %p150, %p151
    %p153 = scmp.ne.s32.totalorder %s141, %s142
    %p154 = scmp.eq.s32.totalorder %s20, 1
    %p155 = por %p153, %p154
    %p157 = scmp.ne.s32.totalorder %s142, %s156
    %p158 = scmp.eq.s32.totalorder %s20, 0
    %p159 = por %p157, %p158
    %s161 = sadd.s32 %s160, 1
    %p164 = scmp.eq.s32.totalorder %s14, 1
    %p165 = scmp.ne.s32.totalorder %s160, %s162
    %p166 = scmp.eq.s32.totalorder %s14, 0
    %p167 = por %p165, %p166
    %p168 = scmp.ne.s32.totalorder %s160, %s162
    %p169 = scmp.eq.s32.totalorder %s19, 1
    %p170 = por %p168, %p169
    %p171 = scmp.ne.s32.totalorder %s162, %s163
    %p172 = scmp.eq.s32.totalorder %s19, 0
    %p173 = por %p171, %p172
    %p174 = scmp.ne.s32.totalorder %s162, %s163
    %p175 = scmp.eq.s32.totalorder %s20, 1
    %p176 = por %p174, %p175
    %p178 = scmp.ne.s32.totalorder %s163, %s177
    %p179 = scmp.eq.s32.totalorder %s20, 0
    %p180 = por %p178, %p179
    %s181 = ssub.s32 %s21, %s33
    %s182 = ssub.s32 %s22, %s29
    %s183 = sor.u32 %s181, %s182
    %p184 = scmp.eq.s32.totalorder %s183, 0
    %s186 = sadd.s32 %s185, 1
    %s187 = scalar_select %p184, %s185, %s186
    %p190 = pneg %p184
    %p191 = scmp.eq.s32.totalorder %s14, 1
    %p192 = por %p190, %p191
    %p193 = scmp.ne.s32.totalorder %s185, %s188
    %p194 = scmp.eq.s32.totalorder %s14, 0
    %p195 = por %p193, %p194
    %p196 = scmp.ne.s32.totalorder %s185, %s188
    %p197 = scmp.eq.s32.totalorder %s19, 1
    %p198 = por %p196, %p197
    %p199 = scmp.ne.s32.totalorder %s188, %s189
    %p200 = scmp.eq.s32.totalorder %s19, 0
    %p201 = por %p199, %p200
    %p202 = scmp.ne.s32.totalorder %s188, %s189
    %p203 = scmp.eq.s32.totalorder %s20, 1
    %p204 = por %p202, %p203
    %p206 = scmp.ne.s32.totalorder %s189, %s205
    %p207 = scmp.eq.s32.totalorder %s20, 0
    %p208 = por %p206, %p207
    %s209 = ssub.s32 %s21, %s33
    %s210 = ssub.s32 %s22, %s29
    %s211 = sor.u32 %s209, %s210
    %p212 = scmp.eq.s32.totalorder %s211, 0
    %s214 = sadd.s32 %s213, 1
    %s215 = scalar_select %p212, %s213, %s214
    %p218 = pneg %p212
    %p219 = scmp.eq.s32.totalorder %s14, 1
    %p220 = por %p218, %p219
    %p221 = scmp.ne.s32.totalorder %s213, %s216
    %p222 = scmp.eq.s32.totalorder %s14, 0
    %p223 = por %p221, %p222
    %p224 = scmp.ne.s32.totalorder %s213, %s216
    %p225 = scmp.eq.s32.totalorder %s19, 1
    %p226 = por %p224, %p225
    %p227 = scmp.ne.s32.totalorder %s216, %s217
    %p228 = scmp.eq.s32.totalorder %s19, 0
    %p229 = por %p227, %p228
    %p230 = scmp.ne.s32.totalorder %s216, %s217
    %p231 = scmp.eq.s32.totalorder %s20, 1
    %p232 = por %p230, %p231
    %p234 = scmp.ne.s32.totalorder %s217, %s233
    %p235 = scmp.eq.s32.totalorder %s20, 0
    %p236 = por %p234, %p235
    %p237 = scmp.le.s32.totalorder 1, %s14
    %p238 = scmp.lt.s32.totalorder %s14, 3
    %p239 = pnand %p237, %p238
    %p240 = pneg %p239
    // Predicated region
    $region9: #{double_conv.4} parent=5 // pred_check
      _
    $region10: #{double_conv.4} parent=5 // pred_check_branch
      %242 = sbr.rel (%p239) target = $region12
    $region11: #{double_conv.4} parent=5 // pred_region
      %s243 = ssub.s32 %s14, 1
      // Predicated region
      $region13: #{double_conv.4} parent=11 // pred_check
        %p244 = pneg %p131
      $region14: #{double_conv.4} parent=11 // pred_check_branch
        %246 = sbr.rel (%p244) target = $region16
      $region15: #{double_conv.4} parent=11 // pred_region
        _
      $region16: #{double_conv.4} parent=11 // pred_fallthru
        _
      // Predicated region
      $region17: #{double_conv.4} parent=11 // pred_check
        %p247 = pneg %p152
      $region18: #{double_conv.4} parent=11 // pred_check_branch
        %249 = sbr.rel (%p247) target = $region20
      $region19: #{double_conv.4} parent=11 // pred_region
        _
      $region20: #{double_conv.4} parent=11 // pred_fallthru
        _
      // Predicated region
      $region21: #{double_conv.4} parent=11 // pred_check
        %p250 = pneg %p173
      $region22: #{double_conv.4} parent=11 // pred_check_branch
        %252 = sbr.rel (%p250) target = $region24
      $region23: #{double_conv.4} parent=11 // pred_region
        _
      $region24: #{double_conv.4} parent=11 // pred_fallthru
        _
    $region12: #{double_conv.4} parent=5 // pred_fallthru
      _
    %p253 = scmp.lt.s32.totalorder %s14, 2
    // Predicated region
    $region25: #{double_conv.4} parent=5 // pred_check
      %p254 = pneg %p253
    $region26: #{double_conv.4} parent=5 // pred_check_branch
      %256 = sbr.rel (%p254) target = $region28
    $region27: #{double_conv.4} parent=5 // pred_region
      // Predicated region
      $region29: #{double_conv.4} parent=27 // pred_check
        %p257 = pneg %p48
      $region30: #{double_conv.4} parent=27 // pred_check_branch
        %259 = sbr.rel (%p257) target = $region32
      $region31: #{double_conv.4} parent=27 // pred_region
        %s260 = smul.u32 16, %s22
        %p261 = scmp.lt.s32.totalorder %s21, 1
        %s262 = scalar_select %p261, %s21, 1
        %p263 = scmp.lt.s32.totalorder %s260, 15
        %s264 = scalar_select %p263, %s260, 15
        %s265 = smul.addr %s264, 2
        %s266 = smul.addr %s262, 32
        %s267 = sadd.s32 %s265, %s266
        %s268 = smul.addr %s267, 4
        %s269 = scalar_lea.vmem %s0, %s268
        %s270 = smul.u32 16, %s22
      $region32: #{double_conv.4} parent=27 // pred_fallthru
        _
      // Predicated region
      $region33: #{double_conv.4} parent=27 // pred_check
        %p271 = pneg %p76
      $region34: #{double_conv.4} parent=27 // pred_check_branch
        %273 = sbr.rel (%p271) target = $region36
      $region35: #{double_conv.4} parent=27 // pred_region
        %p274 = scmp.lt.s32.totalorder %s21, 1
        %s275 = scalar_select %p274, %s21, 1
        %p276 = scmp.lt.s32.totalorder %s22, 0
        %s277 = scalar_select %p276, %s22, 0
        %s278 = smul.addr %s277, 2
        %s279 = smul.addr %s275, 2
        %s280 = sadd.s32 %s278, %s279
        %s281 = smul.addr %s280, 4
        %s282 = scalar_lea.vmem %s1, %s281
      $region36: #{double_conv.4} parent=27 // pred_fallthru
        _
      // Predicated region
      $region37: #{double_conv.4} parent=27 // pred_check
        %p283 = pneg %p104
      $region38: #{double_conv.4} parent=27 // pred_check_branch
        %285 = sbr.rel (%p283) target = $region40
      $region39: #{double_conv.4} parent=27 // pred_region
        %p286 = scmp.lt.s32.totalorder %s21, 1
        %s287 = scalar_select %p286, %s21, 1
        %p288 = scmp.lt.s32.totalorder %s22, 0
        %s289 = scalar_select %p288, %s22, 0
        %s290 = smul.addr %s289, 2
        %s291 = smul.addr %s287, 2
        %s292 = sadd.s32 %s290, %s291
        %s293 = smul.addr %s292, 4
        %s294 = scalar_lea.vmem %s2, %s293
      $region40: #{double_conv.4} parent=27 // pred_fallthru
        _
    $region28: #{double_conv.4} parent=5 // pred_fallthru
      _
    %p295 = scmp.le.s32.totalorder 1, %s14
    %p296 = scmp.lt.s32.totalorder %s14, 3
    %p297 = pnand %p295, %p296
    %p298 = pneg %p297
    // Predicated region
    $region41: #{double_conv.4} parent=5 // pred_check
      _
    $region42: #{double_conv.4} parent=5 // pred_check_branch
      %300 = sbr.rel (%p297) target = $region44
    $region43: #{double_conv.4} parent=5 // pred_region
      %s301 = ssub.s32 %s14, 1
      %s302 = smul.u32 16, %s24
      %p303 = scmp.lt.s32.totalorder %s23, 1
      %s304 = scalar_select %p303, %s23, 1
      %p305 = scmp.lt.s32.totalorder %s302, 15
      %s306 = scalar_select %p305, %s302, 15
      %s307 = smul.addr %s306, 2
      %s308 = smul.addr %s304, 32
      %s309 = sadd.s32 %s307, %s308
      %s310 = smul.addr %s309, 4
      %s311 = scalar_lea.vmem %s0, %s310
      %p312 = pneg %p54
      %p313 = pneg %p51
      %p314 = scmp.lt.s32.totalorder %s23, 1
      %s315 = scalar_select %p314, %s23, 1
      %p316 = scmp.lt.s32.totalorder %s24, 0
      %s317 = scalar_select %p316, %s24, 0
      %s318 = smul.addr %s317, 2
      %s319 = smul.addr %s315, 2
      %s320 = sadd.s32 %s318, %s319
      %s321 = smul.addr %s320, 4
      %s322 = scalar_lea.vmem %s1, %s321
      %p323 = pneg %p82
      %p324 = pneg %p79
      %p325 = scmp.lt.s32.totalorder %s23, 1
      %s326 = scalar_select %p325, %s23, 1
      %p327 = scmp.lt.s32.totalorder %s24, 0
      %s328 = scalar_select %p327, %s24, 0
      %s329 = smul.addr %s328, 2
      %s330 = smul.addr %s326, 2
      %s331 = sadd.s32 %s329, %s330
      %s332 = smul.addr %s331, 4
      %s333 = scalar_lea.vmem %s2, %s332
      %p334 = pneg %p110
      %p335 = pneg %p107
      %p336 = pneg %p131
      %p337 = pneg %p128
      %p338 = pneg %p152
      %p339 = pneg %p149
      %p340 = pneg %p173
      %p341 = pneg %p170
      %p342 = pneg %p201
      %p343 = pneg %p198
      %s344 = smul.u32 16, %s24
      %p345 = scmp.lt.s32.totalorder %s23, 1
      %s346 = scalar_select %p345, %s23, 1
      %p347 = scmp.lt.s32.totalorder %s344, 15
      %s348 = scalar_select %p347, %s344, 15
      %s349 = smul.addr %s348, 2
      %s350 = smul.addr %s346, 32
      %s351 = sadd.s32 %s349, %s350
      %s352 = smul.addr %s351, 4
      %s353 = scalar_lea.vmem %s6, %s352
      %p354 = pneg %p229
      %p355 = pneg %p226
      %p356 = scmp.lt.s32.totalorder %s23, 1
      %s357 = scalar_select %p356, %s23, 1
      %p358 = scmp.lt.s32.totalorder %s24, 0
      %s359 = scalar_select %p358, %s24, 0
      %s360 = sadd.s32 %s359, %s357
      %s361 = smul.addr %s360, 2
      %s362 = scalar_lea.vmem %s7, %s361
      %s363 = smul.u32 16, %s24
      %p364 = scmp.lt.s32.totalorder %s23, 1
      %s365 = scalar_select %p364, %s23, 1
      %p366 = scmp.lt.s32.totalorder %s363, 15
      %s367 = scalar_select %p366, %s363, 15
      %s368 = smul.addr %s367, 2
      %s369 = smul.addr %s365, 32
      %s370 = sadd.s32 %s368, %s369
      %s371 = smul.addr %s370, 4
      %s372 = scalar_lea.vmem %s0, %s371
      %s373 = smul.u32 16, %s24
      %p374 = scmp.lt.s32.totalorder %s23, 1
      %s375 = scalar_select %p374, %s23, 1
      %p376 = scmp.lt.s32.totalorder %s24, 0
      %s377 = scalar_select %p376, %s24, 0
      %s378 = smul.addr %s377, 2
      %s379 = smul.addr %s375, 2
      %s380 = sadd.s32 %s378, %s379
      %s381 = smul.addr %s380, 4
      %s382 = scalar_lea.vmem %s1, %s381
      %p383 = scmp.lt.s32.totalorder %s23, 1
      %s384 = scalar_select %p383, %s23, 1
      %p385 = scmp.lt.s32.totalorder %s24, 0
      %s386 = scalar_select %p385, %s24, 0
      %s387 = smul.addr %s386, 2
      %s388 = smul.addr %s384, 2
      %s389 = sadd.s32 %s387, %s388
      %s390 = smul.addr %s389, 4
      %s391 = scalar_lea.vmem %s2, %s390
      %s392 = smul.u32 16, %s24
      %p393 = scmp.lt.s32.totalorder %s23, 1
      %s394 = scalar_select %p393, %s23, 1
      %p395 = scmp.lt.s32.totalorder %s392, 15
      %s396 = scalar_select %p395, %s392, 15
      %s397 = smul.addr %s396, 2
      %s398 = smul.addr %s394, 32
      %s399 = sadd.s32 %s397, %s398
      %s400 = smul.addr %s399, 4
      %s401 = scalar_lea.vmem %s6, %s400
      %s402 = smul.u32 16, %s24
      %p403 = scmp.lt.s32.totalorder %s23, 1
      %s404 = scalar_select %p403, %s23, 1
      %p405 = scmp.lt.s32.totalorder %s24, 0
      %s406 = scalar_select %p405, %s24, 0
      %s407 = sadd.s32 %s406, %s404
      %s408 = smul.addr %s407, 2
      %s409 = scalar_lea.vmem %s7, %s408
      %v411 = vld [vmem:[%s4] sm:$0x1]
      %v412 = vld [vmem:[%s5] sm:$0x1]
      %v413 = vld [vmem:[%s372] sm:$0xf]
      %v414 = vld [vmem:[%s372 + $0x4] sm:$0xf]
      %v415 = vld [vmem:[%s372 + $0x8] sm:$0xf]
      %v416 = vld [vmem:[%s372 + $0xc] sm:$0xf]
      %v417 = vld [vmem:[%s372 + $0x10] sm:$0xf]
      %v418 = vld [vmem:[%s372 + $0x14] sm:$0xf]
      %v419 = vld [vmem:[%s372 + $0x18] sm:$0xf]
      %v420 = vld [vmem:[%s372 + $0x1c] sm:$0xf]
      %v421 = vld [vmem:[%s372 + $0x20] sm:$0xf]
      %v422 = vld [vmem:[%s372 + $0x24] sm:$0xf]
      %v423 = vld [vmem:[%s372 + $0x28] sm:$0xf]
      %v424 = vld [vmem:[%s372 + $0x2c] sm:$0xf]
      %v425 = vld [vmem:[%s372 + $0x30] sm:$0xf]
      %v426 = vld [vmem:[%s372 + $0x34] sm:$0xf]
      %v427 = vld [vmem:[%s372 + $0x38] sm:$0xf]
      %v428 = vld [vmem:[%s372 + $0x3c] sm:$0xf]
      %v429 = vld [vmem:[%s372 + $0x40] sm:$0xf]
      %v430 = vld [vmem:[%s372 + $0x44] sm:$0xf]
      %v431 = vld [vmem:[%s372 + $0x48] sm:$0xf]
      %v432 = vld [vmem:[%s372 + $0x4c] sm:$0xf]
      %v433 = vld [vmem:[%s372 + $0x50] sm:$0xf]
      %v434 = vld [vmem:[%s372 + $0x54] sm:$0xf]
      %v435 = vld [vmem:[%s372 + $0x58] sm:$0xf]
      %v436 = vld [vmem:[%s372 + $0x5c] sm:$0xf]
      %v437 = vld [vmem:[%s372 + $0x60] sm:$0xf]
      %v438 = vld [vmem:[%s372 + $0x64] sm:$0xf]
      %v439 = vld [vmem:[%s372 + $0x68] sm:$0xf]
      %v440 = vld [vmem:[%s372 + $0x6c] sm:$0xf]
      %v441 = vld [vmem:[%s372 + $0x70] sm:$0xf]
      %v442 = vld [vmem:[%s372 + $0x74] sm:$0xf]
      %v443 = vld [vmem:[%s372 + $0x78] sm:$0xf]
      %v444 = vld [vmem:[%s372 + $0x7c] sm:$0xf]
      %v445 = vunpack.c.l.bf16 %v413
      %v446 = vunpack.c.l.bf16 %v414
      %v447 = vunpack.c.l.bf16 %v415
      %v448 = vunpack.c.l.bf16 %v416
      %v449 = vunpack.c.l.bf16 %v417
      %v450 = vunpack.c.l.bf16 %v418
      %v451 = vunpack.c.l.bf16 %v419
      %v452 = vunpack.c.l.bf16 %v420
      %v453 = vunpack.c.l.bf16 %v421
      %v454 = vunpack.c.l.bf16 %v422
      %v455 = vunpack.c.l.bf16 %v423
      %v456 = vunpack.c.l.bf16 %v424
      %v457 = vunpack.c.l.bf16 %v425
      %v458 = vunpack.c.l.bf16 %v426
      %v459 = vunpack.c.l.bf16 %v427
      %v460 = vunpack.c.l.bf16 %v428
      %v461 = vunpack.c.l.bf16 %v429
      %v462 = vunpack.c.l.bf16 %v430
      %v463 = vunpack.c.l.bf16 %v431
      %v464 = vunpack.c.l.bf16 %v432
      %v465 = vunpack.c.l.bf16 %v433
      %v466 = vunpack.c.l.bf16 %v434
      %v467 = vunpack.c.l.bf16 %v435
      %v468 = vunpack.c.l.bf16 %v436
      %v469 = vunpack.c.l.bf16 %v437
      %v470 = vunpack.c.l.bf16 %v438
      %v471 = vunpack.c.l.bf16 %v439
      %v472 = vunpack.c.l.bf16 %v440
      %v473 = vunpack.c.l.bf16 %v441
      %v474 = vunpack.c.l.bf16 %v442
      %v475 = vunpack.c.l.bf16 %v443
      %v476 = vunpack.c.l.bf16 %v444
      %v478 = vlaneseq
      %v479 = vshrl.u32 %v478, 7
      %v480 = vsub.s32 0, %v479
      %v481 = vrot.slane %v411, %v480
      %v483 = vmul.f32 %v445, %v481
      %v484 = vmul.f32 %v446, %v481
      %v485 = vmul.f32 %v447, %v481
      %v486 = vmul.f32 %v448, %v481
      %v487 = vmul.f32 %v449, %v481
      %v488 = vmul.f32 %v450, %v481
      %v489 = vmul.f32 %v451, %v481
      %v490 = vmul.f32 %v452, %v481
      %v491 = vmul.f32 %v453, %v481
      %v492 = vmul.f32 %v454, %v481
      %v493 = vmul.f32 %v455, %v481
      %v494 = vmul.f32 %v456, %v481
      %v495 = vmul.f32 %v457, %v481
      %v496 = vmul.f32 %v458, %v481
      %v497 = vmul.f32 %v459, %v481
      %v498 = vmul.f32 %v460, %v481
      %v499 = vmul.f32 %v461, %v481
      %v500 = vmul.f32 %v462, %v481
      %v501 = vmul.f32 %v463, %v481
      %v502 = vmul.f32 %v464, %v481
      %v503 = vmul.f32 %v465, %v481
      %v504 = vmul.f32 %v466, %v481
      %v505 = vmul.f32 %v467, %v481
      %v506 = vmul.f32 %v468, %v481
      %v507 = vmul.f32 %v469, %v481
      %v508 = vmul.f32 %v470, %v481
      %v509 = vmul.f32 %v471, %v481
      %v510 = vmul.f32 %v472, %v481
      %v511 = vmul.f32 %v473, %v481
      %v512 = vmul.f32 %v474, %v481
      %v513 = vmul.f32 %v475, %v481
      %v514 = vmul.f32 %v476, %v481
      %v516 = vlaneseq
      %v517 = vshrl.u32 %v516, 7
      %v518 = vsub.s32 0, %v517
      %v519 = vrot.slane %v412, %v518
      %v521 = vadd.f32 %v483, %v519
      %v522 = vadd.f32 %v484, %v519
      %v523 = vadd.f32 %v485, %v519
      %v524 = vadd.f32 %v486, %v519
      %v525 = vadd.f32 %v487, %v519
      %v526 = vadd.f32 %v488, %v519
      %v527 = vadd.f32 %v489, %v519
      %v528 = vadd.f32 %v490, %v519
      %v529 = vadd.f32 %v491, %v519
      %v530 = vadd.f32 %v492, %v519
      %v531 = vadd.f32 %v493, %v519
      %v532 = vadd.f32 %v494, %v519
      %v533 = vadd.f32 %v495, %v519
      %v534 = vadd.f32 %v496, %v519
      %v535 = vadd.f32 %v497, %v519
      %v536 = vadd.f32 %v498, %v519
      %v537 = vadd.f32 %v499, %v519
      %v538 = vadd.f32 %v500, %v519
      %v539 = vadd.f32 %v501, %v519
      %v540 = vadd.f32 %v502, %v519
      %v541 = vadd.f32 %v503, %v519
      %v542 = vadd.f32 %v504, %v519
      %v543 = vadd.f32 %v505, %v519
      %v544 = vadd.f32 %v506, %v519
      %v545 = vadd.f32 %v507, %v519
      %v546 = vadd.f32 %v508, %v519
      %v547 = vadd.f32 %v509, %v519
      %v548 = vadd.f32 %v510, %v519
      %v549 = vadd.f32 %v511, %v519
      %v550 = vadd.f32 %v512, %v519
      %v551 = vadd.f32 %v513, %v519
      %v552 = vadd.f32 %v514, %v519
      %v553 = vmax.f32 %v521, 0.0
      %v554 = vmax.f32 %v522, 0.0
      %v555 = vmax.f32 %v523, 0.0
      %v556 = vmax.f32 %v524, 0.0
      %v557 = vmax.f32 %v525, 0.0
      %v558 = vmax.f32 %v526, 0.0
      %v559 = vmax.f32 %v527, 0.0
      %v560 = vmax.f32 %v528, 0.0
      %v561 = vmax.f32 %v529, 0.0
      %v562 = vmax.f32 %v530, 0.0
      %v563 = vmax.f32 %v531, 0.0
      %v564 = vmax.f32 %v532, 0.0
      %v565 = vmax.f32 %v533, 0.0
      %v566 = vmax.f32 %v534, 0.0
      %v567 = vmax.f32 %v535, 0.0
      %v568 = vmax.f32 %v536, 0.0
      %v569 = vmax.f32 %v537, 0.0
      %v570 = vmax.f32 %v538, 0.0
      %v571 = vmax.f32 %v539, 0.0
      %v572 = vmax.f32 %v540, 0.0
      %v573 = vmax.f32 %v541, 0.0
      %v574 = vmax.f32 %v542, 0.0
      %v575 = vmax.f32 %v543, 0.0
      %v576 = vmax.f32 %v544, 0.0
      %v577 = vmax.f32 %v545, 0.0
      %v578 = vmax.f32 %v546, 0.0
      %v579 = vmax.f32 %v547, 0.0
      %v580 = vmax.f32 %v548, 0.0
      %v581 = vmax.f32 %v549, 0.0
      %v582 = vmax.f32 %v550, 0.0
      %v583 = vmax.f32 %v551, 0.0
      %v584 = vmax.f32 %v552, 0.0
      %v585 = vpack.c.bf16 %v554, %v553
      %v586 = vpack.c.bf16 %v556, %v555
      %v587 = vpack.c.bf16 %v558, %v557
      %v588 = vpack.c.bf16 %v560, %v559
      %v589 = vpack.c.bf16 %v562, %v561
      %v590 = vpack.c.bf16 %v564, %v563
      %v591 = vpack.c.bf16 %v566, %v565
      %v592 = vpack.c.bf16 %v568, %v567
      %v593 = vpack.c.bf16 %v570, %v569
      %v594 = vpack.c.bf16 %v572, %v571
      %v595 = vpack.c.bf16 %v574, %v573
      %v596 = vpack.c.bf16 %v576, %v575
      %v597 = vpack.c.bf16 %v578, %v577
      %v598 = vpack.c.bf16 %v580, %v579
      %v599 = vpack.c.bf16 %v582, %v581
      %v600 = vpack.c.bf16 %v584, %v583
      %v601 = vld [vmem:[%s382] sm:$0xf]
      %v602 = vld [vmem:[%s382 + $0x4] sm:$0xf]
      %v603 = vunpack.c.l.bf16 %v601
      %v604 = vunpack.c.l.bf16 %v602
      %v605 = vmul.f32 %v603, %v481
      %v606 = vmul.f32 %v604, %v481
      %v607 = vadd.f32 %v605, %v519
      %v608 = vadd.f32 %v606, %v519
      %v609 = vmax.f32 %v607, 0.0
      %v610 = vmax.f32 %v608, 0.0
      %v611 = vld [vmem:[%s391] sm:$0xf]
      %v612 = vld [vmem:[%s391 + $0x4] sm:$0xf]
      %v613 = vunpack.c.l.bf16 %v611
      %v614 = vunpack.c.l.bf16 %v612
      %v615 = vmul.f32 %v613, %v481
      %v616 = vmul.f32 %v614, %v481
      %v617 = vadd.f32 %v615, %v519
      %v618 = vadd.f32 %v616, %v519
      %v619 = vmax.f32 %v617, 0.0
      %v620 = vmax.f32 %v618, 0.0
      %p621 = scmp.gt.s32.totalorder %s24, 0
      %s622 = scalar_select %p621, 1, 0
      %s623 = scvt.s32.f32 %s622
      %p624 = scmp.lt.s32.totalorder %s24, 0
      %s625 = scalar_select %p624, 1, 0
      %s626 = scvt.s32.f32 %s625
      %v627 = vstv %s623
      %v628 = vmul.f32 %v609, %v627
      %v629 = vmul.f32 %v610, %v627
      %v630 = vpack.c.bf16 %v629, %v628
      %v631 = vstv %s626
      %v632 = vmul.f32 %v619, %v631
      %v633 = vmul.f32 %v620, %v631
      %v634 = vpack.c.bf16 %v633, %v632
      %v636 = vshrl.u32 %v630, 16
      %v638 = vrot.slane %v636, 7
      %v639 = vshll.u32 %v630, 16
      %v641 = vor.u32 %v638, %v639
      %v643 = vshrl.u32 %v585, 16
      %v645 = vrot.slane %v643, 7
      %v646 = vshll.u32 %v585, 16
      %v648 = vor.u32 %v645, %v646
      %v650 = vshrl.u32 %v586, 16
      %v652 = vrot.slane %v650, 7
      %v653 = vshll.u32 %v586, 16
      %v655 = vor.u32 %v652, %v653
      %v657 = vshrl.u32 %v587, 16
      %v659 = vrot.slane %v657, 7
      %v660 = vshll.u32 %v587, 16
      %v662 = vor.u32 %v659, %v660
      %v664 = vshrl.u32 %v588, 16
      %v666 = vrot.slane %v664, 7
      %v667 = vshll.u32 %v588, 16
      %v669 = vor.u32 %v666, %v667
      %v671 = vshrl.u32 %v589, 16
      %v673 = vrot.slane %v671, 7
      %v674 = vshll.u32 %v589, 16
      %v676 = vor.u32 %v673, %v674
      %v678 = vshrl.u32 %v590, 16
      %v680 = vrot.slane %v678, 7
      %v681 = vshll.u32 %v590, 16
      %v683 = vor.u32 %v680, %v681
      %v685 = vshrl.u32 %v591, 16
      %v687 = vrot.slane %v685, 7
      %v688 = vshll.u32 %v591, 16
      %v690 = vor.u32 %v687, %v688
      %v692 = vshrl.u32 %v592, 16
      %v694 = vrot.slane %v692, 7
      %v695 = vshll.u32 %v592, 16
      %v697 = vor.u32 %v694, %v695
      %v699 = vshrl.u32 %v593, 16
      %v701 = vrot.slane %v699, 7
      %v702 = vshll.u32 %v593, 16
      %v704 = vor.u32 %v701, %v702
      %v706 = vshrl.u32 %v594, 16
      %v708 = vrot.slane %v706, 7
      %v709 = vshll.u32 %v594, 16
      %v711 = vor.u32 %v708, %v709
      %v713 = vshrl.u32 %v595, 16
      %v715 = vrot.slane %v713, 7
      %v716 = vshll.u32 %v595, 16
      %v718 = vor.u32 %v715, %v716
      %v720 = vshrl.u32 %v596, 16
      %v722 = vrot.slane %v720, 7
      %v723 = vshll.u32 %v596, 16
      %v725 = vor.u32 %v722, %v723
      %v727 = vshrl.u32 %v597, 16
      %v729 = vrot.slane %v727, 7
      %v730 = vshll.u32 %v597, 16
      %v732 = vor.u32 %v729, %v730
      %v734 = vshrl.u32 %v598, 16
      %v736 = vrot.slane %v734, 7
      %v737 = vshll.u32 %v598, 16
      %v739 = vor.u32 %v736, %v737
      %v741 = vshrl.u32 %v599, 16
      %v743 = vrot.slane %v741, 7
      %v744 = vshll.u32 %v599, 16
      %v746 = vor.u32 %v743, %v744
      %v748 = vshrl.u32 %v600, 16
      %v750 = vrot.slane %v748, 7
      %v751 = vshll.u32 %v600, 16
      %v753 = vor.u32 %v750, %v751
      %v755 = vshrl.u32 %v634, 16
      %v757 = vrot.slane %v755, 7
      %v758 = vshll.u32 %v634, 16
      %v760 = vor.u32 %v757, %v758
      %vm797 = vcmask 1040384
      %vm798 = vsmask.f32 256
      %vm799 = vmand %vm797, %vm798
      %v800 = vsel %vm799, 0, %v641
      %v801 = vsel %vm799, 0, %v648
      %v802 = vsel %vm799, 0, %v655
      %v803 = vsel %vm799, 0, %v662
      %v804 = vsel %vm799, 0, %v669
      %v805 = vsel %vm799, 0, %v676
      %v806 = vsel %vm799, 0, %v683
      %v807 = vsel %vm799, 0, %v690
      %v808 = vsel %vm799, 0, %v697
      %v809 = vsel %vm799, 0, %v704
      %v810 = vsel %vm799, 0, %v711
      %v811 = vsel %vm799, 0, %v718
      %v812 = vsel %vm799, 0, %v725
      %v813 = vsel %vm799, 0, %v732
      %v814 = vsel %vm799, 0, %v739
      %v815 = vsel %vm799, 0, %v746
      %v816 = vsel %vm799, 0, %v753
      %v817 = vsel %vm799, 0, %v760
      %v818 = vsel %vm799, %v638, 0
      %v819 = vsel %vm799, %v645, 0
      %v820 = vsel %vm799, %v652, 0
      %v821 = vsel %vm799, %v659, 0
      %v822 = vsel %vm799, %v666, 0
      %v823 = vsel %vm799, %v673, 0
      %v824 = vsel %vm799, %v680, 0
      %v825 = vsel %vm799, %v687, 0
      %v826 = vsel %vm799, %v694, 0
      %v827 = vsel %vm799, %v701, 0
      %v828 = vsel %vm799, %v708, 0
      %v829 = vsel %vm799, %v715, 0
      %v830 = vsel %vm799, %v722, 0
      %v831 = vsel %vm799, %v729, 0
      %v832 = vsel %vm799, %v736, 0
      %v833 = vsel %vm799, %v743, 0
      %v834 = vsel %vm799, %v750, 0
      %v835 = vsel %vm799, %v757, 0
      %vm836 = vsmask.f32 7424
      %v838 = vshrl.u32 %v800, 16
      %v840 = vshll.u32 %v800, 16
      %v842 = vrot.slane %v840, 1
      %v843 = vor.u32 %v838, %v842
      %v845 = vshll.u32 %v818, 16
      %v847 = vrot.slane %v845, 1
      %v848 = vsel %vm836, %v843, %v847
      %v850 = vshrl.u32 %v801, 16
      %v852 = vshll.u32 %v801, 16
      %v854 = vrot.slane %v852, 1
      %v855 = vor.u32 %v850, %v854
      %v857 = vshll.u32 %v819, 16
      %v859 = vrot.slane %v857, 1
      %v860 = vsel %vm836, %v855, %v859
      %v862 = vshrl.u32 %v802, 16
      %v864 = vshll.u32 %v802, 16
      %v866 = vrot.slane %v864, 1
      %v867 = vor.u32 %v862, %v866
      %v869 = vshll.u32 %v820, 16
      %v871 = vrot.slane %v869, 1
      %v872 = vsel %vm836, %v867, %v871
      %v874 = vshrl.u32 %v803, 16
      %v876 = vshll.u32 %v803, 16
      %v878 = vrot.slane %v876, 1
      %v879 = vor.u32 %v874, %v878
      %v881 = vshll.u32 %v821, 16
      %v883 = vrot.slane %v881, 1
      %v884 = vsel %vm836, %v879, %v883
      %v886 = vshrl.u32 %v804, 16
      %v888 = vshll.u32 %v804, 16
      %v890 = vrot.slane %v888, 1
      %v891 = vor.u32 %v886, %v890
      %v893 = vshll.u32 %v822, 16
      %v895 = vrot.slane %v893, 1
      %v896 = vsel %vm836, %v891, %v895
      %v898 = vshrl.u32 %v805, 16
      %v900 = vshll.u32 %v805, 16
      %v902 = vrot.slane %v900, 1
      %v903 = vor.u32 %v898, %v902
      %v905 = vshll.u32 %v823, 16
      %v907 = vrot.slane %v905, 1
      %v908 = vsel %vm836, %v903, %v907
      %v910 = vshrl.u32 %v806, 16
      %v912 = vshll.u32 %v806, 16
      %v914 = vrot.slane %v912, 1
      %v915 = vor.u32 %v910, %v914
      %v917 = vshll.u32 %v824, 16
      %v919 = vrot.slane %v917, 1
      %v920 = vsel %vm836, %v915, %v919
      %v922 = vshrl.u32 %v807, 16
      %v924 = vshll.u32 %v807, 16
      %v926 = vrot.slane %v924, 1
      %v927 = vor.u32 %v922, %v926
      %v929 = vshll.u32 %v825, 16
      %v931 = vrot.slane %v929, 1
      %v932 = vsel %vm836, %v927, %v931
      %v934 = vshrl.u32 %v808, 16
      %v936 = vshll.u32 %v808, 16
      %v938 = vrot.slane %v936, 1
      %v939 = vor.u32 %v934, %v938
      %v941 = vshll.u32 %v826, 16
      %v943 = vrot.slane %v941, 1
      %v944 = vsel %vm836, %v939, %v943
      %v946 = vshrl.u32 %v809, 16
      %v948 = vshll.u32 %v809, 16
      %v950 = vrot.slane %v948, 1
      %v951 = vor.u32 %v946, %v950
      %v953 = vshll.u32 %v827, 16
      %v955 = vrot.slane %v953, 1
      %v956 = vsel %vm836, %v951, %v955
      %v958 = vshrl.u32 %v810, 16
      %v960 = vshll.u32 %v810, 16
      %v962 = vrot.slane %v960, 1
      %v963 = vor.u32 %v958, %v962
      %v965 = vshll.u32 %v828, 16
      %v967 = vrot.slane %v965, 1
      %v968 = vsel %vm836, %v963, %v967
      %v970 = vshrl.u32 %v811, 16
      %v972 = vshll.u32 %v811, 16
      %v974 = vrot.slane %v972, 1
      %v975 = vor.u32 %v970, %v974
      %v977 = vshll.u32 %v829, 16
      %v979 = vrot.slane %v977, 1
      %v980 = vsel %vm836, %v975, %v979
      %v982 = vshrl.u32 %v812, 16
      %v984 = vshll.u32 %v812, 16
      %v986 = vrot.slane %v984, 1
      %v987 = vor.u32 %v982, %v986
      %v989 = vshll.u32 %v830, 16
      %v991 = vrot.slane %v989, 1
      %v992 = vsel %vm836, %v987, %v991
      %v994 = vshrl.u32 %v813, 16
      %v996 = vshll.u32 %v813, 16
      %v998 = vrot.slane %v996, 1
      %v999 = vor.u32 %v994, %v998
      %v1001 = vshll.u32 %v831, 16
      %v1003 = vrot.slane %v1001, 1
      %v1004 = vsel %vm836, %v999, %v1003
      %v1006 = vshrl.u32 %v814, 16
      %v1008 = vshll.u32 %v814, 16
      %v1010 = vrot.slane %v1008, 1
      %v1011 = vor.u32 %v1006, %v1010
      %v1013 = vshll.u32 %v832, 16
      %v1015 = vrot.slane %v1013, 1
      %v1016 = vsel %vm836, %v1011, %v1015
      %v1018 = vshrl.u32 %v815, 16
      %v1020 = vshll.u32 %v815, 16
      %v1022 = vrot.slane %v1020, 1
      %v1023 = vor.u32 %v1018, %v1022
      %v1025 = vshll.u32 %v833, 16
      %v1027 = vrot.slane %v1025, 1
      %v1028 = vsel %vm836, %v1023, %v1027
      %vm1077 = vcmask 1046528
      %v1078 = vrot.slane %v800, 1
      %v1079 = vrot.slane %v818, 1
      %v1080 = vsel %vm1077, %v1078, %v1079
      %v1081 = vrot.slane %v801, 1
      %v1082 = vrot.slane %v819, 1
      %v1083 = vsel %vm1077, %v1081, %v1082
      %v1084 = vrot.slane %v802, 1
      %v1085 = vrot.slane %v820, 1
      %v1086 = vsel %vm1077, %v1084, %v1085
      %v1087 = vrot.slane %v803, 1
      %v1088 = vrot.slane %v821, 1
      %v1089 = vsel %vm1077, %v1087, %v1088
      %v1090 = vrot.slane %v804, 1
      %v1091 = vrot.slane %v822, 1
      %v1092 = vsel %vm1077, %v1090, %v1091
      %v1093 = vrot.slane %v805, 1
      %v1094 = vrot.slane %v823, 1
      %v1095 = vsel %vm1077, %v1093, %v1094
      %v1096 = vrot.slane %v806, 1
      %v1097 = vrot.slane %v824, 1
      %v1098 = vsel %vm1077, %v1096, %v1097
      %v1099 = vrot.slane %v807, 1
      %v1100 = vrot.slane %v825, 1
      %v1101 = vsel %vm1077, %v1099, %v1100
      %v1102 = vrot.slane %v808, 1
      %v1103 = vrot.slane %v826, 1
      %v1104 = vsel %vm1077, %v1102, %v1103
      %v1105 = vrot.slane %v809, 1
      %v1106 = vrot.slane %v827, 1
      %v1107 = vsel %vm1077, %v1105, %v1106
      %v1108 = vrot.slane %v810, 1
      %v1109 = vrot.slane %v828, 1
      %v1110 = vsel %vm1077, %v1108, %v1109
      %v1111 = vrot.slane %v811, 1
      %v1112 = vrot.slane %v829, 1
      %v1113 = vsel %vm1077, %v1111, %v1112
      %v1114 = vrot.slane %v812, 1
      %v1115 = vrot.slane %v830, 1
      %v1116 = vsel %vm1077, %v1114, %v1115
      %v1117 = vrot.slane %v813, 1
      %v1118 = vrot.slane %v831, 1
      %v1119 = vsel %vm1077, %v1117, %v1118
      %v1120 = vrot.slane %v814, 1
      %v1121 = vrot.slane %v832, 1
      %v1122 = vsel %vm1077, %v1120, %v1121
      %v1123 = vrot.slane %v815, 1
      %v1124 = vrot.slane %v833, 1
      %v1125 = vsel %vm1077, %v1123, %v1124
      %v1142 = vld [vmem:[%s3] sm:$0xf]
      %v1143 = vld [vmem:[%s3 + $0x4] sm:$0xf]
      %v1144 = vld [vmem:[%s3 + $0x8] sm:$0xf]
      %v1145 = vld [vmem:[%s3 + $0xc] sm:$0xf]
      %v1146 = vld [vmem:[%s3 + $0x10] sm:$0xf]
      %v1147 = vld [vmem:[%s3 + $0x14] sm:$0xf]
      %v1148 = vld [vmem:[%s3 + $0x18] sm:$0xf]
      %v1149 = vld [vmem:[%s3 + $0x1c] sm:$0xf]
      %v1150 = vld [vmem:[%s3 + $0x20] sm:$0xf]
      %v1151 = vld [vmem:[%s3 + $0x24] sm:$0xf]
      %v1152 = vld [vmem:[%s3 + $0x28] sm:$0xf]
      %v1153 = vld [vmem:[%s3 + $0x2c] sm:$0xf]
      %v1154 = vld [vmem:[%s3 + $0x30] sm:$0xf]
      %v1155 = vld [vmem:[%s3 + $0x34] sm:$0xf]
      %v1156 = vld [vmem:[%s3 + $0x38] sm:$0xf]
      %v1157 = vld [vmem:[%s3 + $0x3c] sm:$0xf]
      %v1158 = vld [vmem:[%s3 + $0x40] sm:$0xf]
      %v1159 = vld [vmem:[%s3 + $0x44] sm:$0xf]
      %v1160 = vld [vmem:[%s3 + $0x48] sm:$0xf]
      %v1161 = vld [vmem:[%s3 + $0x4c] sm:$0xf]
      %v1162 = vld [vmem:[%s3 + $0x50] sm:$0xf]
      %v1163 = vld [vmem:[%s3 + $0x54] sm:$0xf]
      %v1164 = vld [vmem:[%s3 + $0x58] sm:$0xf]
      %v1165 = vld [vmem:[%s3 + $0x5c] sm:$0xf]
      %v1166 = vld [vmem:[%s3 + $0x60] sm:$0xf]
      %v1167 = vld [vmem:[%s3 + $0x64] sm:$0xf]
      %v1168 = vld [vmem:[%s3 + $0x68] sm:$0xf]
      %v1169 = vld [vmem:[%s3 + $0x6c] sm:$0xf]
      %v1170 = vld [vmem:[%s3 + $0x70] sm:$0xf]
      %v1171 = vld [vmem:[%s3 + $0x74] sm:$0xf]
      %v1172 = vld [vmem:[%s3 + $0x78] sm:$0xf]
      %v1173 = vld [vmem:[%s3 + $0x7c] sm:$0xf]
      %v1174 = vld [vmem:[%s3 + $0x80] sm:$0xf]
      %v1175 = vld [vmem:[%s3 + $0x84] sm:$0xf]
      %v1176 = vld [vmem:[%s3 + $0x88] sm:$0xf]
      %v1177 = vld [vmem:[%s3 + $0x8c] sm:$0xf]
      %v1178 = vld [vmem:[%s3 + $0x90] sm:$0xf]
      %v1179 = vld [vmem:[%s3 + $0x94] sm:$0xf]
      %v1180 = vld [vmem:[%s3 + $0x98] sm:$0xf]
      %v1181 = vld [vmem:[%s3 + $0x9c] sm:$0xf]
      %v1182 = vld [vmem:[%s3 + $0xa0] sm:$0xf]
      %v1183 = vld [vmem:[%s3 + $0xa4] sm:$0xf]
      %v1184 = vld [vmem:[%s3 + $0xa8] sm:$0xf]
      %v1185 = vld [vmem:[%s3 + $0xac] sm:$0xf]
      %v1186 = vld [vmem:[%s3 + $0xb0] sm:$0xf]
      %v1187 = vld [vmem:[%s3 + $0xb4] sm:$0xf]
      %v1188 = vld [vmem:[%s3 + $0xb8] sm:$0xf]
      %v1189 = vld [vmem:[%s3 + $0xbc] sm:$0xf]
      %v1191 = vshrl.u32 %v816, 16
      %v1193 = vshll.u32 %v816, 16
      %v1195 = vrot.slane %v1193, 1
      %v1196 = vor.u32 %v1191, %v1195
      %v1198 = vshll.u32 %v834, 16
      %v1200 = vrot.slane %v1198, 1
      %v1201 = vsel %vm836, %v1196, %v1200
      %v1205 = vrot.slane %v816, 1
      %v1206 = vrot.slane %v834, 1
      %v1207 = vsel %vm1077, %v1205, %v1206
      %s1209 = scalar_lea.vmem %s3, 192
      %v1210 = vld [vmem:[%s1209] sm:$0xf]
      %v1211 = vld [vmem:[%s1209 + $0x4] sm:$0xf]
      %v1212 = vld [vmem:[%s1209 + $0x8] sm:$0xf]
      %v1213 = vld [vmem:[%s1209 + $0xc] sm:$0xf]
      %v1214 = vld [vmem:[%s1209 + $0x10] sm:$0xf]
      %v1215 = vld [vmem:[%s1209 + $0x14] sm:$0xf]
      %v1216 = vld [vmem:[%s1209 + $0x18] sm:$0xf]
      %v1217 = vld [vmem:[%s1209 + $0x1c] sm:$0xf]
      %v1218 = vld [vmem:[%s1209 + $0x20] sm:$0xf]
      %v1219 = vld [vmem:[%s1209 + $0x24] sm:$0xf]
      %v1220 = vld [vmem:[%s1209 + $0x28] sm:$0xf]
      %v1221 = vld [vmem:[%s1209 + $0x2c] sm:$0xf]
      %v1222 = vld [vmem:[%s1209 + $0x30] sm:$0xf]
      %v1223 = vld [vmem:[%s1209 + $0x34] sm:$0xf]
      %v1224 = vld [vmem:[%s1209 + $0x38] sm:$0xf]
      %v1225 = vld [vmem:[%s1209 + $0x3c] sm:$0xf]
      %v1226 = vld [vmem:[%s1209 + $0x40] sm:$0xf]
      %v1227 = vld [vmem:[%s1209 + $0x44] sm:$0xf]
      %v1228 = vld [vmem:[%s1209 + $0x48] sm:$0xf]
      %v1229 = vld [vmem:[%s1209 + $0x4c] sm:$0xf]
      %v1230 = vld [vmem:[%s1209 + $0x50] sm:$0xf]
      %v1231 = vld [vmem:[%s1209 + $0x54] sm:$0xf]
      %v1232 = vld [vmem:[%s1209 + $0x58] sm:$0xf]
      %v1233 = vld [vmem:[%s1209 + $0x5c] sm:$0xf]
      %v1234 = vld [vmem:[%s1209 + $0x60] sm:$0xf]
      %v1235 = vld [vmem:[%s1209 + $0x64] sm:$0xf]
      %v1236 = vld [vmem:[%s1209 + $0x68] sm:$0xf]
      %v1237 = vld [vmem:[%s1209 + $0x6c] sm:$0xf]
      %v1238 = vld [vmem:[%s1209 + $0x70] sm:$0xf]
      %v1239 = vld [vmem:[%s1209 + $0x74] sm:$0xf]
      %v1240 = vld [vmem:[%s1209 + $0x78] sm:$0xf]
      %v1241 = vld [vmem:[%s1209 + $0x7c] sm:$0xf]
      %v1242 = vld [vmem:[%s1209 + $0x80] sm:$0xf]
      %v1243 = vld [vmem:[%s1209 + $0x84] sm:$0xf]
      %v1244 = vld [vmem:[%s1209 + $0x88] sm:$0xf]
      %v1245 = vld [vmem:[%s1209 + $0x8c] sm:$0xf]
      %v1246 = vld [vmem:[%s1209 + $0x90] sm:$0xf]
      %v1247 = vld [vmem:[%s1209 + $0x94] sm:$0xf]
      %v1248 = vld [vmem:[%s1209 + $0x98] sm:$0xf]
      %v1249 = vld [vmem:[%s1209 + $0x9c] sm:$0xf]
      %v1250 = vld [vmem:[%s1209 + $0xa0] sm:$0xf]
      %v1251 = vld [vmem:[%s1209 + $0xa4] sm:$0xf]
      %v1252 = vld [vmem:[%s1209 + $0xa8] sm:$0xf]
      %v1253 = vld [vmem:[%s1209 + $0xac] sm:$0xf]
      %v1254 = vld [vmem:[%s1209 + $0xb0] sm:$0xf]
      %v1255 = vld [vmem:[%s1209 + $0xb4] sm:$0xf]
      %v1256 = vld [vmem:[%s1209 + $0xb8] sm:$0xf]
      %v1257 = vld [vmem:[%s1209 + $0xbc] sm:$0xf]
      %v1306 = vunpack.c.l.b16 %v1210
      %v1307 = vunpack.c.l.b16 %v1211
      %v1308 = vunpack.c.l.b16 %v1212
      %v1309 = vunpack.c.l.b16 %v1213
      %v1310 = vunpack.c.l.b16 %v1214
      %v1311 = vunpack.c.l.b16 %v1215
      %v1312 = vunpack.c.l.b16 %v1216
      %v1313 = vunpack.c.l.b16 %v1217
      %v1314 = vunpack.c.l.b16 %v1218
      %v1315 = vunpack.c.l.b16 %v1219
      %v1316 = vunpack.c.l.b16 %v1220
      %v1317 = vunpack.c.l.b16 %v1221
      %v1318 = vunpack.c.l.b16 %v1222
      %v1319 = vunpack.c.l.b16 %v1223
      %v1320 = vunpack.c.l.b16 %v1224
      %v1321 = vunpack.c.l.b16 %v1225
      %v1322 = vunpack.c.l.b16 %v1226
      %v1323 = vunpack.c.l.b16 %v1227
      %v1324 = vunpack.c.l.b16 %v1228
      %v1325 = vunpack.c.l.b16 %v1229
      %v1326 = vunpack.c.l.b16 %v1230
      %v1327 = vunpack.c.l.b16 %v1231
      %v1328 = vunpack.c.l.b16 %v1232
      %v1329 = vunpack.c.l.b16 %v1233
      %v1330 = vunpack.c.l.b16 %v1234
      %v1331 = vunpack.c.l.b16 %v1235
      %v1332 = vunpack.c.l.b16 %v1236
      %v1333 = vunpack.c.l.b16 %v1237
      %v1334 = vunpack.c.l.b16 %v1238
      %v1335 = vunpack.c.l.b16 %v1239
      %v1336 = vunpack.c.l.b16 %v1240
      %v1337 = vunpack.c.l.b16 %v1241
      %v1338 = vunpack.c.l.b16 %v1242
      %v1339 = vunpack.c.l.b16 %v1243
      %v1340 = vunpack.c.l.b16 %v1244
      %v1341 = vunpack.c.l.b16 %v1245
      %v1342 = vunpack.c.l.b16 %v1246
      %v1343 = vunpack.c.l.b16 %v1247
      %v1344 = vunpack.c.l.b16 %v1248
      %v1345 = vunpack.c.l.b16 %v1249
      %v1346 = vunpack.c.l.b16 %v1250
      %v1347 = vunpack.c.l.b16 %v1251
      %v1348 = vunpack.c.l.b16 %v1252
      %v1349 = vunpack.c.l.b16 %v1253
      %v1350 = vunpack.c.l.b16 %v1254
      %v1351 = vunpack.c.l.b16 %v1255
      %v1352 = vunpack.c.l.b16 %v1256
      %v1353 = vunpack.c.l.b16 %v1257
      %v1354 = vpack.c.b16 %v1307, %v1306
      %v1355 = vpack.c.b16 %v1309, %v1308
      %v1356 = vpack.c.b16 %v1311, %v1310
      %v1357 = vpack.c.b16 %v1313, %v1312
      %v1358 = vpack.c.b16 %v1315, %v1314
      %v1359 = vpack.c.b16 %v1317, %v1316
      %v1360 = vpack.c.b16 %v1319, %v1318
      %v1361 = vpack.c.b16 %v1321, %v1320
      %v1362 = vpack.c.b16 %v1323, %v1322
      %v1363 = vpack.c.b16 %v1325, %v1324
      %v1364 = vpack.c.b16 %v1327, %v1326
      %v1365 = vpack.c.b16 %v1329, %v1328
      %v1366 = vpack.c.b16 %v1331, %v1330
      %v1367 = vpack.c.b16 %v1333, %v1332
      %v1368 = vpack.c.b16 %v1335, %v1334
      %v1369 = vpack.c.b16 %v1337, %v1336
      %v1370 = vpack.c.b16 %v1339, %v1338
      %v1371 = vpack.c.b16 %v1341, %v1340
      %v1372 = vpack.c.b16 %v1343, %v1342
      %v1373 = vpack.c.b16 %v1345, %v1344
      %v1374 = vpack.c.b16 %v1347, %v1346
      %v1375 = vpack.c.b16 %v1349, %v1348
      %v1376 = vpack.c.b16 %v1351, %v1350
      %v1377 = vpack.c.b16 %v1353, %v1352
      %1402 = vmatprep.subr.bf16.mxu0 0
      %1403 = vmatpush1.bf16.msra.mxu0 %v1361
      %1404 = vmatprep.subr.bf16.mxu0 0
      %1405 = vmatpush1.bf16.msra.mxu0 %v1360
      %1406 = vmatprep.subr.bf16.mxu0 0
      %1407 = vmatpush1.bf16.msra.mxu0 %v1359
      %1408 = vmatprep.subr.bf16.mxu0 0
      %1409 = vmatpush1.bf16.msra.mxu0 %v1358
      %1410 = vmatprep.subr.bf16.mxu0 0
      %1411 = vmatpush1.bf16.msra.mxu0 %v1357
      %1412 = vmatprep.subr.bf16.mxu0 0
      %1413 = vmatpush1.bf16.msra.mxu0 %v1356
      %1414 = vmatprep.subr.bf16.mxu0 0
      %1415 = vmatpush1.bf16.msra.mxu0 %v1355
      %1416 = vmatprep.subr.bf16.mxu0 0
      %1417 = vmatpush1.bf16.msra.mxu0 %v1354
      %1418 = vmatprep.subr.bf16.mxu0 0
      %1419 = vmatpush2.bf16.msra.mxu0 %v1369
      %1420 = vmatprep.subr.bf16.mxu0 0
      %1421 = vmatpush2.bf16.msra.mxu0 %v1368
      %1422 = vmatprep.subr.bf16.mxu0 0
      %1423 = vmatpush2.bf16.msra.mxu0 %v1367
      %1424 = vmatprep.subr.bf16.mxu0 0
      %1425 = vmatpush2.bf16.msra.mxu0 %v1366
      %1426 = vmatprep.subr.bf16.mxu0 0
      %1427 = vmatpush2.bf16.msra.mxu0 %v1365
      %1428 = vmatprep.subr.bf16.mxu0 0
      %1429 = vmatpush2.bf16.msra.mxu0 %v1364
      %1430 = vmatprep.subr.bf16.mxu0 0
      %1431 = vmatpush2.bf16.msra.mxu0 %v1363
      %1432 = vmatprep.subr.bf16.mxu0 0
      %1433 = vmatpush2.bf16.msra.mxu0 %v1362
      %1434 = vmatprep.mubr.bf16.mxu0 %v860
      %1435 = vmatmul.mubr.bf16.gmra.mxu0 %v801
      %v1436 = vpop.f32.mrf.mxu0
      %v1437 = vadd.f32 0.0, %v1436
      %v1438 = vpop.f32.mrf.mxu0
      %v1439 = vpop.f32.mrf.mxu0
      %v1440 = vadd.f32 0.0, %v1439
      %v1441 = vpop.f32.mrf.mxu0
      %1442 = vmatprep.mubr.bf16.mxu0 %v872
      %1443 = vmatmul.mubr.bf16.gmra.mxu0 %v802
      %v1444 = vpop.f32.mrf.mxu0
      %v1445 = vadd.f32 0.0, %v1444
      %v1446 = vpop.f32.mrf.mxu0
      %v1447 = vpop.f32.mrf.mxu0
      %v1448 = vadd.f32 0.0, %v1447
      %v1449 = vpop.f32.mrf.mxu0
      %1450 = vmatprep.mubr.bf16.mxu0 %v884
      %1451 = vmatmul.mubr.bf16.gmra.mxu0 %v803
      %v1452 = vpop.f32.mrf.mxu0
      %v1453 = vadd.f32 0.0, %v1452
      %v1454 = vpop.f32.mrf.mxu0
      %v1455 = vpop.f32.mrf.mxu0
      %v1456 = vadd.f32 0.0, %v1455
      %v1457 = vpop.f32.mrf.mxu0
      %1458 = vmatprep.mubr.bf16.mxu0 %v896
      %1459 = vmatmul.mubr.bf16.gmra.mxu0 %v804
      %v1460 = vpop.f32.mrf.mxu0
      %v1461 = vadd.f32 0.0, %v1460
      %v1462 = vpop.f32.mrf.mxu0
      %v1463 = vpop.f32.mrf.mxu0
      %v1464 = vadd.f32 0.0, %v1463
      %v1465 = vpop.f32.mrf.mxu0
      %1466 = vmatprep.mubr.bf16.mxu0 %v908
      %1467 = vmatmul.mubr.bf16.gmra.mxu0 %v805
      %v1468 = vpop.f32.mrf.mxu0
      %v1469 = vadd.f32 0.0, %v1468
      %v1470 = vpop.f32.mrf.mxu0
      %v1471 = vpop.f32.mrf.mxu0
      %v1472 = vadd.f32 0.0, %v1471
      %v1473 = vpop.f32.mrf.mxu0
      %1474 = vmatprep.mubr.bf16.mxu0 %v920
      %1475 = vmatmul.mubr.bf16.gmra.mxu0 %v806
      %v1476 = vpop.f32.mrf.mxu0
      %v1477 = vadd.f32 0.0, %v1476
      %v1478 = vpop.f32.mrf.mxu0
      %v1479 = vpop.f32.mrf.mxu0
      %v1480 = vadd.f32 0.0, %v1479
      %v1481 = vpop.f32.mrf.mxu0
      %1482 = vmatprep.mubr.bf16.mxu0 %v932
      %1483 = vmatmul.mubr.bf16.gmra.mxu0 %v807
      %v1484 = vpop.f32.mrf.mxu0
      %v1485 = vadd.f32 0.0, %v1484
      %v1486 = vpop.f32.mrf.mxu0
      %v1487 = vpop.f32.mrf.mxu0
      %v1488 = vadd.f32 0.0, %v1487
      %v1489 = vpop.f32.mrf.mxu0
      %1490 = vmatprep.mubr.bf16.mxu0 %v944
      %1491 = vmatmul.mubr.bf16.gmra.mxu0 %v808
      %v1492 = vpop.f32.mrf.mxu0
      %v1493 = vadd.f32 0.0, %v1492
      %v1494 = vpop.f32.mrf.mxu0
      %v1495 = vpop.f32.mrf.mxu0
      %v1496 = vadd.f32 0.0, %v1495
      %v1497 = vpop.f32.mrf.mxu0
      %1498 = vmatprep.mubr.bf16.mxu0 %v956
      %1499 = vmatmul.mubr.bf16.gmra.mxu0 %v809
      %v1500 = vpop.f32.mrf.mxu0
      %v1501 = vadd.f32 0.0, %v1500
      %v1502 = vpop.f32.mrf.mxu0
      %v1503 = vpop.f32.mrf.mxu0
      %v1504 = vadd.f32 0.0, %v1503
      %v1505 = vpop.f32.mrf.mxu0
      %1506 = vmatprep.mubr.bf16.mxu0 %v968
      %1507 = vmatmul.mubr.bf16.gmra.mxu0 %v810
      %v1508 = vpop.f32.mrf.mxu0
      %v1509 = vadd.f32 0.0, %v1508
      %v1510 = vpop.f32.mrf.mxu0
      %v1511 = vpop.f32.mrf.mxu0
      %v1512 = vadd.f32 0.0, %v1511
      %v1513 = vpop.f32.mrf.mxu0
      %1514 = vmatprep.mubr.bf16.mxu0 %v980
      %1515 = vmatmul.mubr.bf16.gmra.mxu0 %v811
      %v1516 = vpop.f32.mrf.mxu0
      %v1517 = vadd.f32 0.0, %v1516
      %v1518 = vpop.f32.mrf.mxu0
      %v1519 = vpop.f32.mrf.mxu0
      %v1520 = vadd.f32 0.0, %v1519
      %v1521 = vpop.f32.mrf.mxu0
      %1522 = vmatprep.mubr.bf16.mxu0 %v992
      %1523 = vmatmul.mubr.bf16.gmra.mxu0 %v812
      %v1524 = vpop.f32.mrf.mxu0
      %v1525 = vadd.f32 0.0, %v1524
      %v1526 = vpop.f32.mrf.mxu0
      %v1527 = vpop.f32.mrf.mxu0
      %v1528 = vadd.f32 0.0, %v1527
      %v1529 = vpop.f32.mrf.mxu0
      %1530 = vmatprep.mubr.bf16.mxu0 %v1004
      %1531 = vmatmul.mubr.bf16.gmra.mxu0 %v813
      %v1532 = vpop.f32.mrf.mxu0
      %v1533 = vadd.f32 0.0, %v1532
      %v1534 = vpop.f32.mrf.mxu0
      %v1535 = vpop.f32.mrf.mxu0
      %v1536 = vadd.f32 0.0, %v1535
      %v1537 = vpop.f32.mrf.mxu0
      %1538 = vmatprep.mubr.bf16.mxu0 %v1016
      %1539 = vmatmul.mubr.bf16.gmra.mxu0 %v814
      %v1540 = vpop.f32.mrf.mxu0
      %v1541 = vadd.f32 0.0, %v1540
      %v1542 = vpop.f32.mrf.mxu0
      %v1543 = vpop.f32.mrf.mxu0
      %v1544 = vadd.f32 0.0, %v1543
      %v1545 = vpop.f32.mrf.mxu0
      %1546 = vmatprep.mubr.bf16.mxu0 %v1028
      %1547 = vmatmul.mubr.bf16.gmra.mxu0 %v815
      %v1548 = vpop.f32.mrf.mxu0
      %v1549 = vadd.f32 0.0, %v1548
      %v1550 = vpop.f32.mrf.mxu0
      %v1551 = vpop.f32.mrf.mxu0
      %v1552 = vadd.f32 0.0, %v1551
      %v1553 = vpop.f32.mrf.mxu0
      %1554 = vmatprep.mubr.bf16.mxu0 %v1201
      %1555 = vmatmul.mubr.bf16.gmra.mxu0 %v816
      %v1556 = vpop.f32.mrf.mxu0
      %v1557 = vadd.f32 0.0, %v1556
      %v1558 = vpop.f32.mrf.mxu0
      %v1559 = vpop.f32.mrf.mxu0
      %v1560 = vadd.f32 0.0, %v1559
      %v1561 = vpop.f32.mrf.mxu0
      %1562 = vdwg.mxu0
      %1563 = vmatprep.subr.bf16.mxu0 0
      %1564 = vmatpush1.bf16.msra.mxu0 %v1377
      %1565 = vmatprep.subr.bf16.mxu0 0
      %1566 = vmatpush1.bf16.msra.mxu0 %v1376
      %1567 = vmatprep.subr.bf16.mxu0 0
      %1568 = vmatpush1.bf16.msra.mxu0 %v1375
      %1569 = vmatprep.subr.bf16.mxu0 0
      %1570 = vmatpush1.bf16.msra.mxu0 %v1374
      %1571 = vmatprep.subr.bf16.mxu0 0
      %1572 = vmatpush1.bf16.msra.mxu0 %v1373
      %1573 = vmatprep.subr.bf16.mxu0 0
      %1574 = vmatpush1.bf16.msra.mxu0 %v1372
      %1575 = vmatprep.subr.bf16.mxu0 0
      %1576 = vmatpush1.bf16.msra.mxu0 %v1371
      %1577 = vmatprep.subr.bf16.mxu0 0
      %1578 = vmatpush1.bf16.msra.mxu0 %v1370
      %1579 = vmatprep.subr.bf16.mxu0 0
      %1580 = vmatpush2.bf16.msra.mxu0 0
      %1581 = vmatprep.subr.bf16.mxu0 0
      %1582 = vmatpush2.bf16.msra.mxu0 0
      %1583 = vmatprep.subr.bf16.mxu0 0
      %1584 = vmatpush2.bf16.msra.mxu0 0
      %1585 = vmatprep.subr.bf16.mxu0 0
      %1586 = vmatpush2.bf16.msra.mxu0 0
      %1587 = vmatprep.subr.bf16.mxu0 0
      %1588 = vmatpush2.bf16.msra.mxu0 0
      %1589 = vmatprep.subr.bf16.mxu0 0
      %1590 = vmatpush2.bf16.msra.mxu0 0
      %1591 = vmatprep.subr.bf16.mxu0 0
      %1592 = vmatpush2.bf16.msra.mxu0 0
      %1593 = vmatprep.subr.bf16.mxu0 0
      %1594 = vmatpush2.bf16.msra.mxu0 0
      %1595 = vmatprep.mubr.bf16.mxu0 0
      %1596 = vmatmul.mubr.bf16.gmra.mxu0 %v1083
      %v1597 = vpop.f32.mrf.mxu0
      %v1598 = vadd.f32 %v1437, %v1597
      %v1599 = vpop.f32.mrf.mxu0
      %v1600 = vpop.f32.mrf.mxu0
      %v1601 = vadd.f32 %v1440, %v1600
      %v1602 = vpop.f32.mrf.mxu0
      %1603 = vmatprep.mubr.bf16.mxu0 0
      %1604 = vmatmul.mubr.bf16.gmra.mxu0 %v1086
      %v1605 = vpop.f32.mrf.mxu0
      %v1606 = vadd.f32 %v1445, %v1605
      %v1607 = vpop.f32.mrf.mxu0
      %v1608 = vpop.f32.mrf.mxu0
      %v1609 = vadd.f32 %v1448, %v1608
      %v1610 = vpop.f32.mrf.mxu0
      %1611 = vmatprep.mubr.bf16.mxu0 0
      %1612 = vmatmul.mubr.bf16.gmra.mxu0 %v1089
      %v1613 = vpop.f32.mrf.mxu0
      %v1614 = vadd.f32 %v1453, %v1613
      %v1615 = vpop.f32.mrf.mxu0
      %v1616 = vpop.f32.mrf.mxu0
      %v1617 = vadd.f32 %v1456, %v1616
      %v1618 = vpop.f32.mrf.mxu0
      %1619 = vmatprep.mubr.bf16.mxu0 0
      %1620 = vmatmul.mubr.bf16.gmra.mxu0 %v1092
      %v1621 = vpop.f32.mrf.mxu0
      %v1622 = vadd.f32 %v1461, %v1621
      %v1623 = vpop.f32.mrf.mxu0
      %v1624 = vpop.f32.mrf.mxu0
      %v1625 = vadd.f32 %v1464, %v1624
      %v1626 = vpop.f32.mrf.mxu0
      %1627 = vmatprep.mubr.bf16.mxu0 0
      %1628 = vmatmul.mubr.bf16.gmra.mxu0 %v1095
      %v1629 = vpop.f32.mrf.mxu0
      %v1630 = vadd.f32 %v1469, %v1629
      %v1631 = vpop.f32.mrf.mxu0
      %v1632 = vpop.f32.mrf.mxu0
      %v1633 = vadd.f32 %v1472, %v1632
      %v1634 = vpop.f32.mrf.mxu0
      %1635 = vmatprep.mubr.bf16.mxu0 0
      %1636 = vmatmul.mubr.bf16.gmra.mxu0 %v1098
      %v1637 = vpop.f32.mrf.mxu0
      %v1638 = vadd.f32 %v1477, %v1637
      %v1639 = vpop.f32.mrf.mxu0
      %v1640 = vpop.f32.mrf.mxu0
      %v1641 = vadd.f32 %v1480, %v1640
      %v1642 = vpop.f32.mrf.mxu0
      %1643 = vmatprep.mubr.bf16.mxu0 0
      %1644 = vmatmul.mubr.bf16.gmra.mxu0 %v1101
      %v1645 = vpop.f32.mrf.mxu0
      %v1646 = vadd.f32 %v1485, %v1645
      %v1647 = vpop.f32.mrf.mxu0
      %v1648 = vpop.f32.mrf.mxu0
      %v1649 = vadd.f32 %v1488, %v1648
      %v1650 = vpop.f32.mrf.mxu0
      %1651 = vmatprep.mubr.bf16.mxu0 0
      %1652 = vmatmul.mubr.bf16.gmra.mxu0 %v1104
      %v1653 = vpop.f32.mrf.mxu0
      %v1654 = vadd.f32 %v1493, %v1653
      %v1655 = vpop.f32.mrf.mxu0
      %v1656 = vpop.f32.mrf.mxu0
      %v1657 = vadd.f32 %v1496, %v1656
      %v1658 = vpop.f32.mrf.mxu0
      %1659 = vmatprep.mubr.bf16.mxu0 0
      %1660 = vmatmul.mubr.bf16.gmra.mxu0 %v1107
      %v1661 = vpop.f32.mrf.mxu0
      %v1662 = vadd.f32 %v1501, %v1661
      %v1663 = vpop.f32.mrf.mxu0
      %v1664 = vpop.f32.mrf.mxu0
      %v1665 = vadd.f32 %v1504, %v1664
      %v1666 = vpop.f32.mrf.mxu0
      %1667 = vmatprep.mubr.bf16.mxu0 0
      %1668 = vmatmul.mubr.bf16.gmra.mxu0 %v1110
      %v1669 = vpop.f32.mrf.mxu0
      %v1670 = vadd.f32 %v1509, %v1669
      %v1671 = vpop.f32.mrf.mxu0
      %v1672 = vpop.f32.mrf.mxu0
      %v1673 = vadd.f32 %v1512, %v1672
      %v1674 = vpop.f32.mrf.mxu0
      %1675 = vmatprep.mubr.bf16.mxu0 0
      %1676 = vmatmul.mubr.bf16.gmra.mxu0 %v1113
      %v1677 = vpop.f32.mrf.mxu0
      %v1678 = vadd.f32 %v1517, %v1677
      %v1679 = vpop.f32.mrf.mxu0
      %v1680 = vpop.f32.mrf.mxu0
      %v1681 = vadd.f32 %v1520, %v1680
      %v1682 = vpop.f32.mrf.mxu0
      %1683 = vmatprep.mubr.bf16.mxu0 0
      %1684 = vmatmul.mubr.bf16.gmra.mxu0 %v1116
      %v1685 = vpop.f32.mrf.mxu0
      %v1686 = vadd.f32 %v1525, %v1685
      %v1687 = vpop.f32.mrf.mxu0
      %v1688 = vpop.f32.mrf.mxu0
      %v1689 = vadd.f32 %v1528, %v1688
      %v1690 = vpop.f32.mrf.mxu0
      %1691 = vmatprep.mubr.bf16.mxu0 0
      %1692 = vmatmul.mubr.bf16.gmra.mxu0 %v1119
      %v1693 = vpop.f32.mrf.mxu0
      %v1694 = vadd.f32 %v1533, %v1693
      %v1695 = vpop.f32.mrf.mxu0
      %v1696 = vpop.f32.mrf.mxu0
      %v1697 = vadd.f32 %v1536, %v1696
      %v1698 = vpop.f32.mrf.mxu0
      %1699 = vmatprep.mubr.bf16.mxu0 0
      %1700 = vmatmul.mubr.bf16.gmra.mxu0 %v1122
      %v1701 = vpop.f32.mrf.mxu0
      %v1702 = vadd.f32 %v1541, %v1701
      %v1703 = vpop.f32.mrf.mxu0
      %v1704 = vpop.f32.mrf.mxu0
      %v1705 = vadd.f32 %v1544, %v1704
      %v1706 = vpop.f32.mrf.mxu0
      %1707 = vmatprep.mubr.bf16.mxu0 0
      %1708 = vmatmul.mubr.bf16.gmra.mxu0 %v1125
      %v1709 = vpop.f32.mrf.mxu0
      %v1710 = vadd.f32 %v1549, %v1709
      %v1711 = vpop.f32.mrf.mxu0
      %v1712 = vpop.f32.mrf.mxu0
      %v1713 = vadd.f32 %v1552, %v1712
      %v1714 = vpop.f32.mrf.mxu0
      %1715 = vmatprep.mubr.bf16.mxu0 0
      %1716 = vmatmul.mubr.bf16.gmra.mxu0 %v1207
      %v1717 = vpop.f32.mrf.mxu0
      %v1718 = vadd.f32 %v1557, %v1717
      %v1719 = vpop.f32.mrf.mxu0
      %v1720 = vpop.f32.mrf.mxu0
      %v1721 = vadd.f32 %v1560, %v1720
      %v1722 = vpop.f32.mrf.mxu0
      %1723 = vdwg.mxu0
      %v1772 = vunpack.c.l.b16 %v1142
      %v1773 = vunpack.c.l.b16 %v1143
      %v1774 = vunpack.c.l.b16 %v1144
      %v1775 = vunpack.c.l.b16 %v1145
      %v1776 = vunpack.c.l.b16 %v1146
      %v1777 = vunpack.c.l.b16 %v1147
      %v1778 = vunpack.c.l.b16 %v1148
      %v1779 = vunpack.c.l.b16 %v1149
      %v1780 = vunpack.c.l.b16 %v1150
      %v1781 = vunpack.c.l.b16 %v1151
      %v1782 = vunpack.c.l.b16 %v1152
      %v1783 = vunpack.c.l.b16 %v1153
      %v1784 = vunpack.c.l.b16 %v1154
      %v1785 = vunpack.c.l.b16 %v1155
      %v1786 = vunpack.c.l.b16 %v1156
      %v1787 = vunpack.c.l.b16 %v1157
      %v1788 = vunpack.c.l.b16 %v1158
      %v1789 = vunpack.c.l.b16 %v1159
      %v1790 = vunpack.c.l.b16 %v1160
      %v1791 = vunpack.c.l.b16 %v1161
      %v1792 = vunpack.c.l.b16 %v1162
      %v1793 = vunpack.c.l.b16 %v1163
      %v1794 = vunpack.c.l.b16 %v1164
      %v1795 = vunpack.c.l.b16 %v1165
      %v1796 = vunpack.c.l.b16 %v1166
      %v1797 = vunpack.c.l.b16 %v1167
      %v1798 = vunpack.c.l.b16 %v1168
      %v1799 = vunpack.c.l.b16 %v1169
      %v1800 = vunpack.c.l.b16 %v1170
      %v1801 = vunpack.c.l.b16 %v1171
      %v1802 = vunpack.c.l.b16 %v1172
      %v1803 = vunpack.c.l.b16 %v1173
      %v1804 = vunpack.c.l.b16 %v1174
      %v1805 = vunpack.c.l.b16 %v1175
      %v1806 = vunpack.c.l.b16 %v1176
      %v1807 = vunpack.c.l.b16 %v1177
      %v1808 = vunpack.c.l.b16 %v1178
      %v1809 = vunpack.c.l.b16 %v1179
      %v1810 = vunpack.c.l.b16 %v1180
      %v1811 = vunpack.c.l.b16 %v1181
      %v1812 = vunpack.c.l.b16 %v1182
      %v1813 = vunpack.c.l.b16 %v1183
      %v1814 = vunpack.c.l.b16 %v1184
      %v1815 = vunpack.c.l.b16 %v1185
      %v1816 = vunpack.c.l.b16 %v1186
      %v1817 = vunpack.c.l.b16 %v1187
      %v1818 = vunpack.c.l.b16 %v1188
      %v1819 = vunpack.c.l.b16 %v1189
      %v1820 = vpack.c.b16 %v1773, %v1772
      %v1821 = vpack.c.b16 %v1775, %v1774
      %v1822 = vpack.c.b16 %v1777, %v1776
      %v1823 = vpack.c.b16 %v1779, %v1778
      %v1824 = vpack.c.b16 %v1781, %v1780
      %v1825 = vpack.c.b16 %v1783, %v1782
      %v1826 = vpack.c.b16 %v1785, %v1784
      %v1827 = vpack.c.b16 %v1787, %v1786
      %v1828 = vpack.c.b16 %v1789, %v1788
      %v1829 = vpack.c.b16 %v1791, %v1790
      %v1830 = vpack.c.b16 %v1793, %v1792
      %v1831 = vpack.c.b16 %v1795, %v1794
      %v1832 = vpack.c.b16 %v1797, %v1796
      %v1833 = vpack.c.b16 %v1799, %v1798
      %v1834 = vpack.c.b16 %v1801, %v1800
      %v1835 = vpack.c.b16 %v1803, %v1802
      %v1836 = vpack.c.b16 %v1805, %v1804
      %v1837 = vpack.c.b16 %v1807, %v1806
      %v1838 = vpack.c.b16 %v1809, %v1808
      %v1839 = vpack.c.b16 %v1811, %v1810
      %v1840 = vpack.c.b16 %v1813, %v1812
      %v1841 = vpack.c.b16 %v1815, %v1814
      %v1842 = vpack.c.b16 %v1817, %v1816
      %v1843 = vpack.c.b16 %v1819, %v1818
      %1868 = vmatprep.subr.bf16.mxu0 0
      %1869 = vmatpush1.bf16.msra.mxu0 %v1827
      %1870 = vmatprep.subr.bf16.mxu0 0
      %1871 = vmatpush1.bf16.msra.mxu0 %v1826
      %1872 = vmatprep.subr.bf16.mxu0 0
      %1873 = vmatpush1.bf16.msra.mxu0 %v1825
      %1874 = vmatprep.subr.bf16.mxu0 0
      %1875 = vmatpush1.bf16.msra.mxu0 %v1824
      %1876 = vmatprep.subr.bf16.mxu0 0
      %1877 = vmatpush1.bf16.msra.mxu0 %v1823
      %1878 = vmatprep.subr.bf16.mxu0 0
      %1879 = vmatpush1.bf16.msra.mxu0 %v1822
      %1880 = vmatprep.subr.bf16.mxu0 0
      %1881 = vmatpush1.bf16.msra.mxu0 %v1821
      %1882 = vmatprep.subr.bf16.mxu0 0
      %1883 = vmatpush1.bf16.msra.mxu0 %v1820
      %1884 = vmatprep.subr.bf16.mxu0 0
      %1885 = vmatpush2.bf16.msra.mxu0 %v1835
      %1886 = vmatprep.subr.bf16.mxu0 0
      %1887 = vmatpush2.bf16.msra.mxu0 %v1834
      %1888 = vmatprep.subr.bf16.mxu0 0
      %1889 = vmatpush2.bf16.msra.mxu0 %v1833
      %1890 = vmatprep.subr.bf16.mxu0 0
      %1891 = vmatpush2.bf16.msra.mxu0 %v1832
      %1892 = vmatprep.subr.bf16.mxu0 0
      %1893 = vmatpush2.bf16.msra.mxu0 %v1831
      %1894 = vmatprep.subr.bf16.mxu0 0
      %1895 = vmatpush2.bf16.msra.mxu0 %v1830
      %1896 = vmatprep.subr.bf16.mxu0 0
      %1897 = vmatpush2.bf16.msra.mxu0 %v1829
      %1898 = vmatprep.subr.bf16.mxu0 0
      %1899 = vmatpush2.bf16.msra.mxu0 %v1828
      %1900 = vmatprep.mubr.bf16.mxu0 %v848
      %1901 = vmatmul.mubr.bf16.gmra.mxu0 %v800
      %v1902 = vpop.f32.mrf.mxu0
      %v1903 = vadd.f32 %v1598, %v1902
      %v1904 = vpop.f32.mrf.mxu0
      %v1905 = vpop.f32.mrf.mxu0
      %v1906 = vadd.f32 %v1601, %v1905
      %v1907 = vpop.f32.mrf.mxu0
      %1908 = vmatprep.mubr.bf16.mxu0 %v860
      %1909 = vmatmul.mubr.bf16.gmra.mxu0 %v801
      %v1910 = vpop.f32.mrf.mxu0
      %v1911 = vadd.f32 %v1606, %v1910
      %v1912 = vpop.f32.mrf.mxu0
      %v1913 = vpop.f32.mrf.mxu0
      %v1914 = vadd.f32 %v1609, %v1913
      %v1915 = vpop.f32.mrf.mxu0
      %1916 = vmatprep.mubr.bf16.mxu0 %v872
      %1917 = vmatmul.mubr.bf16.gmra.mxu0 %v802
      %v1918 = vpop.f32.mrf.mxu0
      %v1919 = vadd.f32 %v1614, %v1918
      %v1920 = vpop.f32.mrf.mxu0
      %v1921 = vpop.f32.mrf.mxu0
      %v1922 = vadd.f32 %v1617, %v1921
      %v1923 = vpop.f32.mrf.mxu0
      %1924 = vmatprep.mubr.bf16.mxu0 %v884
      %1925 = vmatmul.mubr.bf16.gmra.mxu0 %v803
      %v1926 = vpop.f32.mrf.mxu0
      %v1927 = vadd.f32 %v1622, %v1926
      %v1928 = vpop.f32.mrf.mxu0
      %v1929 = vpop.f32.mrf.mxu0
      %v1930 = vadd.f32 %v1625, %v1929
      %v1931 = vpop.f32.mrf.mxu0
      %1932 = vmatprep.mubr.bf16.mxu0 %v896
      %1933 = vmatmul.mubr.bf16.gmra.mxu0 %v804
      %v1934 = vpop.f32.mrf.mxu0
      %v1935 = vadd.f32 %v1630, %v1934
      %v1936 = vpop.f32.mrf.mxu0
      %v1937 = vpop.f32.mrf.mxu0
      %v1938 = vadd.f32 %v1633, %v1937
      %v1939 = vpop.f32.mrf.mxu0
      %1940 = vmatprep.mubr.bf16.mxu0 %v908
      %1941 = vmatmul.mubr.bf16.gmra.mxu0 %v805
      %v1942 = vpop.f32.mrf.mxu0
      %v1943 = vadd.f32 %v1638, %v1942
      %v1944 = vpop.f32.mrf.mxu0
      %v1945 = vpop.f32.mrf.mxu0
      %v1946 = vadd.f32 %v1641, %v1945
      %v1947 = vpop.f32.mrf.mxu0
      %1948 = vmatprep.mubr.bf16.mxu0 %v920
      %1949 = vmatmul.mubr.bf16.gmra.mxu0 %v806
      %v1950 = vpop.f32.mrf.mxu0
      %v1951 = vadd.f32 %v1646, %v1950
      %v1952 = vpop.f32.mrf.mxu0
      %v1953 = vpop.f32.mrf.mxu0
      %v1954 = vadd.f32 %v1649, %v1953
      %v1955 = vpop.f32.mrf.mxu0
      %1956 = vmatprep.mubr.bf16.mxu0 %v932
      %1957 = vmatmul.mubr.bf16.gmra.mxu0 %v807
      %v1958 = vpop.f32.mrf.mxu0
      %v1959 = vadd.f32 %v1654, %v1958
      %v1960 = vpop.f32.mrf.mxu0
      %v1961 = vpop.f32.mrf.mxu0
      %v1962 = vadd.f32 %v1657, %v1961
      %v1963 = vpop.f32.mrf.mxu0
      %1964 = vmatprep.mubr.bf16.mxu0 %v944
      %1965 = vmatmul.mubr.bf16.gmra.mxu0 %v808
      %v1966 = vpop.f32.mrf.mxu0
      %v1967 = vadd.f32 %v1662, %v1966
      %v1968 = vpop.f32.mrf.mxu0
      %v1969 = vpop.f32.mrf.mxu0
      %v1970 = vadd.f32 %v1665, %v1969
      %v1971 = vpop.f32.mrf.mxu0
      %1972 = vmatprep.mubr.bf16.mxu0 %v956
      %1973 = vmatmul.mubr.bf16.gmra.mxu0 %v809
      %v1974 = vpop.f32.mrf.mxu0
      %v1975 = vadd.f32 %v1670, %v1974
      %v1976 = vpop.f32.mrf.mxu0
      %v1977 = vpop.f32.mrf.mxu0
      %v1978 = vadd.f32 %v1673, %v1977
      %v1979 = vpop.f32.mrf.mxu0
      %1980 = vmatprep.mubr.bf16.mxu0 %v968
      %1981 = vmatmul.mubr.bf16.gmra.mxu0 %v810
      %v1982 = vpop.f32.mrf.mxu0
      %v1983 = vadd.f32 %v1678, %v1982
      %v1984 = vpop.f32.mrf.mxu0
      %v1985 = vpop.f32.mrf.mxu0
      %v1986 = vadd.f32 %v1681, %v1985
      %v1987 = vpop.f32.mrf.mxu0
      %1988 = vmatprep.mubr.bf16.mxu0 %v980
      %1989 = vmatmul.mubr.bf16.gmra.mxu0 %v811
      %v1990 = vpop.f32.mrf.mxu0
      %v1991 = vadd.f32 %v1686, %v1990
      %v1992 = vpop.f32.mrf.mxu0
      %v1993 = vpop.f32.mrf.mxu0
      %v1994 = vadd.f32 %v1689, %v1993
      %v1995 = vpop.f32.mrf.mxu0
      %1996 = vmatprep.mubr.bf16.mxu0 %v992
      %1997 = vmatmul.mubr.bf16.gmra.mxu0 %v812
      %v1998 = vpop.f32.mrf.mxu0
      %v1999 = vadd.f32 %v1694, %v1998
      %v2000 = vpop.f32.mrf.mxu0
      %v2001 = vpop.f32.mrf.mxu0
      %v2002 = vadd.f32 %v1697, %v2001
      %v2003 = vpop.f32.mrf.mxu0
      %2004 = vmatprep.mubr.bf16.mxu0 %v1004
      %2005 = vmatmul.mubr.bf16.gmra.mxu0 %v813
      %v2006 = vpop.f32.mrf.mxu0
      %v2007 = vadd.f32 %v1702, %v2006
      %v2008 = vpop.f32.mrf.mxu0
      %v2009 = vpop.f32.mrf.mxu0
      %v2010 = vadd.f32 %v1705, %v2009
      %v2011 = vpop.f32.mrf.mxu0
      %2012 = vmatprep.mubr.bf16.mxu0 %v1016
      %2013 = vmatmul.mubr.bf16.gmra.mxu0 %v814
      %v2014 = vpop.f32.mrf.mxu0
      %v2015 = vadd.f32 %v1710, %v2014
      %v2016 = vpop.f32.mrf.mxu0
      %v2017 = vpop.f32.mrf.mxu0
      %v2018 = vadd.f32 %v1713, %v2017
      %v2019 = vpop.f32.mrf.mxu0
      %2020 = vmatprep.mubr.bf16.mxu0 %v1028
      %2021 = vmatmul.mubr.bf16.gmra.mxu0 %v815
      %v2022 = vpop.f32.mrf.mxu0
      %v2023 = vadd.f32 %v1718, %v2022
      %v2024 = vpop.f32.mrf.mxu0
      %v2025 = vpop.f32.mrf.mxu0
      %v2026 = vadd.f32 %v1721, %v2025
      %v2027 = vpop.f32.mrf.mxu0
      %2028 = vdwg.mxu0
      %2029 = vmatprep.subr.bf16.mxu0 0
      %2030 = vmatpush1.bf16.msra.mxu0 %v1843
      %2031 = vmatprep.subr.bf16.mxu0 0
      %2032 = vmatpush1.bf16.msra.mxu0 %v1842
      %2033 = vmatprep.subr.bf16.mxu0 0
      %2034 = vmatpush1.bf16.msra.mxu0 %v1841
      %2035 = vmatprep.subr.bf16.mxu0 0
      %2036 = vmatpush1.bf16.msra.mxu0 %v1840
      %2037 = vmatprep.subr.bf16.mxu0 0
      %2038 = vmatpush1.bf16.msra.mxu0 %v1839
      %2039 = vmatprep.subr.bf16.mxu0 0
      %2040 = vmatpush1.bf16.msra.mxu0 %v1838
      %2041 = vmatprep.subr.bf16.mxu0 0
      %2042 = vmatpush1.bf16.msra.mxu0 %v1837
      %2043 = vmatprep.subr.bf16.mxu0 0
      %2044 = vmatpush1.bf16.msra.mxu0 %v1836
      %2045 = vmatprep.subr.bf16.mxu0 0
      %2046 = vmatpush2.bf16.msra.mxu0 0
      %2047 = vmatprep.subr.bf16.mxu0 0
      %2048 = vmatpush2.bf16.msra.mxu0 0
      %2049 = vmatprep.subr.bf16.mxu0 0
      %2050 = vmatpush2.bf16.msra.mxu0 0
      %2051 = vmatprep.subr.bf16.mxu0 0
      %2052 = vmatpush2.bf16.msra.mxu0 0
      %2053 = vmatprep.subr.bf16.mxu0 0
      %2054 = vmatpush2.bf16.msra.mxu0 0
      %2055 = vmatprep.subr.bf16.mxu0 0
      %2056 = vmatpush2.bf16.msra.mxu0 0
      %2057 = vmatprep.subr.bf16.mxu0 0
      %2058 = vmatpush2.bf16.msra.mxu0 0
      %2059 = vmatprep.subr.bf16.mxu0 0
      %2060 = vmatpush2.bf16.msra.mxu0 0
      %2061 = vmatprep.mubr.bf16.mxu0 0
      %2062 = vmatmul.mubr.bf16.gmra.mxu0 %v1080
      %v2063 = vpop.f32.mrf.mxu0
      %v2064 = vadd.f32 %v1903, %v2063
      %v2065 = vpop.f32.mrf.mxu0
      %v2066 = vpop.f32.mrf.mxu0
      %v2067 = vadd.f32 %v1906, %v2066
      %v2068 = vpop.f32.mrf.mxu0
      %2069 = vmatprep.mubr.bf16.mxu0 0
      %2070 = vmatmul.mubr.bf16.gmra.mxu0 %v1083
      %v2071 = vpop.f32.mrf.mxu0
      %v2072 = vadd.f32 %v1911, %v2071
      %v2073 = vpop.f32.mrf.mxu0
      %v2074 = vpop.f32.mrf.mxu0
      %v2075 = vadd.f32 %v1914, %v2074
      %v2076 = vpop.f32.mrf.mxu0
      %2077 = vmatprep.mubr.bf16.mxu0 0
      %2078 = vmatmul.mubr.bf16.gmra.mxu0 %v1086
      %v2079 = vpop.f32.mrf.mxu0
      %v2080 = vadd.f32 %v1919, %v2079
      %v2081 = vpop.f32.mrf.mxu0
      %v2082 = vpop.f32.mrf.mxu0
      %v2083 = vadd.f32 %v1922, %v2082
      %v2084 = vpop.f32.mrf.mxu0
      %2085 = vmatprep.mubr.bf16.mxu0 0
      %2086 = vmatmul.mubr.bf16.gmra.mxu0 %v1089
      %v2087 = vpop.f32.mrf.mxu0
      %v2088 = vadd.f32 %v1927, %v2087
      %v2089 = vpop.f32.mrf.mxu0
      %v2090 = vpop.f32.mrf.mxu0
      %v2091 = vadd.f32 %v1930, %v2090
      %v2092 = vpop.f32.mrf.mxu0
      %2093 = vmatprep.mubr.bf16.mxu0 0
      %2094 = vmatmul.mubr.bf16.gmra.mxu0 %v1092
      %v2095 = vpop.f32.mrf.mxu0
      %v2096 = vadd.f32 %v1935, %v2095
      %v2097 = vpop.f32.mrf.mxu0
      %v2098 = vpop.f32.mrf.mxu0
      %v2099 = vadd.f32 %v1938, %v2098
      %v2100 = vpop.f32.mrf.mxu0
      %2101 = vmatprep.mubr.bf16.mxu0 0
      %2102 = vmatmul.mubr.bf16.gmra.mxu0 %v1095
      %v2103 = vpop.f32.mrf.mxu0
      %v2104 = vadd.f32 %v1943, %v2103
      %v2105 = vpop.f32.mrf.mxu0
      %v2106 = vpop.f32.mrf.mxu0
      %v2107 = vadd.f32 %v1946, %v2106
      %v2108 = vpop.f32.mrf.mxu0
      %2109 = vmatprep.mubr.bf16.mxu0 0
      %2110 = vmatmul.mubr.bf16.gmra.mxu0 %v1098
      %v2111 = vpop.f32.mrf.mxu0
      %v2112 = vadd.f32 %v1951, %v2111
      %v2113 = vpop.f32.mrf.mxu0
      %v2114 = vpop.f32.mrf.mxu0
      %v2115 = vadd.f32 %v1954, %v2114
      %v2116 = vpop.f32.mrf.mxu0
      %2117 = vmatprep.mubr.bf16.mxu0 0
      %2118 = vmatmul.mubr.bf16.gmra.mxu0 %v1101
      %v2119 = vpop.f32.mrf.mxu0
      %v2120 = vadd.f32 %v1959, %v2119
      %v2121 = vpop.f32.mrf.mxu0
      %v2122 = vpop.f32.mrf.mxu0
      %v2123 = vadd.f32 %v1962, %v2122
      %v2124 = vpop.f32.mrf.mxu0
      %2125 = vmatprep.mubr.bf16.mxu0 0
      %2126 = vmatmul.mubr.bf16.gmra.mxu0 %v1104
      %v2127 = vpop.f32.mrf.mxu0
      %v2128 = vadd.f32 %v1967, %v2127
      %v2129 = vpop.f32.mrf.mxu0
      %v2130 = vpop.f32.mrf.mxu0
      %v2131 = vadd.f32 %v1970, %v2130
      %v2132 = vpop.f32.mrf.mxu0
      %2133 = vmatprep.mubr.bf16.mxu0 0
      %2134 = vmatmul.mubr.bf16.gmra.mxu0 %v1107
      %v2135 = vpop.f32.mrf.mxu0
      %v2136 = vadd.f32 %v1975, %v2135
      %v2137 = vpop.f32.mrf.mxu0
      %v2138 = vpop.f32.mrf.mxu0
      %v2139 = vadd.f32 %v1978, %v2138
      %v2140 = vpop.f32.mrf.mxu0
      %2141 = vmatprep.mubr.bf16.mxu0 0
      %2142 = vmatmul.mubr.bf16.gmra.mxu0 %v1110
      %v2143 = vpop.f32.mrf.mxu0
      %v2144 = vadd.f32 %v1983, %v2143
      %v2145 = vpop.f32.mrf.mxu0
      %v2146 = vpop.f32.mrf.mxu0
      %v2147 = vadd.f32 %v1986, %v2146
      %v2148 = vpop.f32.mrf.mxu0
      %2149 = vmatprep.mubr.bf16.mxu0 0
      %2150 = vmatmul.mubr.bf16.gmra.mxu0 %v1113
      %v2151 = vpop.f32.mrf.mxu0
      %v2152 = vadd.f32 %v1991, %v2151
      %v2153 = vpop.f32.mrf.mxu0
      %v2154 = vpop.f32.mrf.mxu0
      %v2155 = vadd.f32 %v1994, %v2154
      %v2156 = vpop.f32.mrf.mxu0
      %2157 = vmatprep.mubr.bf16.mxu0 0
      %2158 = vmatmul.mubr.bf16.gmra.mxu0 %v1116
      %v2159 = vpop.f32.mrf.mxu0
      %v2160 = vadd.f32 %v1999, %v2159
      %v2161 = vpop.f32.mrf.mxu0
      %v2162 = vpop.f32.mrf.mxu0
      %v2163 = vadd.f32 %v2002, %v2162
      %v2164 = vpop.f32.mrf.mxu0
      %2165 = vmatprep.mubr.bf16.mxu0 0
      %2166 = vmatmul.mubr.bf16.gmra.mxu0 %v1119
      %v2167 = vpop.f32.mrf.mxu0
      %v2168 = vadd.f32 %v2007, %v2167
      %v2169 = vpop.f32.mrf.mxu0
      %v2170 = vpop.f32.mrf.mxu0
      %v2171 = vadd.f32 %v2010, %v2170
      %v2172 = vpop.f32.mrf.mxu0
      %2173 = vmatprep.mubr.bf16.mxu0 0
      %2174 = vmatmul.mubr.bf16.gmra.mxu0 %v1122
      %v2175 = vpop.f32.mrf.mxu0
      %v2176 = vadd.f32 %v2015, %v2175
      %v2177 = vpop.f32.mrf.mxu0
      %v2178 = vpop.f32.mrf.mxu0
      %v2179 = vadd.f32 %v2018, %v2178
      %v2180 = vpop.f32.mrf.mxu0
      %2181 = vmatprep.mubr.bf16.mxu0 0
      %2182 = vmatmul.mubr.bf16.gmra.mxu0 %v1125
      %v2183 = vpop.f32.mrf.mxu0
      %v2184 = vadd.f32 %v2023, %v2183
      %v2185 = vpop.f32.mrf.mxu0
      %v2186 = vpop.f32.mrf.mxu0
      %v2187 = vadd.f32 %v2026, %v2186
      %v2188 = vpop.f32.mrf.mxu0
      %2189 = vdwg.mxu0
      %v2191 = vshrl.u32 %v817, 16
      %v2193 = vshll.u32 %v817, 16
      %v2195 = vrot.slane %v2193, 1
      %v2196 = vor.u32 %v2191, %v2195
      %v2198 = vshll.u32 %v835, 16
      %v2200 = vrot.slane %v2198, 1
      %v2201 = vsel %vm836, %v2196, %v2200
      %v2205 = vrot.slane %v817, 1
      %v2206 = vrot.slane %v835, 1
      %v2207 = vsel %vm1077, %v2205, %v2206
      %s2209 = scalar_lea.vmem %s3, 384
      %v2210 = vld [vmem:[%s2209] sm:$0xf]
      %v2211 = vld [vmem:[%s2209 + $0x4] sm:$0xf]
      %v2212 = vld [vmem:[%s2209 + $0x8] sm:$0xf]
      %v2213 = vld [vmem:[%s2209 + $0xc] sm:$0xf]
      %v2214 = vld [vmem:[%s2209 + $0x10] sm:$0xf]
      %v2215 = vld [vmem:[%s2209 + $0x14] sm:$0xf]
      %v2216 = vld [vmem:[%s2209 + $0x18] sm:$0xf]
      %v2217 = vld [vmem:[%s2209 + $0x1c] sm:$0xf]
      %v2218 = vld [vmem:[%s2209 + $0x20] sm:$0xf]
      %v2219 = vld [vmem:[%s2209 + $0x24] sm:$0xf]
      %v2220 = vld [vmem:[%s2209 + $0x28] sm:$0xf]
      %v2221 = vld [vmem:[%s2209 + $0x2c] sm:$0xf]
      %v2222 = vld [vmem:[%s2209 + $0x30] sm:$0xf]
      %v2223 = vld [vmem:[%s2209 + $0x34] sm:$0xf]
      %v2224 = vld [vmem:[%s2209 + $0x38] sm:$0xf]
      %v2225 = vld [vmem:[%s2209 + $0x3c] sm:$0xf]
      %v2226 = vld [vmem:[%s2209 + $0x40] sm:$0xf]
      %v2227 = vld [vmem:[%s2209 + $0x44] sm:$0xf]
      %v2228 = vld [vmem:[%s2209 + $0x48] sm:$0xf]
      %v2229 = vld [vmem:[%s2209 + $0x4c] sm:$0xf]
      %v2230 = vld [vmem:[%s2209 + $0x50] sm:$0xf]
      %v2231 = vld [vmem:[%s2209 + $0x54] sm:$0xf]
      %v2232 = vld [vmem:[%s2209 + $0x58] sm:$0xf]
      %v2233 = vld [vmem:[%s2209 + $0x5c] sm:$0xf]
      %v2234 = vld [vmem:[%s2209 + $0x60] sm:$0xf]
      %v2235 = vld [vmem:[%s2209 + $0x64] sm:$0xf]
      %v2236 = vld [vmem:[%s2209 + $0x68] sm:$0xf]
      %v2237 = vld [vmem:[%s2209 + $0x6c] sm:$0xf]
      %v2238 = vld [vmem:[%s2209 + $0x70] sm:$0xf]
      %v2239 = vld [vmem:[%s2209 + $0x74] sm:$0xf]
      %v2240 = vld [vmem:[%s2209 + $0x78] sm:$0xf]
      %v2241 = vld [vmem:[%s2209 + $0x7c] sm:$0xf]
      %v2242 = vld [vmem:[%s2209 + $0x80] sm:$0xf]
      %v2243 = vld [vmem:[%s2209 + $0x84] sm:$0xf]
      %v2244 = vld [vmem:[%s2209 + $0x88] sm:$0xf]
      %v2245 = vld [vmem:[%s2209 + $0x8c] sm:$0xf]
      %v2246 = vld [vmem:[%s2209 + $0x90] sm:$0xf]
      %v2247 = vld [vmem:[%s2209 + $0x94] sm:$0xf]
      %v2248 = vld [vmem:[%s2209 + $0x98] sm:$0xf]
      %v2249 = vld [vmem:[%s2209 + $0x9c] sm:$0xf]
      %v2250 = vld [vmem:[%s2209 + $0xa0] sm:$0xf]
      %v2251 = vld [vmem:[%s2209 + $0xa4] sm:$0xf]
      %v2252 = vld [vmem:[%s2209 + $0xa8] sm:$0xf]
      %v2253 = vld [vmem:[%s2209 + $0xac] sm:$0xf]
      %v2254 = vld [vmem:[%s2209 + $0xb0] sm:$0xf]
      %v2255 = vld [vmem:[%s2209 + $0xb4] sm:$0xf]
      %v2256 = vld [vmem:[%s2209 + $0xb8] sm:$0xf]
      %v2257 = vld [vmem:[%s2209 + $0xbc] sm:$0xf]
      %v2306 = vunpack.c.l.b16 %v2210
      %v2307 = vunpack.c.l.b16 %v2211
      %v2308 = vunpack.c.l.b16 %v2212
      %v2309 = vunpack.c.l.b16 %v2213
      %v2310 = vunpack.c.l.b16 %v2214
      %v2311 = vunpack.c.l.b16 %v2215
      %v2312 = vunpack.c.l.b16 %v2216
      %v2313 = vunpack.c.l.b16 %v2217
      %v2314 = vunpack.c.l.b16 %v2218
      %v2315 = vunpack.c.l.b16 %v2219
      %v2316 = vunpack.c.l.b16 %v2220
      %v2317 = vunpack.c.l.b16 %v2221
      %v2318 = vunpack.c.l.b16 %v2222
      %v2319 = vunpack.c.l.b16 %v2223
      %v2320 = vunpack.c.l.b16 %v2224
      %v2321 = vunpack.c.l.b16 %v2225
      %v2322 = vunpack.c.l.b16 %v2226
      %v2323 = vunpack.c.l.b16 %v2227
      %v2324 = vunpack.c.l.b16 %v2228
      %v2325 = vunpack.c.l.b16 %v2229
      %v2326 = vunpack.c.l.b16 %v2230
      %v2327 = vunpack.c.l.b16 %v2231
      %v2328 = vunpack.c.l.b16 %v2232
      %v2329 = vunpack.c.l.b16 %v2233
      %v2330 = vunpack.c.l.b16 %v2234
      %v2331 = vunpack.c.l.b16 %v2235
      %v2332 = vunpack.c.l.b16 %v2236
      %v2333 = vunpack.c.l.b16 %v2237
      %v2334 = vunpack.c.l.b16 %v2238
      %v2335 = vunpack.c.l.b16 %v2239
      %v2336 = vunpack.c.l.b16 %v2240
      %v2337 = vunpack.c.l.b16 %v2241
      %v2338 = vunpack.c.l.b16 %v2242
      %v2339 = vunpack.c.l.b16 %v2243
      %v2340 = vunpack.c.l.b16 %v2244
      %v2341 = vunpack.c.l.b16 %v2245
      %v2342 = vunpack.c.l.b16 %v2246
      %v2343 = vunpack.c.l.b16 %v2247
      %v2344 = vunpack.c.l.b16 %v2248
      %v2345 = vunpack.c.l.b16 %v2249
      %v2346 = vunpack.c.l.b16 %v2250
      %v2347 = vunpack.c.l.b16 %v2251
      %v2348 = vunpack.c.l.b16 %v2252
      %v2349 = vunpack.c.l.b16 %v2253
      %v2350 = vunpack.c.l.b16 %v2254
      %v2351 = vunpack.c.l.b16 %v2255
      %v2352 = vunpack.c.l.b16 %v2256
      %v2353 = vunpack.c.l.b16 %v2257
      %v2354 = vpack.c.b16 %v2307, %v2306
      %v2355 = vpack.c.b16 %v2309, %v2308
      %v2356 = vpack.c.b16 %v2311, %v2310
      %v2357 = vpack.c.b16 %v2313, %v2312
      %v2358 = vpack.c.b16 %v2315, %v2314
      %v2359 = vpack.c.b16 %v2317, %v2316
      %v2360 = vpack.c.b16 %v2319, %v2318
      %v2361 = vpack.c.b16 %v2321, %v2320
      %v2362 = vpack.c.b16 %v2323, %v2322
      %v2363 = vpack.c.b16 %v2325, %v2324
      %v2364 = vpack.c.b16 %v2327, %v2326
      %v2365 = vpack.c.b16 %v2329, %v2328
      %v2366 = vpack.c.b16 %v2331, %v2330
      %v2367 = vpack.c.b16 %v2333, %v2332
      %v2368 = vpack.c.b16 %v2335, %v2334
      %v2369 = vpack.c.b16 %v2337, %v2336
      %v2370 = vpack.c.b16 %v2339, %v2338
      %v2371 = vpack.c.b16 %v2341, %v2340
      %v2372 = vpack.c.b16 %v2343, %v2342
      %v2373 = vpack.c.b16 %v2345, %v2344
      %v2374 = vpack.c.b16 %v2347, %v2346
      %v2375 = vpack.c.b16 %v2349, %v2348
      %v2376 = vpack.c.b16 %v2351, %v2350
      %v2377 = vpack.c.b16 %v2353, %v2352
      %2402 = vmatprep.subr.bf16.mxu0 0
      %2403 = vmatpush1.bf16.msra.mxu0 %v2361
      %2404 = vmatprep.subr.bf16.mxu0 0
      %2405 = vmatpush1.bf16.msra.mxu0 %v2360
      %2406 = vmatprep.subr.bf16.mxu0 0
      %2407 = vmatpush1.bf16.msra.mxu0 %v2359
      %2408 = vmatprep.subr.bf16.mxu0 0
      %2409 = vmatpush1.bf16.msra.mxu0 %v2358
      %2410 = vmatprep.subr.bf16.mxu0 0
      %2411 = vmatpush1.bf16.msra.mxu0 %v2357
      %2412 = vmatprep.subr.bf16.mxu0 0
      %2413 = vmatpush1.bf16.msra.mxu0 %v2356
      %2414 = vmatprep.subr.bf16.mxu0 0
      %2415 = vmatpush1.bf16.msra.mxu0 %v2355
      %2416 = vmatprep.subr.bf16.mxu0 0
      %2417 = vmatpush1.bf16.msra.mxu0 %v2354
      %2418 = vmatprep.subr.bf16.mxu0 0
      %2419 = vmatpush2.bf16.msra.mxu0 %v2369
      %2420 = vmatprep.subr.bf16.mxu0 0
      %2421 = vmatpush2.bf16.msra.mxu0 %v2368
      %2422 = vmatprep.subr.bf16.mxu0 0
      %2423 = vmatpush2.bf16.msra.mxu0 %v2367
      %2424 = vmatprep.subr.bf16.mxu0 0
      %2425 = vmatpush2.bf16.msra.mxu0 %v2366
      %2426 = vmatprep.subr.bf16.mxu0 0
      %2427 = vmatpush2.bf16.msra.mxu0 %v2365
      %2428 = vmatprep.subr.bf16.mxu0 0
      %2429 = vmatpush2.bf16.msra.mxu0 %v2364
      %2430 = vmatprep.subr.bf16.mxu0 0
      %2431 = vmatpush2.bf16.msra.mxu0 %v2363
      %2432 = vmatprep.subr.bf16.mxu0 0
      %2433 = vmatpush2.bf16.msra.mxu0 %v2362
      %2434 = vmatprep.mubr.bf16.mxu0 %v872
      %2435 = vmatmul.mubr.bf16.gmra.mxu0 %v802
      %v2436 = vpop.f32.mrf.mxu0
      %v2437 = vadd.f32 0.0, %v2436
      %v2438 = vpop.f32.mrf.mxu0
      %v2439 = vpop.f32.mrf.mxu0
      %v2440 = vadd.f32 0.0, %v2439
      %v2441 = vpop.f32.mrf.mxu0
      %2442 = vmatprep.mubr.bf16.mxu0 %v884
      %2443 = vmatmul.mubr.bf16.gmra.mxu0 %v803
      %v2444 = vpop.f32.mrf.mxu0
      %v2445 = vadd.f32 0.0, %v2444
      %v2446 = vpop.f32.mrf.mxu0
      %v2447 = vpop.f32.mrf.mxu0
      %v2448 = vadd.f32 0.0, %v2447
      %v2449 = vpop.f32.mrf.mxu0
      %2450 = vmatprep.mubr.bf16.mxu0 %v896
      %2451 = vmatmul.mubr.bf16.gmra.mxu0 %v804
      %v2452 = vpop.f32.mrf.mxu0
      %v2453 = vadd.f32 0.0, %v2452
      %v2454 = vpop.f32.mrf.mxu0
      %v2455 = vpop.f32.mrf.mxu0
      %v2456 = vadd.f32 0.0, %v2455
      %v2457 = vpop.f32.mrf.mxu0
      %2458 = vmatprep.mubr.bf16.mxu0 %v908
      %2459 = vmatmul.mubr.bf16.gmra.mxu0 %v805
      %v2460 = vpop.f32.mrf.mxu0
      %v2461 = vadd.f32 0.0, %v2460
      %v2462 = vpop.f32.mrf.mxu0
      %v2463 = vpop.f32.mrf.mxu0
      %v2464 = vadd.f32 0.0, %v2463
      %v2465 = vpop.f32.mrf.mxu0
      %2466 = vmatprep.mubr.bf16.mxu0 %v920
      %2467 = vmatmul.mubr.bf16.gmra.mxu0 %v806
      %v2468 = vpop.f32.mrf.mxu0
      %v2469 = vadd.f32 0.0, %v2468
      %v2470 = vpop.f32.mrf.mxu0
      %v2471 = vpop.f32.mrf.mxu0
      %v2472 = vadd.f32 0.0, %v2471
      %v2473 = vpop.f32.mrf.mxu0
      %2474 = vmatprep.mubr.bf16.mxu0 %v932
      %2475 = vmatmul.mubr.bf16.gmra.mxu0 %v807
      %v2476 = vpop.f32.mrf.mxu0
      %v2477 = vadd.f32 0.0, %v2476
      %v2478 = vpop.f32.mrf.mxu0
      %v2479 = vpop.f32.mrf.mxu0
      %v2480 = vadd.f32 0.0, %v2479
      %v2481 = vpop.f32.mrf.mxu0
      %2482 = vmatprep.mubr.bf16.mxu0 %v944
      %2483 = vmatmul.mubr.bf16.gmra.mxu0 %v808
      %v2484 = vpop.f32.mrf.mxu0
      %v2485 = vadd.f32 0.0, %v2484
      %v2486 = vpop.f32.mrf.mxu0
      %v2487 = vpop.f32.mrf.mxu0
      %v2488 = vadd.f32 0.0, %v2487
      %v2489 = vpop.f32.mrf.mxu0
      %2490 = vmatprep.mubr.bf16.mxu0 %v956
      %2491 = vmatmul.mubr.bf16.gmra.mxu0 %v809
      %v2492 = vpop.f32.mrf.mxu0
      %v2493 = vadd.f32 0.0, %v2492
      %v2494 = vpop.f32.mrf.mxu0
      %v2495 = vpop.f32.mrf.mxu0
      %v2496 = vadd.f32 0.0, %v2495
      %v2497 = vpop.f32.mrf.mxu0
      %2498 = vmatprep.mubr.bf16.mxu0 %v968
      %2499 = vmatmul.mubr.bf16.gmra.mxu0 %v810
      %v2500 = vpop.f32.mrf.mxu0
      %v2501 = vadd.f32 0.0, %v2500
      %v2502 = vpop.f32.mrf.mxu0
      %v2503 = vpop.f32.mrf.mxu0
      %v2504 = vadd.f32 0.0, %v2503
      %v2505 = vpop.f32.mrf.mxu0
      %2506 = vmatprep.mubr.bf16.mxu0 %v980
      %2507 = vmatmul.mubr.bf16.gmra.mxu0 %v811
      %v2508 = vpop.f32.mrf.mxu0
      %v2509 = vadd.f32 0.0, %v2508
      %v2510 = vpop.f32.mrf.mxu0
      %v2511 = vpop.f32.mrf.mxu0
      %v2512 = vadd.f32 0.0, %v2511
      %v2513 = vpop.f32.mrf.mxu0
      %2514 = vmatprep.mubr.bf16.mxu0 %v992
      %2515 = vmatmul.mubr.bf16.gmra.mxu0 %v812
      %v2516 = vpop.f32.mrf.mxu0
      %v2517 = vadd.f32 0.0, %v2516
      %v2518 = vpop.f32.mrf.mxu0
      %v2519 = vpop.f32.mrf.mxu0
      %v2520 = vadd.f32 0.0, %v2519
      %v2521 = vpop.f32.mrf.mxu0
      %2522 = vmatprep.mubr.bf16.mxu0 %v1004
      %2523 = vmatmul.mubr.bf16.gmra.mxu0 %v813
      %v2524 = vpop.f32.mrf.mxu0
      %v2525 = vadd.f32 0.0, %v2524
      %v2526 = vpop.f32.mrf.mxu0
      %v2527 = vpop.f32.mrf.mxu0
      %v2528 = vadd.f32 0.0, %v2527
      %v2529 = vpop.f32.mrf.mxu0
      %2530 = vmatprep.mubr.bf16.mxu0 %v1016
      %2531 = vmatmul.mubr.bf16.gmra.mxu0 %v814
      %v2532 = vpop.f32.mrf.mxu0
      %v2533 = vadd.f32 0.0, %v2532
      %v2534 = vpop.f32.mrf.mxu0
      %v2535 = vpop.f32.mrf.mxu0
      %v2536 = vadd.f32 0.0, %v2535
      %v2537 = vpop.f32.mrf.mxu0
      %2538 = vmatprep.mubr.bf16.mxu0 %v1028
      %2539 = vmatmul.mubr.bf16.gmra.mxu0 %v815
      %v2540 = vpop.f32.mrf.mxu0
      %v2541 = vadd.f32 0.0, %v2540
      %v2542 = vpop.f32.mrf.mxu0
      %v2543 = vpop.f32.mrf.mxu0
      %v2544 = vadd.f32 0.0, %v2543
      %v2545 = vpop.f32.mrf.mxu0
      %2546 = vmatprep.mubr.bf16.mxu0 %v1201
      %2547 = vmatmul.mubr.bf16.gmra.mxu0 %v816
      %v2548 = vpop.f32.mrf.mxu0
      %v2549 = vadd.f32 0.0, %v2548
      %v2550 = vpop.f32.mrf.mxu0
      %v2551 = vpop.f32.mrf.mxu0
      %v2552 = vadd.f32 0.0, %v2551
      %v2553 = vpop.f32.mrf.mxu0
      %2554 = vmatprep.mubr.bf16.mxu0 %v2201
      %2555 = vmatmul.mubr.bf16.gmra.mxu0 %v817
      %v2556 = vpop.f32.mrf.mxu0
      %v2557 = vadd.f32 0.0, %v2556
      %v2558 = vpop.f32.mrf.mxu0
      %v2559 = vpop.f32.mrf.mxu0
      %v2560 = vadd.f32 0.0, %v2559
      %v2561 = vpop.f32.mrf.mxu0
      %2562 = vdwg.mxu0
      %2563 = vmatprep.subr.bf16.mxu0 0
      %2564 = vmatpush1.bf16.msra.mxu0 %v2377
      %2565 = vmatprep.subr.bf16.mxu0 0
      %2566 = vmatpush1.bf16.msra.mxu0 %v2376
      %2567 = vmatprep.subr.bf16.mxu0 0
      %2568 = vmatpush1.bf16.msra.mxu0 %v2375
      %2569 = vmatprep.subr.bf16.mxu0 0
      %2570 = vmatpush1.bf16.msra.mxu0 %v2374
      %2571 = vmatprep.subr.bf16.mxu0 0
      %2572 = vmatpush1.bf16.msra.mxu0 %v2373
      %2573 = vmatprep.subr.bf16.mxu0 0
      %2574 = vmatpush1.bf16.msra.mxu0 %v2372
      %2575 = vmatprep.subr.bf16.mxu0 0
      %2576 = vmatpush1.bf16.msra.mxu0 %v2371
      %2577 = vmatprep.subr.bf16.mxu0 0
      %2578 = vmatpush1.bf16.msra.mxu0 %v2370
      %2579 = vmatprep.subr.bf16.mxu0 0
      %2580 = vmatpush2.bf16.msra.mxu0 0
      %2581 = vmatprep.subr.bf16.mxu0 0
      %2582 = vmatpush2.bf16.msra.mxu0 0
      %2583 = vmatprep.subr.bf16.mxu0 0
      %2584 = vmatpush2.bf16.msra.mxu0 0
      %2585 = vmatprep.subr.bf16.mxu0 0
      %2586 = vmatpush2.bf16.msra.mxu0 0
      %2587 = vmatprep.subr.bf16.mxu0 0
      %2588 = vmatpush2.bf16.msra.mxu0 0
      %2589 = vmatprep.subr.bf16.mxu0 0
      %2590 = vmatpush2.bf16.msra.mxu0 0
      %2591 = vmatprep.subr.bf16.mxu0 0
      %2592 = vmatpush2.bf16.msra.mxu0 0
      %2593 = vmatprep.subr.bf16.mxu0 0
      %2594 = vmatpush2.bf16.msra.mxu0 0
      %2595 = vmatprep.mubr.bf16.mxu0 0
      %2596 = vmatmul.mubr.bf16.gmra.mxu0 %v1086
      %v2597 = vpop.f32.mrf.mxu0
      %v2598 = vadd.f32 %v2437, %v2597
      %v2599 = vpop.f32.mrf.mxu0
      %v2600 = vpop.f32.mrf.mxu0
      %v2601 = vadd.f32 %v2440, %v2600
      %v2602 = vpop.f32.mrf.mxu0
      %2603 = vmatprep.mubr.bf16.mxu0 0
      %2604 = vmatmul.mubr.bf16.gmra.mxu0 %v1089
      %v2605 = vpop.f32.mrf.mxu0
      %v2606 = vadd.f32 %v2445, %v2605
      %v2607 = vpop.f32.mrf.mxu0
      %v2608 = vpop.f32.mrf.mxu0
      %v2609 = vadd.f32 %v2448, %v2608
      %v2610 = vpop.f32.mrf.mxu0
      %2611 = vmatprep.mubr.bf16.mxu0 0
      %2612 = vmatmul.mubr.bf16.gmra.mxu0 %v1092
      %v2613 = vpop.f32.mrf.mxu0
      %v2614 = vadd.f32 %v2453, %v2613
      %v2615 = vpop.f32.mrf.mxu0
      %v2616 = vpop.f32.mrf.mxu0
      %v2617 = vadd.f32 %v2456, %v2616
      %v2618 = vpop.f32.mrf.mxu0
      %2619 = vmatprep.mubr.bf16.mxu0 0
      %2620 = vmatmul.mubr.bf16.gmra.mxu0 %v1095
      %v2621 = vpop.f32.mrf.mxu0
      %v2622 = vadd.f32 %v2461, %v2621
      %v2623 = vpop.f32.mrf.mxu0
      %v2624 = vpop.f32.mrf.mxu0
      %v2625 = vadd.f32 %v2464, %v2624
      %v2626 = vpop.f32.mrf.mxu0
      %2627 = vmatprep.mubr.bf16.mxu0 0
      %2628 = vmatmul.mubr.bf16.gmra.mxu0 %v1098
      %v2629 = vpop.f32.mrf.mxu0
      %v2630 = vadd.f32 %v2469, %v2629
      %v2631 = vpop.f32.mrf.mxu0
      %v2632 = vpop.f32.mrf.mxu0
      %v2633 = vadd.f32 %v2472, %v2632
      %v2634 = vpop.f32.mrf.mxu0
      %2635 = vmatprep.mubr.bf16.mxu0 0
      %2636 = vmatmul.mubr.bf16.gmra.mxu0 %v1101
      %v2637 = vpop.f32.mrf.mxu0
      %v2638 = vadd.f32 %v2477, %v2637
      %v2639 = vpop.f32.mrf.mxu0
      %v2640 = vpop.f32.mrf.mxu0
      %v2641 = vadd.f32 %v2480, %v2640
      %v2642 = vpop.f32.mrf.mxu0
      %2643 = vmatprep.mubr.bf16.mxu0 0
      %2644 = vmatmul.mubr.bf16.gmra.mxu0 %v1104
      %v2645 = vpop.f32.mrf.mxu0
      %v2646 = vadd.f32 %v2485, %v2645
      %v2647 = vpop.f32.mrf.mxu0
      %v2648 = vpop.f32.mrf.mxu0
      %v2649 = vadd.f32 %v2488, %v2648
      %v2650 = vpop.f32.mrf.mxu0
      %2651 = vmatprep.mubr.bf16.mxu0 0
      %2652 = vmatmul.mubr.bf16.gmra.mxu0 %v1107
      %v2653 = vpop.f32.mrf.mxu0
      %v2654 = vadd.f32 %v2493, %v2653
      %v2655 = vpop.f32.mrf.mxu0
      %v2656 = vpop.f32.mrf.mxu0
      %v2657 = vadd.f32 %v2496, %v2656
      %v2658 = vpop.f32.mrf.mxu0
      %2659 = vmatprep.mubr.bf16.mxu0 0
      %2660 = vmatmul.mubr.bf16.gmra.mxu0 %v1110
      %v2661 = vpop.f32.mrf.mxu0
      %v2662 = vadd.f32 %v2501, %v2661
      %v2663 = vpop.f32.mrf.mxu0
      %v2664 = vpop.f32.mrf.mxu0
      %v2665 = vadd.f32 %v2504, %v2664
      %v2666 = vpop.f32.mrf.mxu0
      %2667 = vmatprep.mubr.bf16.mxu0 0
      %2668 = vmatmul.mubr.bf16.gmra.mxu0 %v1113
      %v2669 = vpop.f32.mrf.mxu0
      %v2670 = vadd.f32 %v2509, %v2669
      %v2671 = vpop.f32.mrf.mxu0
      %v2672 = vpop.f32.mrf.mxu0
      %v2673 = vadd.f32 %v2512, %v2672
      %v2674 = vpop.f32.mrf.mxu0
      %2675 = vmatprep.mubr.bf16.mxu0 0
      %2676 = vmatmul.mubr.bf16.gmra.mxu0 %v1116
      %v2677 = vpop.f32.mrf.mxu0
      %v2678 = vadd.f32 %v2517, %v2677
      %v2679 = vpop.f32.mrf.mxu0
      %v2680 = vpop.f32.mrf.mxu0
      %v2681 = vadd.f32 %v2520, %v2680
      %v2682 = vpop.f32.mrf.mxu0
      %2683 = vmatprep.mubr.bf16.mxu0 0
      %2684 = vmatmul.mubr.bf16.gmra.mxu0 %v1119
      %v2685 = vpop.f32.mrf.mxu0
      %v2686 = vadd.f32 %v2525, %v2685
      %v2687 = vpop.f32.mrf.mxu0
      %v2688 = vpop.f32.mrf.mxu0
      %v2689 = vadd.f32 %v2528, %v2688
      %v2690 = vpop.f32.mrf.mxu0
      %2691 = vmatprep.mubr.bf16.mxu0 0
      %2692 = vmatmul.mubr.bf16.gmra.mxu0 %v1122
      %v2693 = vpop.f32.mrf.mxu0
      %v2694 = vadd.f32 %v2533, %v2693
      %v2695 = vpop.f32.mrf.mxu0
      %v2696 = vpop.f32.mrf.mxu0
      %v2697 = vadd.f32 %v2536, %v2696
      %v2698 = vpop.f32.mrf.mxu0
      %2699 = vmatprep.mubr.bf16.mxu0 0
      %2700 = vmatmul.mubr.bf16.gmra.mxu0 %v1125
      %v2701 = vpop.f32.mrf.mxu0
      %v2702 = vadd.f32 %v2541, %v2701
      %v2703 = vpop.f32.mrf.mxu0
      %v2704 = vpop.f32.mrf.mxu0
      %v2705 = vadd.f32 %v2544, %v2704
      %v2706 = vpop.f32.mrf.mxu0
      %2707 = vmatprep.mubr.bf16.mxu0 0
      %2708 = vmatmul.mubr.bf16.gmra.mxu0 %v1207
      %v2709 = vpop.f32.mrf.mxu0
      %v2710 = vadd.f32 %v2549, %v2709
      %v2711 = vpop.f32.mrf.mxu0
      %v2712 = vpop.f32.mrf.mxu0
      %v2713 = vadd.f32 %v2552, %v2712
      %v2714 = vpop.f32.mrf.mxu0
      %2715 = vmatprep.mubr.bf16.mxu0 0
      %2716 = vmatmul.mubr.bf16.gmra.mxu0 %v2207
      %v2717 = vpop.f32.mrf.mxu0
      %v2718 = vadd.f32 %v2557, %v2717
      %v2719 = vpop.f32.mrf.mxu0
      %v2720 = vpop.f32.mrf.mxu0
      %v2721 = vadd.f32 %v2560, %v2720
      %v2722 = vpop.f32.mrf.mxu0
      %2723 = vdwg.mxu0
      %v2724 = vadd.f32 %v2064, %v2598
      %v2725 = vadd.f32 %v2067, %v2601
      %v2726 = vadd.f32 %v2072, %v2606
      %v2727 = vadd.f32 %v2075, %v2609
      %v2728 = vadd.f32 %v2080, %v2614
      %v2729 = vadd.f32 %v2083, %v2617
      %v2730 = vadd.f32 %v2088, %v2622
      %v2731 = vadd.f32 %v2091, %v2625
      %v2732 = vadd.f32 %v2096, %v2630
      %v2733 = vadd.f32 %v2099, %v2633
      %v2734 = vadd.f32 %v2104, %v2638
      %v2735 = vadd.f32 %v2107, %v2641
      %v2736 = vadd.f32 %v2112, %v2646
      %v2737 = vadd.f32 %v2115, %v2649
      %v2738 = vadd.f32 %v2120, %v2654
      %v2739 = vadd.f32 %v2123, %v2657
      %v2740 = vadd.f32 %v2128, %v2662
      %v2741 = vadd.f32 %v2131, %v2665
      %v2742 = vadd.f32 %v2136, %v2670
      %v2743 = vadd.f32 %v2139, %v2673
      %v2744 = vadd.f32 %v2144, %v2678
      %v2745 = vadd.f32 %v2147, %v2681
      %v2746 = vadd.f32 %v2152, %v2686
      %v2747 = vadd.f32 %v2155, %v2689
      %v2748 = vadd.f32 %v2160, %v2694
      %v2749 = vadd.f32 %v2163, %v2697
      %v2750 = vadd.f32 %v2168, %v2702
      %v2751 = vadd.f32 %v2171, %v2705
      %v2752 = vadd.f32 %v2176, %v2710
      %v2753 = vadd.f32 %v2179, %v2713
      %v2754 = vadd.f32 %v2184, %v2718
      %v2755 = vadd.f32 %v2187, %v2721
      %v2756 = vpack.c.bf16 %v2725, %v2724
      %v2757 = vpack.c.bf16 %v2727, %v2726
      %v2758 = vpack.c.bf16 %v2729, %v2728
      %v2759 = vpack.c.bf16 %v2731, %v2730
      %v2760 = vpack.c.bf16 %v2733, %v2732
      %v2761 = vpack.c.bf16 %v2735, %v2734
      %v2762 = vpack.c.bf16 %v2737, %v2736
      %v2763 = vpack.c.bf16 %v2739, %v2738
      %v2764 = vpack.c.bf16 %v2741, %v2740
      %v2765 = vpack.c.bf16 %v2743, %v2742
      %v2766 = vpack.c.bf16 %v2745, %v2744
      %v2767 = vpack.c.bf16 %v2747, %v2746
      %v2768 = vpack.c.bf16 %v2749, %v2748
      %v2769 = vpack.c.bf16 %v2751, %v2750
      %v2770 = vpack.c.bf16 %v2753, %v2752
      %v2771 = vpack.c.bf16 %v2755, %v2754
      %v2788 = vunpack.c.l.b16 %v2756
      %v2789 = vunpack.c.h.b16 %v2756
      %v2790 = vunpack.c.l.b16 %v2757
      %v2791 = vunpack.c.h.b16 %v2757
      %v2792 = vunpack.c.l.b16 %v2758
      %v2793 = vunpack.c.h.b16 %v2758
      %v2794 = vunpack.c.l.b16 %v2759
      %v2795 = vunpack.c.h.b16 %v2759
      %v2796 = vunpack.c.l.b16 %v2760
      %v2797 = vunpack.c.h.b16 %v2760
      %v2798 = vunpack.c.l.b16 %v2761
      %v2799 = vunpack.c.h.b16 %v2761
      %v2800 = vunpack.c.l.b16 %v2762
      %v2801 = vunpack.c.h.b16 %v2762
      %v2802 = vunpack.c.l.b16 %v2763
      %v2803 = vunpack.c.h.b16 %v2763
      %v2804 = vunpack.c.l.b16 %v2764
      %v2805 = vunpack.c.h.b16 %v2764
      %v2806 = vunpack.c.l.b16 %v2765
      %v2807 = vunpack.c.h.b16 %v2765
      %v2808 = vunpack.c.l.b16 %v2766
      %v2809 = vunpack.c.h.b16 %v2766
      %v2810 = vunpack.c.l.b16 %v2767
      %v2811 = vunpack.c.h.b16 %v2767
      %v2812 = vunpack.c.l.b16 %v2768
      %v2813 = vunpack.c.h.b16 %v2768
      %v2814 = vunpack.c.l.b16 %v2769
      %v2815 = vunpack.c.h.b16 %v2769
      %v2816 = vunpack.c.l.b16 %v2770
      %v2817 = vunpack.c.h.b16 %v2770
      %v2818 = vunpack.c.l.b16 %v2771
      %v2819 = vunpack.c.h.b16 %v2771
      %v2820 = vpack.c.b16 %v2788, %v2788
      %v2821 = vpack.c.b16 %v2789, %v2789
      %v2822 = vpack.c.b16 %v2790, %v2790
      %v2823 = vpack.c.b16 %v2791, %v2791
      %v2824 = vpack.c.b16 %v2792, %v2792
      %v2825 = vpack.c.b16 %v2793, %v2793
      %v2826 = vpack.c.b16 %v2794, %v2794
      %v2827 = vpack.c.b16 %v2795, %v2795
      %v2828 = vpack.c.b16 %v2796, %v2796
      %v2829 = vpack.c.b16 %v2797, %v2797
      %v2830 = vpack.c.b16 %v2798, %v2798
      %v2831 = vpack.c.b16 %v2799, %v2799
      %v2832 = vpack.c.b16 %v2800, %v2800
      %v2833 = vpack.c.b16 %v2801, %v2801
      %v2834 = vpack.c.b16 %v2802, %v2802
      %v2835 = vpack.c.b16 %v2803, %v2803
      %v2836 = vpack.c.b16 %v2804, %v2804
      %v2837 = vpack.c.b16 %v2805, %v2805
      %v2838 = vpack.c.b16 %v2806, %v2806
      %v2839 = vpack.c.b16 %v2807, %v2807
      %v2840 = vpack.c.b16 %v2808, %v2808
      %v2841 = vpack.c.b16 %v2809, %v2809
      %v2842 = vpack.c.b16 %v2810, %v2810
      %v2843 = vpack.c.b16 %v2811, %v2811
      %v2844 = vpack.c.b16 %v2812, %v2812
      %v2845 = vpack.c.b16 %v2813, %v2813
      %v2846 = vpack.c.b16 %v2814, %v2814
      %v2847 = vpack.c.b16 %v2815, %v2815
      %v2848 = vpack.c.b16 %v2816, %v2816
      %v2849 = vpack.c.b16 %v2817, %v2817
      %v2850 = vpack.c.b16 %v2818, %v2818
      %v2851 = vpack.c.b16 %v2819, %v2819
      %2884 = vst [vmem:[%s401] sm:$0xf] %v2820
      %2885 = vst [vmem:[%s401 + $0x4] sm:$0xf] %v2821
      %2886 = vst [vmem:[%s401 + $0x8] sm:$0xf] %v2822
      %2887 = vst [vmem:[%s401 + $0xc] sm:$0xf] %v2823
      %2888 = vst [vmem:[%s401 + $0x10] sm:$0xf] %v2824
      %2889 = vst [vmem:[%s401 + $0x14] sm:$0xf] %v2825
      %2890 = vst [vmem:[%s401 + $0x18] sm:$0xf] %v2826
      %2891 = vst [vmem:[%s401 + $0x1c] sm:$0xf] %v2827
      %2892 = vst [vmem:[%s401 + $0x20] sm:$0xf] %v2828
      %2893 = vst [vmem:[%s401 + $0x24] sm:$0xf] %v2829
      %2894 = vst [vmem:[%s401 + $0x28] sm:$0xf] %v2830
      %2895 = vst [vmem:[%s401 + $0x2c] sm:$0xf] %v2831
      %2896 = vst [vmem:[%s401 + $0x30] sm:$0xf] %v2832
      %2897 = vst [vmem:[%s401 + $0x34] sm:$0xf] %v2833
      %2898 = vst [vmem:[%s401 + $0x38] sm:$0xf] %v2834
      %2899 = vst [vmem:[%s401 + $0x3c] sm:$0xf] %v2835
      %2900 = vst [vmem:[%s401 + $0x40] sm:$0xf] %v2836
      %2901 = vst [vmem:[%s401 + $0x44] sm:$0xf] %v2837
      %2902 = vst [vmem:[%s401 + $0x48] sm:$0xf] %v2838
      %2903 = vst [vmem:[%s401 + $0x4c] sm:$0xf] %v2839
      %2904 = vst [vmem:[%s401 + $0x50] sm:$0xf] %v2840
      %2905 = vst [vmem:[%s401 + $0x54] sm:$0xf] %v2841
      %2906 = vst [vmem:[%s401 + $0x58] sm:$0xf] %v2842
      %2907 = vst [vmem:[%s401 + $0x5c] sm:$0xf] %v2843
      %2908 = vst [vmem:[%s401 + $0x60] sm:$0xf] %v2844
      %2909 = vst [vmem:[%s401 + $0x64] sm:$0xf] %v2845
      %2910 = vst [vmem:[%s401 + $0x68] sm:$0xf] %v2846
      %2911 = vst [vmem:[%s401 + $0x6c] sm:$0xf] %v2847
      %2912 = vst [vmem:[%s401 + $0x70] sm:$0xf] %v2848
      %2913 = vst [vmem:[%s401 + $0x74] sm:$0xf] %v2849
      %2914 = vst [vmem:[%s401 + $0x78] sm:$0xf] %v2850
      %2915 = vst [vmem:[%s401 + $0x7c] sm:$0xf] %v2851
      %v2916 = vadd.f32 %v2724, %v2725
      %v2917 = vadd.f32 %v2916, %v2726
      %v2918 = vadd.f32 %v2917, %v2727
      %v2919 = vadd.f32 %v2918, %v2728
      %v2920 = vadd.f32 %v2919, %v2729
      %v2921 = vadd.f32 %v2920, %v2730
      %v2922 = vadd.f32 %v2921, %v2731
      %v2923 = vadd.f32 %v2922, %v2732
      %v2924 = vadd.f32 %v2923, %v2733
      %v2925 = vadd.f32 %v2924, %v2734
      %v2926 = vadd.f32 %v2925, %v2735
      %v2927 = vadd.f32 %v2926, %v2736
      %v2928 = vadd.f32 %v2927, %v2737
      %v2929 = vadd.f32 %v2928, %v2738
      %v2930 = vadd.f32 %v2929, %v2739
      %v2931 = vadd.f32 %v2930, %v2740
      %v2932 = vadd.f32 %v2931, %v2741
      %v2933 = vadd.f32 %v2932, %v2742
      %v2934 = vadd.f32 %v2933, %v2743
      %v2935 = vadd.f32 %v2934, %v2744
      %v2936 = vadd.f32 %v2935, %v2745
      %v2937 = vadd.f32 %v2936, %v2746
      %v2938 = vadd.f32 %v2937, %v2747
      %v2939 = vadd.f32 %v2938, %v2748
      %v2940 = vadd.f32 %v2939, %v2749
      %v2941 = vadd.f32 %v2940, %v2750
      %v2942 = vadd.f32 %v2941, %v2751
      %v2943 = vadd.f32 %v2942, %v2752
      %v2944 = vadd.f32 %v2943, %v2753
      %v2945 = vadd.f32 %v2944, %v2754
      %v2946 = vadd.f32 %v2945, %v2755
      %v2947 = vrot.slane %v2946, 4
      %v2948 = vadd.f32 %v2946, %v2947
      %v2949 = vrot.slane %v2948, 2
      %v2950 = vadd.f32 %v2948, %v2949
      %v2951 = vrot.slane %v2950, 1
      %v2952 = vadd.f32 %v2950, %v2951
      %v2953 = vmul.f32 %v2724, %v2724
      %v2954 = vmul.f32 %v2725, %v2725
      %v2955 = vmul.f32 %v2726, %v2726
      %v2956 = vmul.f32 %v2727, %v2727
      %v2957 = vmul.f32 %v2728, %v2728
      %v2958 = vmul.f32 %v2729, %v2729
      %v2959 = vmul.f32 %v2730, %v2730
      %v2960 = vmul.f32 %v2731, %v2731
      %v2961 = vmul.f32 %v2732, %v2732
      %v2962 = vmul.f32 %v2733, %v2733
      %v2963 = vmul.f32 %v2734, %v2734
      %v2964 = vmul.f32 %v2735, %v2735
      %v2965 = vmul.f32 %v2736, %v2736
      %v2966 = vmul.f32 %v2737, %v2737
      %v2967 = vmul.f32 %v2738, %v2738
      %v2968 = vmul.f32 %v2739, %v2739
      %v2969 = vmul.f32 %v2740, %v2740
      %v2970 = vmul.f32 %v2741, %v2741
      %v2971 = vmul.f32 %v2742, %v2742
      %v2972 = vmul.f32 %v2743, %v2743
      %v2973 = vmul.f32 %v2744, %v2744
      %v2974 = vmul.f32 %v2745, %v2745
      %v2975 = vmul.f32 %v2746, %v2746
      %v2976 = vmul.f32 %v2747, %v2747
      %v2977 = vmul.f32 %v2748, %v2748
      %v2978 = vmul.f32 %v2749, %v2749
      %v2979 = vmul.f32 %v2750, %v2750
      %v2980 = vmul.f32 %v2751, %v2751
      %v2981 = vmul.f32 %v2752, %v2752
      %v2982 = vmul.f32 %v2753, %v2753
      %v2983 = vmul.f32 %v2754, %v2754
      %v2984 = vmul.f32 %v2755, %v2755
      %v2985 = vadd.f32 %v2953, %v2954
      %v2986 = vadd.f32 %v2985, %v2955
      %v2987 = vadd.f32 %v2986, %v2956
      %v2988 = vadd.f32 %v2987, %v2957
      %v2989 = vadd.f32 %v2988, %v2958
      %v2990 = vadd.f32 %v2989, %v2959
      %v2991 = vadd.f32 %v2990, %v2960
      %v2992 = vadd.f32 %v2991, %v2961
      %v2993 = vadd.f32 %v2992, %v2962
      %v2994 = vadd.f32 %v2993, %v2963
      %v2995 = vadd.f32 %v2994, %v2964
      %v2996 = vadd.f32 %v2995, %v2965
      %v2997 = vadd.f32 %v2996, %v2966
      %v2998 = vadd.f32 %v2997, %v2967
      %v2999 = vadd.f32 %v2998, %v2968
      %v3000 = vadd.f32 %v2999, %v2969
      %v3001 = vadd.f32 %v3000, %v2970
      %v3002 = vadd.f32 %v3001, %v2971
      %v3003 = vadd.f32 %v3002, %v2972
      %v3004 = vadd.f32 %v3003, %v2973
      %v3005 = vadd.f32 %v3004, %v2974
      %v3006 = vadd.f32 %v3005, %v2975
      %v3007 = vadd.f32 %v3006, %v2976
      %v3008 = vadd.f32 %v3007, %v2977
      %v3009 = vadd.f32 %v3008, %v2978
      %v3010 = vadd.f32 %v3009, %v2979
      %v3011 = vadd.f32 %v3010, %v2980
      %v3012 = vadd.f32 %v3011, %v2981
      %v3013 = vadd.f32 %v3012, %v2982
      %v3014 = vadd.f32 %v3013, %v2983
      %v3015 = vadd.f32 %v3014, %v2984
      %v3016 = vrot.slane %v3015, 4
      %v3017 = vadd.f32 %v3015, %v3016
      %v3018 = vrot.slane %v3017, 2
      %v3019 = vadd.f32 %v3017, %v3018
      %v3020 = vrot.slane %v3019, 1
      %v3021 = vadd.f32 %v3019, %v3020
      %vm3022 = vcmask 1040384
      %v3023 = vsel %vm3022, %v2952, %v3021
      %3024 = vst [vmem:[%s409] sm:$0x3] %v3023
      %s3025 = smul.u32 16, %s24
      %p3026 = scmp.lt.s32.totalorder %s23, 1
      %s3027 = scalar_select %p3026, %s23, 1
      %p3028 = scmp.lt.s32.totalorder %s3025, 15
      %s3029 = scalar_select %p3028, %s3025, 15
      %s3030 = smul.addr %s3029, 2
      %s3031 = smul.addr %s3027, 32
      %s3032 = sadd.s32 %s3030, %s3031
      %s3033 = smul.addr %s3032, 4
      %s3034 = scalar_lea.vmem %s6, %s3033
      %p3035 = scmp.lt.s32.totalorder %s23, 1
      %s3036 = scalar_select %p3035, %s23, 1
      %p3037 = scmp.lt.s32.totalorder %s24, 0
      %s3038 = scalar_select %p3037, %s24, 0
      %s3039 = sadd.s32 %s3038, %s3036
      %s3040 = smul.addr %s3039, 2
      %s3041 = scalar_lea.vmem %s7, %s3040
      // Predicated region
      $region45: #{double_conv.4} parent=43 // pred_check
        %p3042 = pneg %p198
      $region46: #{double_conv.4} parent=43 // pred_check_branch
        %3044 = sbr.rel (%p3042) target = $region48
      $region47: #{double_conv.4} parent=43 // pred_region
        %s3045 = smul.u32 16, %s24
      $region48: #{double_conv.4} parent=43 // pred_fallthru
        _
      // Predicated region
      $region49: #{double_conv.4} parent=43 // pred_check
        %p3046 = pneg %p226
      $region50: #{double_conv.4} parent=43 // pred_check_branch
        %3048 = sbr.rel (%p3046) target = $region52
      $region51: #{double_conv.4} parent=43 // pred_region
        _
      $region52: #{double_conv.4} parent=43 // pred_fallthru
        _
    $region44: #{double_conv.4} parent=5 // pred_fallthru
      _
    %p3049 = scmp.le.s32.totalorder 2, %s14
    // Predicated region
    $region53: #{double_conv.4} parent=5 // pred_check
      %p3050 = pneg %p3049
    $region54: #{double_conv.4} parent=5 // pred_check_branch
      %3052 = sbr.rel (%p3050) target = $region56
    $region55: #{double_conv.4} parent=5 // pred_region
      %s3053 = ssub.s32 %s14, 2
      // Predicated region
      $region57: #{double_conv.4} parent=55 // pred_check
        %p3054 = pneg %p204
      $region58: #{double_conv.4} parent=55 // pred_check_branch
        %3056 = sbr.rel (%p3054) target = $region60
      $region59: #{double_conv.4} parent=55 // pred_region
        %s3057 = smul.u32 16, %s26
        %p3058 = scmp.lt.s32.totalorder %s25, 1
        %s3059 = scalar_select %p3058, %s25, 1
        %p3060 = scmp.lt.s32.totalorder %s3057, 15
        %s3061 = scalar_select %p3060, %s3057, 15
        %s3062 = smul.addr %s3061, 2
        %s3063 = smul.addr %s3059, 32
        %s3064 = sadd.s32 %s3062, %s3063
        %s3065 = smul.addr %s3064, 4
        %s3066 = scalar_lea.vmem %s6, %s3065
      $region60: #{double_conv.4} parent=55 // pred_fallthru
        _
      // Predicated region
      $region61: #{double_conv.4} parent=55 // pred_check
        %p3067 = pneg %p232
      $region62: #{double_conv.4} parent=55 // pred_check_branch
        %3069 = sbr.rel (%p3067) target = $region64
      $region63: #{double_conv.4} parent=55 // pred_region
        %p3070 = scmp.lt.s32.totalorder %s25, 1
        %s3071 = scalar_select %p3070, %s25, 1
        %p3072 = scmp.lt.s32.totalorder %s26, 0
        %s3073 = scalar_select %p3072, %s26, 0
        %s3074 = sadd.s32 %s3073, %s3071
        %s3075 = smul.addr %s3074, 2
        %s3076 = scalar_lea.vmem %s7, %s3075
      $region64: #{double_conv.4} parent=55 // pred_fallthru
        _
    $region56: #{double_conv.4} parent=5 // pred_fallthru
      _
  $region6: #{double_conv.4} parent=0 // loop_footer
    %s18 = sadd.s32 1, %s14
  $region7: #{double_conv.4} parent=0 // loop_footer_branch
    %13 = sbr.rel target = $region3
  $region8: #{double_conv.4} parent=0 // loop_exit
    _

</llo_original>
